<compile_context>
chip_gen: v5e
topology: v5e:2x2
jax: 0.10.0
libtpu: 0.0.40
codegen_flags: <defaults>
</compile_context>

<pallas_src>
import math

import jax
import jax.numpy as jnp
from jax.experimental import pallas as pl
from jax.experimental.pallas import tpu as pltpu

# ---------------- model sizes (small but TPU-friendly) ----------------
VOCAB = 256          # args.vocab_size
NUM_TOPICS = 8       # args.num_topics
NUM_TIMES = 4        # args.num_times
RHO_SIZE = 128       # args.rho_size (== emb_size)
T_HIDDEN = 128       # args.t_hidden_size
ETA_HIDDEN = 64      # args.eta_hidden_size
ETA_NLAYERS = 2      # args.eta_nlayers
DELTA = 0.005        # args.delta
LOG_DELTA = math.log(DELTA)
BSZ = 4
NUM_DOCS = 100.0
EPS = 1e-6

# bf16 weight-slab row offsets (all multiples of 16 so bf16 ref slices stay
# aligned to the packed sublane tile).
_O_W1B = 0                       # w1_bow      (V, H)
_O_W1E = _O_W1B + VOCAB          # w1_eta      (K, H)
_O_W2 = 272                      # w2          (H, H)
_O_WMU = _O_W2 + T_HIDDEN        # w_mu_theta^T (K, H)
_O_WLS = 416                     # w_ls_theta^T (K, H)
_O_RHO = 432                     # rho         (V, R)
WSLAB_ROWS = _O_RHO + VOCAB      # 688


# ===================== the single fused DETM kernel =====================
def _detm_kernel(coeff_ref, bows_ref, onehot_ref, rnn_ref,
                 wslab_ref, eta_big_ref, eta_small_ref, alpha_ref, out_ref):
    V, K, T, H, EH = VOCAB, NUM_TOPICS, NUM_TIMES, T_HIDDEN, ETA_HIDDEN
    f32, bf16 = jnp.float32, jnp.bfloat16
    cdims = (((1,), (1,)), ((), ()))     # contract lhs dim1 with rhs dim1

    # ---------------- unpack bias block (one load, vreg slices) ----------
    biasb = eta_big_ref[4 * EH:4 * EH + 8, :]            # (8, 256) f32
    b_lstm = (biasb[0:1, :], biasb[1:2, :])              # (1, 4EH) each
    b_eta_map = biasb[2:3, 0:EH]                         # (1, EH)
    b_mu_eta = biasb[3:4, 0:K]                           # (1, K)
    b_ls_eta = biasb[4:5, 0:K]
    b1 = biasb[5:6, 0:H]                                 # (1, H)
    b2 = biasb[6:7, 0:H]
    b_mu_th = biasb[7:8, 0:K]
    b_ls_th = biasb[7:8, 128:128 + K]

    # ========== eta path: q_eta_map -> 2-layer LSTM -> eta/KL chain ======
    x_seq = jnp.dot(rnn_ref[...], eta_small_ref[0:V, :],
                    preferred_element_type=f32) + b_eta_map        # (T, EH)
    for layer in range(ETA_NLAYERS):
        wih_t = eta_big_ref[2 * layer * EH:(2 * layer + 1) * EH, :]    # (EH,4EH)
        whh_t = eta_big_ref[(2 * layer + 1) * EH:(2 * layer + 2) * EH, :]
        # input-side matmul for all T steps at once
        xg = jnp.dot(x_seq, wih_t, preferred_element_type=f32) + b_lstm[layer]
        h = jnp.zeros((1, EH), f32)
        c = jnp.zeros((1, EH), f32)
        outs = []
        for t in range(T):                                 # static unroll, T=4
            gates = xg[t:t + 1, :] + jnp.dot(h, whh_t,
                                             preferred_element_type=f32)
            i_g = jax.nn.sigmoid(gates[:, 0:EH])
            f_g = jax.nn.sigmoid(gates[:, EH:2 * EH])
            g_g = jnp.tanh(gates[:, 2 * EH:3 * EH])
            o_g = jax.nn.sigmoid(gates[:, 3 * EH:4 * EH])
            c = f_g * c + i_g * g_g
            h = o_g * jnp.tanh(c)
            outs.append(h)
        x_seq = jnp.concatenate(outs, axis=0)              # (T, EH)
    output = x_seq

    wmu_out = eta_small_ref[V:V + EH, 0:K]                  # (EH, K)
    wmu_rec = eta_small_ref[V + EH:V + EH + K, 0:K]         # (K, K)
    wls_out = eta_small_ref[V + EH + K:V + 2 * EH + K, 0:K]
    wls_rec = eta_small_ref[V + 2 * EH + K:V + 2 * EH + 2 * K, 0:K]
    mu_out_all = jnp.dot(output, wmu_out, preferred_element_type=f32) + b_mu_eta
    ls_out_all = jnp.dot(output, wls_out, preferred_element_type=f32) + b_ls_eta

    eta_prev = jnp.zeros((1, K), f32)
    kl_eta = jnp.float32(0.0)
    eta_steps = []
    for t in range(T):
        mu_t = mu_out_all[t:t + 1, :] + jnp.dot(
            eta_prev, wmu_rec, preferred_element_type=f32)
        ls_t = ls_out_all[t:t + 1, :] + jnp.dot(
            eta_prev, wls_rec, preferred_element_type=f32)
        sp_sq = 1.0 if t == 0 else DELTA
        log_sp = 0.0 if t == 0 else LOG_DELTA
        kl_eta = kl_eta + 0.5 * jnp.sum(
            (jnp.exp(ls_t) + (mu_t - eta_prev) ** 2) / (sp_sq + EPS)
            - 1.0 + log_sp - ls_t)
        eta_steps.append(mu_t)          # eval-mode reparameterize: eta_t = mu_t
        eta_prev = mu_t

    # eta_td = etas[times] via one-hot weighting (no gather)
    onehot = onehot_ref[...]                                # (B, T)
    eta_td = onehot[:, 0:1] * eta_steps[0]
    for t in range(1, T):
        eta_td = eta_td + onehot[:, t:t + 1] * eta_steps[t]   # (B, K) f32

    # =================== alpha KL (variational time chain) ===============
    mu_a = alpha_ref[0:T * K, :]                            # (T*K, R) t-major
    ls_a = alpha_ref[T * K:2 * T * K, :]
    kl_alpha = 0.5 * jnp.sum(
        (jnp.exp(ls_a[0:K, :]) + mu_a[0:K, :] ** 2) / (1.0 + EPS)
        - 1.0 - ls_a[0:K, :])
    q_mu, q_ls, p_mu = mu_a[K:, :], ls_a[K:, :], mu_a[0:(T - 1) * K, :]
    kl_alpha = kl_alpha + 0.5 * jnp.sum(
        (jnp.exp(q_ls) + (q_mu - p_mu) ** 2) / (DELTA + EPS)
        - 1.0 + LOG_DELTA - q_ls)

    # ========= theta MLP (bf16 MXU operands, f32 accumulate/scalars) =====
    bows = bows_ref[...]                                    # (B, V) f32
    row_sum = jnp.sum(bows, axis=-1, keepdims=True)
    nbows = bows * pl.reciprocal(jnp.maximum(row_sum, 1.0), approx=True)

    w1_bow = wslab_ref[_O_W1B:_O_W1B + V, :]                # (V, H) bf16
    w1_eta = wslab_ref[_O_W1E:_O_W1E + K, :]                # (K, H)
    w2 = wslab_ref[_O_W2:_O_W2 + H, :]                      # (H, H)
    wmu_th = wslab_ref[_O_WMU:_O_WMU + K, :]                # (K, H)
    wls_th = wslab_ref[_O_WLS:_O_WLS + K, :]                # (K, H)
    rho = wslab_ref[_O_RHO:_O_RHO + V, :]                   # (V, R)

    h1 = (jnp.dot(nbows.astype(bf16), w1_bow, preferred_element_type=f32)
          + jnp.dot(eta_td.astype(bf16), w1_eta, preferred_element_type=f32)
          + b1)
    h1 = jnp.maximum(h1, 0.0)                               # ReLU (theta_act)
    h2 = jnp.dot(h1.astype(bf16), w2, preferred_element_type=f32) + b2
    h2 = jnp.maximum(h2, 0.0)
    h2b = h2.astype(bf16)
    mu_th = jax.lax.dot_general(h2b, wmu_th, cdims,
                                preferred_element_type=f32) + b_mu_th
    ls_th = jax.lax.dot_general(h2b, wls_th, cdims,
                                preferred_element_type=f32) + b_ls_th

    m = jnp.max(mu_th, axis=-1, keepdims=True)
    e = jnp.exp(mu_th - m)
    theta = e / jnp.sum(e, axis=-1, keepdims=True)          # (B, K), eval: z=mu
    kl_theta = 0.5 * jnp.sum(
        (jnp.exp(ls_th) + (mu_th - eta_td) ** 2) / (1.0 + EPS) - 1.0 - ls_th)

    # ==== beta (unnormalized, transposed) + nll: one K = T*K contraction ==
    logit_t = jax.lax.dot_general(rho, mu_a.astype(bf16), cdims,
                                  preferred_element_type=f32)   # (V, T*K)
    lmax = jnp.max(logit_t, axis=0, keepdims=True)              # (1, T*K)
    le_t = jnp.exp(logit_t - lmax)                              # (V, T*K)
    inv_norm = pl.reciprocal(jnp.sum(le_t, axis=0, keepdims=True),
                             approx=True)                       # (1, T*K)

    # fold the one-hot time mask AND beta's row normalizer into theta
    theta_sel = jnp.concatenate(
        [theta * onehot[:, t:t + 1] for t in range(T)], axis=1)  # (B, T*K)
    theta_sel = theta_sel * inv_norm
    loglik = jax.lax.dot_general(theta_sel, le_t, cdims,
                                 preferred_element_type=f32)     # (B, V)
    nll = jnp.sum(-jnp.log(loglik + EPS) * bows)

    # ================= combine & write scalar outputs ====================
    coeff = coeff_ref[0, 0]
    nll = nll * coeff
    kl_theta = kl_theta * coeff
    nelbo = nll + kl_alpha + kl_eta + kl_theta
    out_ref[0, 0] = nelbo
    out_ref[0, 1] = nll
    out_ref[0, 2] = kl_alpha
    out_ref[0, 3] = kl_eta
    out_ref[0, 4] = kl_theta
    out_ref[0, 5] = jnp.float32(0.0)
    out_ref[0, 6] = jnp.float32(0.0)
    out_ref[0, 7] = jnp.float32(0.0)


def _detm_pallas(coeff, bows, onehot, rnn_inp, wslab, eta_big, eta_small, alpha):
    vmem = pl.BlockSpec(memory_space=pltpu.MemorySpace.VMEM)
    smem = pl.BlockSpec(memory_space=pltpu.MemorySpace.SMEM)
    return pl.pallas_call(
        _detm_kernel,
        out_shape=jax.ShapeDtypeStruct((1, 8), jnp.float32),
        in_specs=[smem, vmem, vmem, vmem, vmem, vmem, vmem, vmem],
        out_specs=smem,
    )(coeff, bows, onehot, rnn_inp, wslab, eta_big, eta_small, alpha)


# ========================= parameter setup ==============================
def init_params(key):
    ks = jax.random.split(key, 16)
    sc = 0.05
    p = {}
    # pretrained embeddings rho (train_embeddings=False path): (V, R)
    p["rho"] = sc * jax.random.normal(ks[0], (VOCAB, RHO_SIZE), jnp.float32)
    p["mu_q_alpha"] = jax.random.normal(
        ks[1], (NUM_TOPICS, NUM_TIMES, RHO_SIZE), jnp.float32)
    p["logsigma_q_alpha"] = jax.random.normal(
        ks[2], (NUM_TOPICS, NUM_TIMES, RHO_SIZE), jnp.float32)
    # q_theta MLP: first layer weight split into bow-part (V,H) and eta-part (K,H)
    p["w1_bow"] = sc * jax.random.normal(ks[3], (VOCAB, T_HIDDEN), jnp.float32)
    p["w1_eta"] = sc * jax.random.normal(ks[4], (NUM_TOPICS, T_HIDDEN), jnp.float32)
    p["b1"] = jnp.zeros((T_HIDDEN,), jnp.float32)
    p["w2"] = sc * jax.random.normal(ks[5], (T_HIDDEN, T_HIDDEN), jnp.float32)
    p["b2"] = jnp.zeros((T_HIDDEN,), jnp.float32)
    p["w_mu_theta"] = sc * jax.random.normal(
        ks[6], (T_HIDDEN, NUM_TOPICS), jnp.float32)
    p["bmu_theta"] = jnp.zeros((NUM_TOPICS,), jnp.float32)
    p["w_ls_theta"] = sc * jax.random.normal(
        ks[7], (T_HIDDEN, NUM_TOPICS), jnp.float32)
    p["bls_theta"] = jnp.zeros((NUM_TOPICS,), jnp.float32)
    # q_eta_map : Linear(V, ETA_HIDDEN)
    p["w_eta_map"] = sc * jax.random.normal(ks[8], (VOCAB, ETA_HIDDEN), jnp.float32)
    p["b_eta_map"] = jnp.zeros((ETA_HIDDEN,), jnp.float32)
    # LSTM (PyTorch layout: Wih (4H, in), Whh (4H, H)); gate order i,f,g,o
    lstm = []
    for l in range(ETA_NLAYERS):
        k1, k2 = jax.random.split(ks[9 + l])
        lstm.append(dict(
            wih=sc * jax.random.normal(k1, (4 * ETA_HIDDEN, ETA_HIDDEN), jnp.float32),
            whh=sc * jax.random.normal(k2, (4 * ETA_HIDDEN, ETA_HIDDEN), jnp.float32),
            bih=jnp.zeros((4 * ETA_HIDDEN,), jnp.float32),
            bhh=jnp.zeros((4 * ETA_HIDDEN,), jnp.float32)))
    p["lstm"] = lstm
    # mu_q_eta / logsigma_q_eta : Linear(ETA_HIDDEN + K, K)
    p["wmu_eta"] = sc * jax.random.normal(
        ks[12], (ETA_HIDDEN + NUM_TOPICS, NUM_TOPICS), jnp.float32)
    p["bmu_eta"] = jnp.zeros((NUM_TOPICS,), jnp.float32)
    p["wls_eta"] = sc * jax.random.normal(
        ks[13], (ETA_HIDDEN + NUM_TOPICS, NUM_TOPICS), jnp.float32)
    p["bls_eta"] = jnp.zeros((NUM_TOPICS,), jnp.float32)
    return p


def pack_params(p):
    """Pack logical params into the 4 slabs the kernel consumes (done once)."""
    V, K, T, R, H, EH = VOCAB, NUM_TOPICS, NUM_TIMES, RHO_SIZE, T_HIDDEN, ETA_HIDDEN

    # ---- bf16 slab: theta MLP weights, theta heads (transposed), rho ----
    wslab = jnp.zeros((WSLAB_ROWS, R), jnp.float32)
    wslab = wslab.at[_O_W1B:_O_W1B + V].set(p["w1_bow"])
    wslab = wslab.at[_O_W1E:_O_W1E + K].set(p["w1_eta"])
    wslab = wslab.at[_O_W2:_O_W2 + H].set(p["w2"])
    wslab = wslab.at[_O_WMU:_O_WMU + K].set(p["w_mu_theta"].T)
    wslab = wslab.at[_O_WLS:_O_WLS + K].set(p["w_ls_theta"].T)
    wslab = wslab.at[_O_RHO:_O_RHO + V].set(p["rho"])
    wslab = wslab.astype(jnp.bfloat16)

    # ---- LSTM weights (transposed) + all small biases, one f32 slab -----
    bias_block = jnp.zeros((8, 4 * EH), jnp.float32)
    bias_block = bias_block.at[0, :].set(p["lstm"][0]["bih"] + p["lstm"][0]["bhh"])
    bias_block = bias_block.at[1, :].set(p["lstm"][1]["bih"] + p["lstm"][1]["bhh"])
    bias_block = bias_block.at[2, :EH].set(p["b_eta_map"])
    bias_block = bias_block.at[3, :K].set(p["bmu_eta"])
    bias_block = bias_block.at[4, :K].set(p["bls_eta"])
    bias_block = bias_block.at[5, :H].set(p["b1"])
    bias_block = bias_block.at[6, :H].set(p["b2"])
    bias_block = bias_block.at[7, :K].set(p["bmu_theta"])
    bias_block = bias_block.at[7, 128:128 + K].set(p["bls_theta"])
    eta_big = jnp.concatenate([
        p["lstm"][0]["wih"].T, p["lstm"][0]["whh"].T,
        p["lstm"][1]["wih"].T, p["lstm"][1]["whh"].T,
        bias_block], axis=0)                                   # (264, 256)

    # ---- q_eta_map weight + eta head weights (lane-padded to EH) --------
    pad = lambda w: jnp.pad(w, ((0, 0), (0, EH - K)))
    eta_small = jnp.concatenate([
        p["w_eta_map"], pad(p["wmu_eta"]), pad(p["wls_eta"])], axis=0)  # (400,64)

    # ---- alpha variational params, t-major flat ((T*K, R) twice) --------
    mu_flat = jnp.transpose(p["mu_q_alpha"], (1, 0, 2)).reshape(T * K, R)
    ls_flat = jnp.transpose(p["logsigma_q_alpha"], (1, 0, 2)).reshape(T * K, R)
    alpha = jnp.concatenate([mu_flat, ls_flat], axis=0)         # (64, 128)

    return {"wslab": wslab, "eta_big": eta_big,
            "eta_small": eta_small, "alpha": alpha}


# ========================= forward (thin wrapper) =======================
def detm_forward(packed, bows, normalized_bows, times, rnn_inp, num_docs):
    # normalized_bows is recomputed in-kernel from bows (standard DETM
    # normalization bows / sum(bows)); the explicit input is not needed.
    del normalized_bows
    bsz = bows.shape[0]
    coeff = jnp.reshape((num_docs / bsz).astype(jnp.float32), (1, 1))
    onehot = jax.nn.one_hot(times, NUM_TIMES, dtype=jnp.float32)   # (B, T)

    out = _detm_pallas(coeff, bows, onehot, rnn_inp,
                       packed["wslab"], packed["eta_big"],
                       packed["eta_small"], packed["alpha"])
    nelbo, nll = out[0, 0], out[0, 1]
    kl_alpha, kl_eta, kl_theta = out[0, 2], out[0, 3], out[0, 4]
    return nelbo, nll, kl_alpha, kl_eta, kl_theta


if __name__ == "__main__":
    key = jax.random.PRNGKey(0)
    kp, kb, kt, kr = jax.random.split(key, 4)
    params = init_params(kp)
    packed = pack_params(params)

    bows = jax.random.poisson(kb, 1.0, (BSZ, VOCAB)).astype(jnp.float32)
    normalized_bows = bows / jnp.maximum(bows.sum(axis=1, keepdims=True), 1.0)
    times = jax.random.randint(kt, (BSZ,), 0, NUM_TIMES).astype(jnp.int32)
    rnn_inp = jax.random.uniform(kr, (NUM_TIMES, VOCAB), dtype=jnp.float32)

    fwd = jax.jit(detm_forward)
    nelbo, nll, kl_alpha, kl_eta, kl_theta = fwd(
        packed, bows, normalized_bows, times, rnn_inp, jnp.float32(NUM_DOCS))
    jax.block_until_ready(nelbo)
    print("KERNEL_OK")
</pallas_src>

<mosaic_0001>
module attributes {stable_mosaic.version = 11 : i64} {
  func.func @_detm_kernel(%arg0: memref<1x1xf32, #tpu.memory_space<smem>>, %arg1: memref<4x256xf32, #tpu.memory_space<vmem>>, %arg2: memref<4x4xf32, #tpu.memory_space<vmem>>, %arg3: memref<4x256xf32, #tpu.memory_space<vmem>>, %arg4: memref<688x128xbf16, #tpu.memory_space<vmem>>, %arg5: memref<264x256xf32, #tpu.memory_space<vmem>>, %arg6: memref<400x64xf32, #tpu.memory_space<vmem>>, %arg7: memref<64x128xf32, #tpu.memory_space<vmem>>, %arg8: memref<1x8xf32, #tpu.memory_space<smem>>) attributes {dimension_semantics = [], scalar_prefetch = 0 : i64, scratch_operands = 0 : i64, tpu.core_type = #tpu.core_type<tc>} {
    %c256 = arith.constant 256 : index
    %c0 = arith.constant 0 : index
    %0 = vector.load %arg5[%c256, %c0] : memref<264x256xf32, #tpu.memory_space<vmem>>, vector<8x256xf32>
    %1 = vector.extract_strided_slice %0 {offsets = [0, 0], sizes = [1, 256], strides = [1, 1]} : vector<8x256xf32> to vector<1x256xf32>
    %2 = vector.extract_strided_slice %0 {offsets = [1, 0], sizes = [1, 256], strides = [1, 1]} : vector<8x256xf32> to vector<1x256xf32>
    %3 = vector.extract_strided_slice %0 {offsets = [2, 0], sizes = [1, 64], strides = [1, 1]} : vector<8x256xf32> to vector<1x64xf32>
    %4 = vector.extract_strided_slice %0 {offsets = [3, 0], sizes = [1, 8], strides = [1, 1]} : vector<8x256xf32> to vector<1x8xf32>
    %5 = vector.extract_strided_slice %0 {offsets = [4, 0], sizes = [1, 8], strides = [1, 1]} : vector<8x256xf32> to vector<1x8xf32>
    %6 = vector.extract_strided_slice %0 {offsets = [5, 0], sizes = [1, 128], strides = [1, 1]} : vector<8x256xf32> to vector<1x128xf32>
    %7 = vector.extract_strided_slice %0 {offsets = [6, 0], sizes = [1, 128], strides = [1, 1]} : vector<8x256xf32> to vector<1x128xf32>
    %8 = vector.extract_strided_slice %0 {offsets = [7, 0], sizes = [1, 8], strides = [1, 1]} : vector<8x256xf32> to vector<1x8xf32>
    %9 = vector.extract_strided_slice %0 {offsets = [7, 128], sizes = [1, 8], strides = [1, 1]} : vector<8x256xf32> to vector<1x8xf32>
    %c0_0 = arith.constant 0 : index
    %c0_1 = arith.constant 0 : index
    %10 = vector.load %arg3[%c0_0, %c0_1] : memref<4x256xf32, #tpu.memory_space<vmem>>, vector<4x256xf32>
    %c0_2 = arith.constant 0 : index
    %c0_3 = arith.constant 0 : index
    %11 = vector.load %arg6[%c0_2, %c0_3] : memref<400x64xf32, #tpu.memory_space<vmem>>, vector<256x64xf32>
    %cst = arith.constant dense<0.000000e+00> : vector<4x64xf32>
    %12 = tpu.matmul %10, %11, %cst {dimension_numbers = #tpu.dot_dimension_numbers<[1], [0], [0], [1], [0, 0, 1, 1], [], []>} : vector<4x256xf32>, vector<256x64xf32>, vector<4x64xf32> -> vector<4x64xf32>
    %13 = vector.broadcast %3 : vector<1x64xf32> to vector<4x64xf32>
    %14 = arith.addf %12, %13 : vector<4x64xf32>
    %c0_4 = arith.constant 0 : index
    %c0_5 = arith.constant 0 : index
    %15 = vector.load %arg5[%c0_4, %c0_5] : memref<264x256xf32, #tpu.memory_space<vmem>>, vector<64x256xf32>
    %c64 = arith.constant 64 : index
    %c0_6 = arith.constant 0 : index
    %16 = vector.load %arg5[%c64, %c0_6] : memref<264x256xf32, #tpu.memory_space<vmem>>, vector<64x256xf32>
    %cst_7 = arith.constant dense<0.000000e+00> : vector<4x256xf32>
    %17 = tpu.matmul %14, %15, %cst_7 {dimension_numbers = #tpu.dot_dimension_numbers<[1], [0], [0], [1], [0, 0, 1, 1], [], []>} : vector<4x64xf32>, vector<64x256xf32>, vector<4x256xf32> -> vector<4x256xf32>
    %18 = vector.broadcast %1 : vector<1x256xf32> to vector<4x256xf32>
    %19 = arith.addf %17, %18 : vector<4x256xf32>
    %cst_8 = arith.constant 0.000000e+00 : f32
    %20 = vector.broadcast %cst_8 : f32 to vector<1x64xf32>
    %cst_9 = arith.constant 0.000000e+00 : f32
    %21 = vector.broadcast %cst_9 : f32 to vector<1x64xf32>
    %22 = vector.extract_strided_slice %19 {offsets = [0, 0], sizes = [1, 256], strides = [1, 1]} : vector<4x256xf32> to vector<1x256xf32>
    %cst_10 = arith.constant dense<0.000000e+00> : vector<1x256xf32>
    %23 = tpu.matmul %20, %16, %cst_10 {dimension_numbers = #tpu.dot_dimension_numbers<[1], [0], [0], [1], [0, 0, 1, 1], [], []>} : vector<1x64xf32>, vector<64x256xf32>, vector<1x256xf32> -> vector<1x256xf32>
    %24 = arith.addf %22, %23 : vector<1x256xf32>
    %25 = vector.extract_strided_slice %24 {offsets = [0, 0], sizes = [1, 64], strides = [1, 1]} : vector<1x256xf32> to vector<1x64xf32>
    %26 = arith.negf %25 : vector<1x64xf32>
    %27 = math.exp %26 : vector<1x64xf32>
    %cst_11 = arith.constant 1.000000e+00 : f32
    %28 = vector.broadcast %cst_11 : f32 to vector<1x64xf32>
    %29 = arith.addf %28, %27 : vector<1x64xf32>
    %30 = arith.divf %28, %29 : vector<1x64xf32>
    %31 = vector.extract_strided_slice %24 {offsets = [0, 64], sizes = [1, 64], strides = [1, 1]} : vector<1x256xf32> to vector<1x64xf32>
    %32 = arith.negf %31 : vector<1x64xf32>
    %33 = math.exp %32 : vector<1x64xf32>
    %cst_12 = arith.constant 1.000000e+00 : f32
    %34 = vector.broadcast %cst_12 : f32 to vector<1x64xf32>
    %35 = arith.addf %34, %33 : vector<1x64xf32>
    %36 = arith.divf %34, %35 : vector<1x64xf32>
    %37 = vector.extract_strided_slice %24 {offsets = [0, 128], sizes = [1, 64], strides = [1, 1]} : vector<1x256xf32> to vector<1x64xf32>
    %38 = math.tanh %37 : vector<1x64xf32>
    %39 = vector.extract_strided_slice %24 {offsets = [0, 192], sizes = [1, 64], strides = [1, 1]} : vector<1x256xf32> to vector<1x64xf32>
    %40 = arith.negf %39 : vector<1x64xf32>
    %41 = math.exp %40 : vector<1x64xf32>
    %cst_13 = arith.constant 1.000000e+00 : f32
    %42 = vector.broadcast %cst_13 : f32 to vector<1x64xf32>
    %43 = arith.addf %42, %41 : vector<1x64xf32>
    %44 = arith.divf %42, %43 : vector<1x64xf32>
    %45 = arith.mulf %36, %21 : vector<1x64xf32>
    %46 = arith.mulf %30, %38 : vector<1x64xf32>
    %47 = arith.addf %45, %46 : vector<1x64xf32>
    %48 = math.tanh %47 : vector<1x64xf32>
    %49 = arith.mulf %44, %48 : vector<1x64xf32>
    %50 = vector.extract_strided_slice %19 {offsets = [1, 0], sizes = [1, 256], strides = [1, 1]} : vector<4x256xf32> to vector<1x256xf32>
    %cst_14 = arith.constant dense<0.000000e+00> : vector<1x256xf32>
    %51 = tpu.matmul %49, %16, %cst_14 {dimension_numbers = #tpu.dot_dimension_numbers<[1], [0], [0], [1], [0, 0, 1, 1], [], []>} : vector<1x64xf32>, vector<64x256xf32>, vector<1x256xf32> -> vector<1x256xf32>
    %52 = arith.addf %50, %51 : vector<1x256xf32>
    %53 = vector.extract_strided_slice %52 {offsets = [0, 0], sizes = [1, 64], strides = [1, 1]} : vector<1x256xf32> to vector<1x64xf32>
    %54 = arith.negf %53 : vector<1x64xf32>
    %55 = math.exp %54 : vector<1x64xf32>
    %cst_15 = arith.constant 1.000000e+00 : f32
    %56 = vector.broadcast %cst_15 : f32 to vector<1x64xf32>
    %57 = arith.addf %56, %55 : vector<1x64xf32>
    %58 = arith.divf %56, %57 : vector<1x64xf32>
    %59 = vector.extract_strided_slice %52 {offsets = [0, 64], sizes = [1, 64], strides = [1, 1]} : vector<1x256xf32> to vector<1x64xf32>
    %60 = arith.negf %59 : vector<1x64xf32>
    %61 = math.exp %60 : vector<1x64xf32>
    %cst_16 = arith.constant 1.000000e+00 : f32
    %62 = vector.broadcast %cst_16 : f32 to vector<1x64xf32>
    %63 = arith.addf %62, %61 : vector<1x64xf32>
    %64 = arith.divf %62, %63 : vector<1x64xf32>
    %65 = vector.extract_strided_slice %52 {offsets = [0, 128], sizes = [1, 64], strides = [1, 1]} : vector<1x256xf32> to vector<1x64xf32>
    %66 = math.tanh %65 : vector<1x64xf32>
    %67 = vector.extract_strided_slice %52 {offsets = [0, 192], sizes = [1, 64], strides = [1, 1]} : vector<1x256xf32> to vector<1x64xf32>
    %68 = arith.negf %67 : vector<1x64xf32>
    %69 = math.exp %68 : vector<1x64xf32>
    %cst_17 = arith.constant 1.000000e+00 : f32
    %70 = vector.broadcast %cst_17 : f32 to vector<1x64xf32>
    %71 = arith.addf %70, %69 : vector<1x64xf32>
    %72 = arith.divf %70, %71 : vector<1x64xf32>
    %73 = arith.mulf %64, %47 : vector<1x64xf32>
    %74 = arith.mulf %58, %66 : vector<1x64xf32>
    %75 = arith.addf %73, %74 : vector<1x64xf32>
    %76 = math.tanh %75 : vector<1x64xf32>
    %77 = arith.mulf %72, %76 : vector<1x64xf32>
    %78 = vector.extract_strided_slice %19 {offsets = [2, 0], sizes = [1, 256], strides = [1, 1]} : vector<4x256xf32> to vector<1x256xf32>
    %cst_18 = arith.constant dense<0.000000e+00> : vector<1x256xf32>
    %79 = tpu.matmul %77, %16, %cst_18 {dimension_numbers = #tpu.dot_dimension_numbers<[1], [0], [0], [1], [0, 0, 1, 1], [], []>} : vector<1x64xf32>, vector<64x256xf32>, vector<1x256xf32> -> vector<1x256xf32>
    %80 = arith.addf %78, %79 : vector<1x256xf32>
    %81 = vector.extract_strided_slice %80 {offsets = [0, 0], sizes = [1, 64], strides = [1, 1]} : vector<1x256xf32> to vector<1x64xf32>
    %82 = arith.negf %81 : vector<1x64xf32>
    %83 = math.exp %82 : vector<1x64xf32>
    %cst_19 = arith.constant 1.000000e+00 : f32
    %84 = vector.broadcast %cst_19 : f32 to vector<1x64xf32>
    %85 = arith.addf %84, %83 : vector<1x64xf32>
    %86 = arith.divf %84, %85 : vector<1x64xf32>
    %87 = vector.extract_strided_slice %80 {offsets = [0, 64], sizes = [1, 64], strides = [1, 1]} : vector<1x256xf32> to vector<1x64xf32>
    %88 = arith.negf %87 : vector<1x64xf32>
    %89 = math.exp %88 : vector<1x64xf32>
    %cst_20 = arith.constant 1.000000e+00 : f32
    %90 = vector.broadcast %cst_20 : f32 to vector<1x64xf32>
    %91 = arith.addf %90, %89 : vector<1x64xf32>
    %92 = arith.divf %90, %91 : vector<1x64xf32>
    %93 = vector.extract_strided_slice %80 {offsets = [0, 128], sizes = [1, 64], strides = [1, 1]} : vector<1x256xf32> to vector<1x64xf32>
    %94 = math.tanh %93 : vector<1x64xf32>
    %95 = vector.extract_strided_slice %80 {offsets = [0, 192], sizes = [1, 64], strides = [1, 1]} : vector<1x256xf32> to vector<1x64xf32>
    %96 = arith.negf %95 : vector<1x64xf32>
    %97 = math.exp %96 : vector<1x64xf32>
    %cst_21 = arith.constant 1.000000e+00 : f32
    %98 = vector.broadcast %cst_21 : f32 to vector<1x64xf32>
    %99 = arith.addf %98, %97 : vector<1x64xf32>
    %100 = arith.divf %98, %99 : vector<1x64xf32>
    %101 = arith.mulf %92, %75 : vector<1x64xf32>
    %102 = arith.mulf %86, %94 : vector<1x64xf32>
    %103 = arith.addf %101, %102 : vector<1x64xf32>
    %104 = math.tanh %103 : vector<1x64xf32>
    %105 = arith.mulf %100, %104 : vector<1x64xf32>
    %106 = vector.extract_strided_slice %19 {offsets = [3, 0], sizes = [1, 256], strides = [1, 1]} : vector<4x256xf32> to vector<1x256xf32>
    %cst_22 = arith.constant dense<0.000000e+00> : vector<1x256xf32>
    %107 = tpu.matmul %105, %16, %cst_22 {dimension_numbers = #tpu.dot_dimension_numbers<[1], [0], [0], [1], [0, 0, 1, 1], [], []>} : vector<1x64xf32>, vector<64x256xf32>, vector<1x256xf32> -> vector<1x256xf32>
    %108 = arith.addf %106, %107 : vector<1x256xf32>
    %109 = vector.extract_strided_slice %108 {offsets = [0, 0], sizes = [1, 64], strides = [1, 1]} : vector<1x256xf32> to vector<1x64xf32>
    %110 = arith.negf %109 : vector<1x64xf32>
    %111 = math.exp %110 : vector<1x64xf32>
    %cst_23 = arith.constant 1.000000e+00 : f32
    %112 = vector.broadcast %cst_23 : f32 to vector<1x64xf32>
    %113 = arith.addf %112, %111 : vector<1x64xf32>
    %114 = arith.divf %112, %113 : vector<1x64xf32>
    %115 = vector.extract_strided_slice %108 {offsets = [0, 64], sizes = [1, 64], strides = [1, 1]} : vector<1x256xf32> to vector<1x64xf32>
    %116 = arith.negf %115 : vector<1x64xf32>
    %117 = math.exp %116 : vector<1x64xf32>
    %cst_24 = arith.constant 1.000000e+00 : f32
    %118 = vector.broadcast %cst_24 : f32 to vector<1x64xf32>
    %119 = arith.addf %118, %117 : vector<1x64xf32>
    %120 = arith.divf %118, %119 : vector<1x64xf32>
    %121 = vector.extract_strided_slice %108 {offsets = [0, 128], sizes = [1, 64], strides = [1, 1]} : vector<1x256xf32> to vector<1x64xf32>
    %122 = math.tanh %121 : vector<1x64xf32>
    %123 = vector.extract_strided_slice %108 {offsets = [0, 192], sizes = [1, 64], strides = [1, 1]} : vector<1x256xf32> to vector<1x64xf32>
    %124 = arith.negf %123 : vector<1x64xf32>
    %125 = math.exp %124 : vector<1x64xf32>
    %cst_25 = arith.constant 1.000000e+00 : f32
    %126 = vector.broadcast %cst_25 : f32 to vector<1x64xf32>
    %127 = arith.addf %126, %125 : vector<1x64xf32>
    %128 = arith.divf %126, %127 : vector<1x64xf32>
    %129 = arith.mulf %120, %103 : vector<1x64xf32>
    %130 = arith.mulf %114, %122 : vector<1x64xf32>
    %131 = arith.addf %129, %130 : vector<1x64xf32>
    %132 = math.tanh %131 : vector<1x64xf32>
    %133 = arith.mulf %128, %132 : vector<1x64xf32>
    %134 = tpu.concatenate %49, %77, %105, %133 in 0 : vector<1x64xf32>, vector<1x64xf32>, vector<1x64xf32>, vector<1x64xf32> -> vector<4x64xf32>
    %c128 = arith.constant 128 : index
    %c0_26 = arith.constant 0 : index
    %135 = vector.load %arg5[%c128, %c0_26] : memref<264x256xf32, #tpu.memory_space<vmem>>, vector<64x256xf32>
    %c192 = arith.constant 192 : index
    %c0_27 = arith.constant 0 : index
    %136 = vector.load %arg5[%c192, %c0_27] : memref<264x256xf32, #tpu.memory_space<vmem>>, vector<64x256xf32>
    %cst_28 = arith.constant dense<0.000000e+00> : vector<4x256xf32>
    %137 = tpu.matmul %134, %135, %cst_28 {dimension_numbers = #tpu.dot_dimension_numbers<[1], [0], [0], [1], [0, 0, 1, 1], [], []>} : vector<4x64xf32>, vector<64x256xf32>, vector<4x256xf32> -> vector<4x256xf32>
    %138 = vector.broadcast %2 : vector<1x256xf32> to vector<4x256xf32>
    %139 = arith.addf %137, %138 : vector<4x256xf32>
    %cst_29 = arith.constant 0.000000e+00 : f32
    %140 = vector.broadcast %cst_29 : f32 to vector<1x64xf32>
    %cst_30 = arith.constant 0.000000e+00 : f32
    %141 = vector.broadcast %cst_30 : f32 to vector<1x64xf32>
    %142 = vector.extract_strided_slice %139 {offsets = [0, 0], sizes = [1, 256], strides = [1, 1]} : vector<4x256xf32> to vector<1x256xf32>
    %cst_31 = arith.constant dense<0.000000e+00> : vector<1x256xf32>
    %143 = tpu.matmul %140, %136, %cst_31 {dimension_numbers = #tpu.dot_dimension_numbers<[1], [0], [0], [1], [0, 0, 1, 1], [], []>} : vector<1x64xf32>, vector<64x256xf32>, vector<1x256xf32> -> vector<1x256xf32>
    %144 = arith.addf %142, %143 : vector<1x256xf32>
    %145 = vector.extract_strided_slice %144 {offsets = [0, 0], sizes = [1, 64], strides = [1, 1]} : vector<1x256xf32> to vector<1x64xf32>
    %146 = arith.negf %145 : vector<1x64xf32>
    %147 = math.exp %146 : vector<1x64xf32>
    %cst_32 = arith.constant 1.000000e+00 : f32
    %148 = vector.broadcast %cst_32 : f32 to vector<1x64xf32>
    %149 = arith.addf %148, %147 : vector<1x64xf32>
    %150 = arith.divf %148, %149 : vector<1x64xf32>
    %151 = vector.extract_strided_slice %144 {offsets = [0, 64], sizes = [1, 64], strides = [1, 1]} : vector<1x256xf32> to vector<1x64xf32>
    %152 = arith.negf %151 : vector<1x64xf32>
    %153 = math.exp %152 : vector<1x64xf32>
    %cst_33 = arith.constant 1.000000e+00 : f32
    %154 = vector.broadcast %cst_33 : f32 to vector<1x64xf32>
    %155 = arith.addf %154, %153 : vector<1x64xf32>
    %156 = arith.divf %154, %155 : vector<1x64xf32>
    %157 = vector.extract_strided_slice %144 {offsets = [0, 128], sizes = [1, 64], strides = [1, 1]} : vector<1x256xf32> to vector<1x64xf32>
    %158 = math.tanh %157 : vector<1x64xf32>
    %159 = vector.extract_strided_slice %144 {offsets = [0, 192], sizes = [1, 64], strides = [1, 1]} : vector<1x256xf32> to vector<1x64xf32>
    %160 = arith.negf %159 : vector<1x64xf32>
    %161 = math.exp %160 : vector<1x64xf32>
    %cst_34 = arith.constant 1.000000e+00 : f32
    %162 = vector.broadcast %cst_34 : f32 to vector<1x64xf32>
    %163 = arith.addf %162, %161 : vector<1x64xf32>
    %164 = arith.divf %162, %163 : vector<1x64xf32>
    %165 = arith.mulf %156, %141 : vector<1x64xf32>
    %166 = arith.mulf %150, %158 : vector<1x64xf32>
    %167 = arith.addf %165, %166 : vector<1x64xf32>
    %168 = math.tanh %167 : vector<1x64xf32>
    %169 = arith.mulf %164, %168 : vector<1x64xf32>
    %170 = vector.extract_strided_slice %139 {offsets = [1, 0], sizes = [1, 256], strides = [1, 1]} : vector<4x256xf32> to vector<1x256xf32>
    %cst_35 = arith.constant dense<0.000000e+00> : vector<1x256xf32>
    %171 = tpu.matmul %169, %136, %cst_35 {dimension_numbers = #tpu.dot_dimension_numbers<[1], [0], [0], [1], [0, 0, 1, 1], [], []>} : vector<1x64xf32>, vector<64x256xf32>, vector<1x256xf32> -> vector<1x256xf32>
    %172 = arith.addf %170, %171 : vector<1x256xf32>
    %173 = vector.extract_strided_slice %172 {offsets = [0, 0], sizes = [1, 64], strides = [1, 1]} : vector<1x256xf32> to vector<1x64xf32>
    %174 = arith.negf %173 : vector<1x64xf32>
    %175 = math.exp %174 : vector<1x64xf32>
    %cst_36 = arith.constant 1.000000e+00 : f32
    %176 = vector.broadcast %cst_36 : f32 to vector<1x64xf32>
    %177 = arith.addf %176, %175 : vector<1x64xf32>
    %178 = arith.divf %176, %177 : vector<1x64xf32>
    %179 = vector.extract_strided_slice %172 {offsets = [0, 64], sizes = [1, 64], strides = [1, 1]} : vector<1x256xf32> to vector<1x64xf32>
    %180 = arith.negf %179 : vector<1x64xf32>
    %181 = math.exp %180 : vector<1x64xf32>
    %cst_37 = arith.constant 1.000000e+00 : f32
    %182 = vector.broadcast %cst_37 : f32 to vector<1x64xf32>
    %183 = arith.addf %182, %181 : vector<1x64xf32>
    %184 = arith.divf %182, %183 : vector<1x64xf32>
    %185 = vector.extract_strided_slice %172 {offsets = [0, 128], sizes = [1, 64], strides = [1, 1]} : vector<1x256xf32> to vector<1x64xf32>
    %186 = math.tanh %185 : vector<1x64xf32>
    %187 = vector.extract_strided_slice %172 {offsets = [0, 192], sizes = [1, 64], strides = [1, 1]} : vector<1x256xf32> to vector<1x64xf32>
    %188 = arith.negf %187 : vector<1x64xf32>
    %189 = math.exp %188 : vector<1x64xf32>
    %cst_38 = arith.constant 1.000000e+00 : f32
    %190 = vector.broadcast %cst_38 : f32 to vector<1x64xf32>
    %191 = arith.addf %190, %189 : vector<1x64xf32>
    %192 = arith.divf %190, %191 : vector<1x64xf32>
    %193 = arith.mulf %184, %167 : vector<1x64xf32>
    %194 = arith.mulf %178, %186 : vector<1x64xf32>
    %195 = arith.addf %193, %194 : vector<1x64xf32>
    %196 = math.tanh %195 : vector<1x64xf32>
    %197 = arith.mulf %192, %196 : vector<1x64xf32>
    %198 = vector.extract_strided_slice %139 {offsets = [2, 0], sizes = [1, 256], strides = [1, 1]} : vector<4x256xf32> to vector<1x256xf32>
    %cst_39 = arith.constant dense<0.000000e+00> : vector<1x256xf32>
    %199 = tpu.matmul %197, %136, %cst_39 {dimension_numbers = #tpu.dot_dimension_numbers<[1], [0], [0], [1], [0, 0, 1, 1], [], []>} : vector<1x64xf32>, vector<64x256xf32>, vector<1x256xf32> -> vector<1x256xf32>
    %200 = arith.addf %198, %199 : vector<1x256xf32>
    %201 = vector.extract_strided_slice %200 {offsets = [0, 0], sizes = [1, 64], strides = [1, 1]} : vector<1x256xf32> to vector<1x64xf32>
    %202 = arith.negf %201 : vector<1x64xf32>
    %203 = math.exp %202 : vector<1x64xf32>
    %cst_40 = arith.constant 1.000000e+00 : f32
    %204 = vector.broadcast %cst_40 : f32 to vector<1x64xf32>
    %205 = arith.addf %204, %203 : vector<1x64xf32>
    %206 = arith.divf %204, %205 : vector<1x64xf32>
    %207 = vector.extract_strided_slice %200 {offsets = [0, 64], sizes = [1, 64], strides = [1, 1]} : vector<1x256xf32> to vector<1x64xf32>
    %208 = arith.negf %207 : vector<1x64xf32>
    %209 = math.exp %208 : vector<1x64xf32>
    %cst_41 = arith.constant 1.000000e+00 : f32
    %210 = vector.broadcast %cst_41 : f32 to vector<1x64xf32>
    %211 = arith.addf %210, %209 : vector<1x64xf32>
    %212 = arith.divf %210, %211 : vector<1x64xf32>
    %213 = vector.extract_strided_slice %200 {offsets = [0, 128], sizes = [1, 64], strides = [1, 1]} : vector<1x256xf32> to vector<1x64xf32>
    %214 = math.tanh %213 : vector<1x64xf32>
    %215 = vector.extract_strided_slice %200 {offsets = [0, 192], sizes = [1, 64], strides = [1, 1]} : vector<1x256xf32> to vector<1x64xf32>
    %216 = arith.negf %215 : vector<1x64xf32>
    %217 = math.exp %216 : vector<1x64xf32>
    %cst_42 = arith.constant 1.000000e+00 : f32
    %218 = vector.broadcast %cst_42 : f32 to vector<1x64xf32>
    %219 = arith.addf %218, %217 : vector<1x64xf32>
    %220 = arith.divf %218, %219 : vector<1x64xf32>
    %221 = arith.mulf %212, %195 : vector<1x64xf32>
    %222 = arith.mulf %206, %214 : vector<1x64xf32>
    %223 = arith.addf %221, %222 : vector<1x64xf32>
    %224 = math.tanh %223 : vector<1x64xf32>
    %225 = arith.mulf %220, %224 : vector<1x64xf32>
    %226 = vector.extract_strided_slice %139 {offsets = [3, 0], sizes = [1, 256], strides = [1, 1]} : vector<4x256xf32> to vector<1x256xf32>
    %cst_43 = arith.constant dense<0.000000e+00> : vector<1x256xf32>
    %227 = tpu.matmul %225, %136, %cst_43 {dimension_numbers = #tpu.dot_dimension_numbers<[1], [0], [0], [1], [0, 0, 1, 1], [], []>} : vector<1x64xf32>, vector<64x256xf32>, vector<1x256xf32> -> vector<1x256xf32>
    %228 = arith.addf %226, %227 : vector<1x256xf32>
    %229 = vector.extract_strided_slice %228 {offsets = [0, 0], sizes = [1, 64], strides = [1, 1]} : vector<1x256xf32> to vector<1x64xf32>
    %230 = arith.negf %229 : vector<1x64xf32>
    %231 = math.exp %230 : vector<1x64xf32>
    %cst_44 = arith.constant 1.000000e+00 : f32
    %232 = vector.broadcast %cst_44 : f32 to vector<1x64xf32>
    %233 = arith.addf %232, %231 : vector<1x64xf32>
    %234 = arith.divf %232, %233 : vector<1x64xf32>
    %235 = vector.extract_strided_slice %228 {offsets = [0, 64], sizes = [1, 64], strides = [1, 1]} : vector<1x256xf32> to vector<1x64xf32>
    %236 = arith.negf %235 : vector<1x64xf32>
    %237 = math.exp %236 : vector<1x64xf32>
    %cst_45 = arith.constant 1.000000e+00 : f32
    %238 = vector.broadcast %cst_45 : f32 to vector<1x64xf32>
    %239 = arith.addf %238, %237 : vector<1x64xf32>
    %240 = arith.divf %238, %239 : vector<1x64xf32>
    %241 = vector.extract_strided_slice %228 {offsets = [0, 128], sizes = [1, 64], strides = [1, 1]} : vector<1x256xf32> to vector<1x64xf32>
    %242 = math.tanh %241 : vector<1x64xf32>
    %243 = vector.extract_strided_slice %228 {offsets = [0, 192], sizes = [1, 64], strides = [1, 1]} : vector<1x256xf32> to vector<1x64xf32>
    %244 = arith.negf %243 : vector<1x64xf32>
    %245 = math.exp %244 : vector<1x64xf32>
    %cst_46 = arith.constant 1.000000e+00 : f32
    %246 = vector.broadcast %cst_46 : f32 to vector<1x64xf32>
    %247 = arith.addf %246, %245 : vector<1x64xf32>
    %248 = arith.divf %246, %247 : vector<1x64xf32>
    %249 = arith.mulf %240, %223 : vector<1x64xf32>
    %250 = arith.mulf %234, %242 : vector<1x64xf32>
    %251 = arith.addf %249, %250 : vector<1x64xf32>
    %252 = math.tanh %251 : vector<1x64xf32>
    %253 = arith.mulf %248, %252 : vector<1x64xf32>
    %254 = tpu.concatenate %169, %197, %225, %253 in 0 : vector<1x64xf32>, vector<1x64xf32>, vector<1x64xf32>, vector<1x64xf32> -> vector<4x64xf32>
    %c256_47 = arith.constant 256 : index
    %c0_48 = arith.constant 0 : index
    %255 = vector.load %arg6[%c256_47, %c0_48] : memref<400x64xf32, #tpu.memory_space<vmem>>, vector<64x8xf32>
    %c320 = arith.constant 320 : index
    %c0_49 = arith.constant 0 : index
    %256 = vector.load %arg6[%c320, %c0_49] : memref<400x64xf32, #tpu.memory_space<vmem>>, vector<8x8xf32>
    %c328 = arith.constant 328 : index
    %c0_50 = arith.constant 0 : index
    %257 = vector.load %arg6[%c328, %c0_50] : memref<400x64xf32, #tpu.memory_space<vmem>>, vector<64x8xf32>
    %c392 = arith.constant 392 : index
    %c0_51 = arith.constant 0 : index
    %258 = vector.load %arg6[%c392, %c0_51] : memref<400x64xf32, #tpu.memory_space<vmem>>, vector<8x8xf32>
    %cst_52 = arith.constant dense<0.000000e+00> : vector<4x8xf32>
    %259 = tpu.matmul %254, %255, %cst_52 {dimension_numbers = #tpu.dot_dimension_numbers<[1], [0], [0], [1], [0, 0, 1, 1], [], []>} : vector<4x64xf32>, vector<64x8xf32>, vector<4x8xf32> -> vector<4x8xf32>
    %260 = vector.broadcast %4 : vector<1x8xf32> to vector<4x8xf32>
    %261 = arith.addf %259, %260 : vector<4x8xf32>
    %cst_53 = arith.constant dense<0.000000e+00> : vector<4x8xf32>
    %262 = tpu.matmul %254, %257, %cst_53 {dimension_numbers = #tpu.dot_dimension_numbers<[1], [0], [0], [1], [0, 0, 1, 1], [], []>} : vector<4x64xf32>, vector<64x8xf32>, vector<4x8xf32> -> vector<4x8xf32>
    %263 = vector.broadcast %5 : vector<1x8xf32> to vector<4x8xf32>
    %264 = arith.addf %262, %263 : vector<4x8xf32>
    %cst_54 = arith.constant 0.000000e+00 : f32
    %265 = vector.broadcast %cst_54 : f32 to vector<1x8xf32>
    %266 = vector.extract_strided_slice %261 {offsets = [0, 0], sizes = [1, 8], strides = [1, 1]} : vector<4x8xf32> to vector<1x8xf32>
    %cst_55 = arith.constant dense<0.000000e+00> : vector<1x8xf32>
    %267 = tpu.matmul %265, %256, %cst_55 {dimension_numbers = #tpu.dot_dimension_numbers<[1], [0], [0], [1], [0, 0, 1, 1], [], []>} : vector<1x8xf32>, vector<8x8xf32>, vector<1x8xf32> -> vector<1x8xf32>
    %268 = arith.addf %266, %267 : vector<1x8xf32>
    %269 = vector.extract_strided_slice %264 {offsets = [0, 0], sizes = [1, 8], strides = [1, 1]} : vector<4x8xf32> to vector<1x8xf32>
    %cst_56 = arith.constant dense<0.000000e+00> : vector<1x8xf32>
    %270 = tpu.matmul %265, %258, %cst_56 {dimension_numbers = #tpu.dot_dimension_numbers<[1], [0], [0], [1], [0, 0, 1, 1], [], []>} : vector<1x8xf32>, vector<8x8xf32>, vector<1x8xf32> -> vector<1x8xf32>
    %271 = arith.addf %269, %270 : vector<1x8xf32>
    %272 = math.exp %271 : vector<1x8xf32>
    %273 = arith.subf %268, %265 : vector<1x8xf32>
    %274 = arith.mulf %273, %273 : vector<1x8xf32>
    %275 = arith.addf %272, %274 : vector<1x8xf32>
    %cst_57 = arith.constant 1.00000095 : f32
    %276 = vector.broadcast %cst_57 : f32 to vector<1x8xf32>
    %277 = arith.divf %275, %276 : vector<1x8xf32>
    %cst_58 = arith.constant 1.000000e+00 : f32
    %278 = vector.broadcast %cst_58 : f32 to vector<1x8xf32>
    %279 = arith.subf %277, %278 : vector<1x8xf32>
    %cst_59 = arith.constant 0.000000e+00 : f32
    %280 = vector.broadcast %cst_59 : f32 to vector<1x8xf32>
    %281 = arith.addf %279, %280 : vector<1x8xf32>
    %282 = arith.subf %281, %271 : vector<1x8xf32>
    %283 = vector.shape_cast %282 : vector<1x8xf32> to vector<1x1x8xf32>
    %cst_60 = arith.constant dense<0.000000e+00> : vector<1xf32>
    %284 = vector.multi_reduction <add>, %283, %cst_60 [1, 2] : vector<1x1x8xf32> to vector<1xf32>
    %285 = vector.shape_cast %284 : vector<1xf32> to vector<1x1x1xf32>
    %286 = vector.extract %285[0, 0, 0] : f32 from vector<1x1x1xf32>
    %cst_61 = arith.constant 5.000000e-01 : f32
    %287 = arith.mulf %cst_61, %286 : f32
    %cst_62 = arith.constant 0.000000e+00 : f32
    %288 = arith.addf %cst_62, %287 : f32
    %289 = vector.extract_strided_slice %261 {offsets = [1, 0], sizes = [1, 8], strides = [1, 1]} : vector<4x8xf32> to vector<1x8xf32>
    %cst_63 = arith.constant dense<0.000000e+00> : vector<1x8xf32>
    %290 = tpu.matmul %268, %256, %cst_63 {dimension_numbers = #tpu.dot_dimension_numbers<[1], [0], [0], [1], [0, 0, 1, 1], [], []>} : vector<1x8xf32>, vector<8x8xf32>, vector<1x8xf32> -> vector<1x8xf32>
    %291 = arith.addf %289, %290 : vector<1x8xf32>
    %292 = vector.extract_strided_slice %264 {offsets = [1, 0], sizes = [1, 8], strides = [1, 1]} : vector<4x8xf32> to vector<1x8xf32>
    %cst_64 = arith.constant dense<0.000000e+00> : vector<1x8xf32>
    %293 = tpu.matmul %268, %258, %cst_64 {dimension_numbers = #tpu.dot_dimension_numbers<[1], [0], [0], [1], [0, 0, 1, 1], [], []>} : vector<1x8xf32>, vector<8x8xf32>, vector<1x8xf32> -> vector<1x8xf32>
    %294 = arith.addf %292, %293 : vector<1x8xf32>
    %295 = math.exp %294 : vector<1x8xf32>
    %296 = arith.subf %291, %268 : vector<1x8xf32>
    %297 = arith.mulf %296, %296 : vector<1x8xf32>
    %298 = arith.addf %295, %297 : vector<1x8xf32>
    %cst_65 = arith.constant 5.001000e-03 : f32
    %299 = vector.broadcast %cst_65 : f32 to vector<1x8xf32>
    %300 = arith.divf %298, %299 : vector<1x8xf32>
    %cst_66 = arith.constant 1.000000e+00 : f32
    %301 = vector.broadcast %cst_66 : f32 to vector<1x8xf32>
    %302 = arith.subf %300, %301 : vector<1x8xf32>
    %cst_67 = arith.constant -5.29831743 : f32
    %303 = vector.broadcast %cst_67 : f32 to vector<1x8xf32>
    %304 = arith.addf %302, %303 : vector<1x8xf32>
    %305 = arith.subf %304, %294 : vector<1x8xf32>
    %306 = vector.shape_cast %305 : vector<1x8xf32> to vector<1x1x8xf32>
    %cst_68 = arith.constant dense<0.000000e+00> : vector<1xf32>
    %307 = vector.multi_reduction <add>, %306, %cst_68 [1, 2] : vector<1x1x8xf32> to vector<1xf32>
    %308 = vector.shape_cast %307 : vector<1xf32> to vector<1x1x1xf32>
    %309 = vector.extract %308[0, 0, 0] : f32 from vector<1x1x1xf32>
    %cst_69 = arith.constant 5.000000e-01 : f32
    %310 = arith.mulf %cst_69, %309 : f32
    %311 = arith.addf %288, %310 : f32
    %312 = vector.extract_strided_slice %261 {offsets = [2, 0], sizes = [1, 8], strides = [1, 1]} : vector<4x8xf32> to vector<1x8xf32>
    %cst_70 = arith.constant dense<0.000000e+00> : vector<1x8xf32>
    %313 = tpu.matmul %291, %256, %cst_70 {dimension_numbers = #tpu.dot_dimension_numbers<[1], [0], [0], [1], [0, 0, 1, 1], [], []>} : vector<1x8xf32>, vector<8x8xf32>, vector<1x8xf32> -> vector<1x8xf32>
    %314 = arith.addf %312, %313 : vector<1x8xf32>
    %315 = vector.extract_strided_slice %264 {offsets = [2, 0], sizes = [1, 8], strides = [1, 1]} : vector<4x8xf32> to vector<1x8xf32>
    %cst_71 = arith.constant dense<0.000000e+00> : vector<1x8xf32>
    %316 = tpu.matmul %291, %258, %cst_71 {dimension_numbers = #tpu.dot_dimension_numbers<[1], [0], [0], [1], [0, 0, 1, 1], [], []>} : vector<1x8xf32>, vector<8x8xf32>, vector<1x8xf32> -> vector<1x8xf32>
    %317 = arith.addf %315, %316 : vector<1x8xf32>
    %318 = math.exp %317 : vector<1x8xf32>
    %319 = arith.subf %314, %291 : vector<1x8xf32>
    %320 = arith.mulf %319, %319 : vector<1x8xf32>
    %321 = arith.addf %318, %320 : vector<1x8xf32>
    %cst_72 = arith.constant 5.001000e-03 : f32
    %322 = vector.broadcast %cst_72 : f32 to vector<1x8xf32>
    %323 = arith.divf %321, %322 : vector<1x8xf32>
    %cst_73 = arith.constant 1.000000e+00 : f32
    %324 = vector.broadcast %cst_73 : f32 to vector<1x8xf32>
    %325 = arith.subf %323, %324 : vector<1x8xf32>
    %cst_74 = arith.constant -5.29831743 : f32
    %326 = vector.broadcast %cst_74 : f32 to vector<1x8xf32>
    %327 = arith.addf %325, %326 : vector<1x8xf32>
    %328 = arith.subf %327, %317 : vector<1x8xf32>
    %329 = vector.shape_cast %328 : vector<1x8xf32> to vector<1x1x8xf32>
    %cst_75 = arith.constant dense<0.000000e+00> : vector<1xf32>
    %330 = vector.multi_reduction <add>, %329, %cst_75 [1, 2] : vector<1x1x8xf32> to vector<1xf32>
    %331 = vector.shape_cast %330 : vector<1xf32> to vector<1x1x1xf32>
    %332 = vector.extract %331[0, 0, 0] : f32 from vector<1x1x1xf32>
    %cst_76 = arith.constant 5.000000e-01 : f32
    %333 = arith.mulf %cst_76, %332 : f32
    %334 = arith.addf %311, %333 : f32
    %335 = vector.extract_strided_slice %261 {offsets = [3, 0], sizes = [1, 8], strides = [1, 1]} : vector<4x8xf32> to vector<1x8xf32>
    %cst_77 = arith.constant dense<0.000000e+00> : vector<1x8xf32>
    %336 = tpu.matmul %314, %256, %cst_77 {dimension_numbers = #tpu.dot_dimension_numbers<[1], [0], [0], [1], [0, 0, 1, 1], [], []>} : vector<1x8xf32>, vector<8x8xf32>, vector<1x8xf32> -> vector<1x8xf32>
    %337 = arith.addf %335, %336 : vector<1x8xf32>
    %338 = vector.extract_strided_slice %264 {offsets = [3, 0], sizes = [1, 8], strides = [1, 1]} : vector<4x8xf32> to vector<1x8xf32>
    %cst_78 = arith.constant dense<0.000000e+00> : vector<1x8xf32>
    %339 = tpu.matmul %314, %258, %cst_78 {dimension_numbers = #tpu.dot_dimension_numbers<[1], [0], [0], [1], [0, 0, 1, 1], [], []>} : vector<1x8xf32>, vector<8x8xf32>, vector<1x8xf32> -> vector<1x8xf32>
    %340 = arith.addf %338, %339 : vector<1x8xf32>
    %341 = math.exp %340 : vector<1x8xf32>
    %342 = arith.subf %337, %314 : vector<1x8xf32>
    %343 = arith.mulf %342, %342 : vector<1x8xf32>
    %344 = arith.addf %341, %343 : vector<1x8xf32>
    %cst_79 = arith.constant 5.001000e-03 : f32
    %345 = vector.broadcast %cst_79 : f32 to vector<1x8xf32>
    %346 = arith.divf %344, %345 : vector<1x8xf32>
    %cst_80 = arith.constant 1.000000e+00 : f32
    %347 = vector.broadcast %cst_80 : f32 to vector<1x8xf32>
    %348 = arith.subf %346, %347 : vector<1x8xf32>
    %cst_81 = arith.constant -5.29831743 : f32
    %349 = vector.broadcast %cst_81 : f32 to vector<1x8xf32>
    %350 = arith.addf %348, %349 : vector<1x8xf32>
    %351 = arith.subf %350, %340 : vector<1x8xf32>
    %352 = vector.shape_cast %351 : vector<1x8xf32> to vector<1x1x8xf32>
    %cst_82 = arith.constant dense<0.000000e+00> : vector<1xf32>
    %353 = vector.multi_reduction <add>, %352, %cst_82 [1, 2] : vector<1x1x8xf32> to vector<1xf32>
    %354 = vector.shape_cast %353 : vector<1xf32> to vector<1x1x1xf32>
    %355 = vector.extract %354[0, 0, 0] : f32 from vector<1x1x1xf32>
    %cst_83 = arith.constant 5.000000e-01 : f32
    %356 = arith.mulf %cst_83, %355 : f32
    %357 = arith.addf %334, %356 : f32
    %c0_84 = arith.constant 0 : index
    %c0_85 = arith.constant 0 : index
    %358 = vector.load %arg2[%c0_84, %c0_85] : memref<4x4xf32, #tpu.memory_space<vmem>>, vector<4x4xf32>
    %359 = vector.extract_strided_slice %358 {offsets = [0, 0], sizes = [4, 1], strides = [1, 1]} : vector<4x4xf32> to vector<4x1xf32>
    %360 = vector.broadcast %359 : vector<4x1xf32> to vector<4x8xf32>
    %361 = vector.broadcast %268 : vector<1x8xf32> to vector<4x8xf32>
    %362 = arith.mulf %360, %361 : vector<4x8xf32>
    %363 = vector.extract_strided_slice %358 {offsets = [0, 1], sizes = [4, 1], strides = [1, 1]} : vector<4x4xf32> to vector<4x1xf32>
    %364 = vector.broadcast %363 : vector<4x1xf32> to vector<4x8xf32>
    %365 = vector.broadcast %291 : vector<1x8xf32> to vector<4x8xf32>
    %366 = arith.mulf %364, %365 : vector<4x8xf32>
    %367 = arith.addf %362, %366 : vector<4x8xf32>
    %368 = vector.extract_strided_slice %358 {offsets = [0, 2], sizes = [4, 1], strides = [1, 1]} : vector<4x4xf32> to vector<4x1xf32>
    %369 = vector.broadcast %368 : vector<4x1xf32> to vector<4x8xf32>
    %370 = vector.broadcast %314 : vector<1x8xf32> to vector<4x8xf32>
    %371 = arith.mulf %369, %370 : vector<4x8xf32>
    %372 = arith.addf %367, %371 : vector<4x8xf32>
    %373 = vector.extract_strided_slice %358 {offsets = [0, 3], sizes = [4, 1], strides = [1, 1]} : vector<4x4xf32> to vector<4x1xf32>
    %374 = vector.broadcast %373 : vector<4x1xf32> to vector<4x8xf32>
    %375 = vector.broadcast %337 : vector<1x8xf32> to vector<4x8xf32>
    %376 = arith.mulf %374, %375 : vector<4x8xf32>
    %377 = arith.addf %372, %376 : vector<4x8xf32>
    %c0_86 = arith.constant 0 : index
    %c0_87 = arith.constant 0 : index
    %378 = vector.load %arg7[%c0_86, %c0_87] : memref<64x128xf32, #tpu.memory_space<vmem>>, vector<32x128xf32>
    %c32 = arith.constant 32 : index
    %c0_88 = arith.constant 0 : index
    %379 = vector.load %arg7[%c32, %c0_88] : memref<64x128xf32, #tpu.memory_space<vmem>>, vector<32x128xf32>
    %380 = vector.extract_strided_slice %379 {offsets = [0, 0], sizes = [8, 128], strides = [1, 1]} : vector<32x128xf32> to vector<8x128xf32>
    %381 = math.exp %380 : vector<8x128xf32>
    %382 = vector.extract_strided_slice %378 {offsets = [0, 0], sizes = [8, 128], strides = [1, 1]} : vector<32x128xf32> to vector<8x128xf32>
    %383 = arith.mulf %382, %382 : vector<8x128xf32>
    %384 = arith.addf %381, %383 : vector<8x128xf32>
    %cst_89 = arith.constant 1.00000095 : f32
    %385 = vector.broadcast %cst_89 : f32 to vector<8x128xf32>
    %386 = arith.divf %384, %385 : vector<8x128xf32>
    %cst_90 = arith.constant 1.000000e+00 : f32
    %387 = vector.broadcast %cst_90 : f32 to vector<8x128xf32>
    %388 = arith.subf %386, %387 : vector<8x128xf32>
    %389 = vector.extract_strided_slice %379 {offsets = [0, 0], sizes = [8, 128], strides = [1, 1]} : vector<32x128xf32> to vector<8x128xf32>
    %390 = arith.subf %388, %389 : vector<8x128xf32>
    %391 = vector.shape_cast %390 : vector<8x128xf32> to vector<1x8x128xf32>
    %cst_91 = arith.constant dense<0.000000e+00> : vector<1xf32>
    %392 = vector.multi_reduction <add>, %391, %cst_91 [1, 2] : vector<1x8x128xf32> to vector<1xf32>
    %393 = vector.shape_cast %392 : vector<1xf32> to vector<1x1x1xf32>
    %394 = vector.extract %393[0, 0, 0] : f32 from vector<1x1x1xf32>
    %cst_92 = arith.constant 5.000000e-01 : f32
    %395 = arith.mulf %cst_92, %394 : f32
    %396 = vector.extract_strided_slice %378 {offsets = [8, 0], sizes = [24, 128], strides = [1, 1]} : vector<32x128xf32> to vector<24x128xf32>
    %397 = vector.extract_strided_slice %379 {offsets = [8, 0], sizes = [24, 128], strides = [1, 1]} : vector<32x128xf32> to vector<24x128xf32>
    %398 = vector.extract_strided_slice %378 {offsets = [0, 0], sizes = [24, 128], strides = [1, 1]} : vector<32x128xf32> to vector<24x128xf32>
    %399 = math.exp %397 : vector<24x128xf32>
    %400 = arith.subf %396, %398 : vector<24x128xf32>
    %401 = arith.mulf %400, %400 : vector<24x128xf32>
    %402 = arith.addf %399, %401 : vector<24x128xf32>
    %cst_93 = arith.constant 5.001000e-03 : f32
    %403 = vector.broadcast %cst_93 : f32 to vector<24x128xf32>
    %404 = arith.divf %402, %403 : vector<24x128xf32>
    %cst_94 = arith.constant 1.000000e+00 : f32
    %405 = vector.broadcast %cst_94 : f32 to vector<24x128xf32>
    %406 = arith.subf %404, %405 : vector<24x128xf32>
    %cst_95 = arith.constant -5.29831743 : f32
    %407 = vector.broadcast %cst_95 : f32 to vector<24x128xf32>
    %408 = arith.addf %406, %407 : vector<24x128xf32>
    %409 = arith.subf %408, %397 : vector<24x128xf32>
    %410 = vector.shape_cast %409 : vector<24x128xf32> to vector<1x24x128xf32>
    %cst_96 = arith.constant dense<0.000000e+00> : vector<1xf32>
    %411 = vector.multi_reduction <add>, %410, %cst_96 [1, 2] : vector<1x24x128xf32> to vector<1xf32>
    %412 = vector.shape_cast %411 : vector<1xf32> to vector<1x1x1xf32>
    %413 = vector.extract %412[0, 0, 0] : f32 from vector<1x1x1xf32>
    %cst_97 = arith.constant 5.000000e-01 : f32
    %414 = arith.mulf %cst_97, %413 : f32
    %415 = arith.addf %395, %414 : f32
    %c0_98 = arith.constant 0 : index
    %c0_99 = arith.constant 0 : index
    %416 = vector.load %arg1[%c0_98, %c0_99] : memref<4x256xf32, #tpu.memory_space<vmem>>, vector<4x256xf32>
    %cst_100 = arith.constant dense<0.000000e+00> : vector<4xf32>
    %417 = vector.multi_reduction <add>, %416, %cst_100 [1] : vector<4x256xf32> to vector<4xf32>
    %418 = vector.shape_cast %417 : vector<4xf32> to vector<4x1xf32>
    %cst_101 = arith.constant 1.000000e+00 : f32
    %419 = vector.broadcast %cst_101 : f32 to vector<4x1xf32>
    %420 = arith.maximumf %418, %419 : vector<4x1xf32>
    %421 = tpu.reciprocal %420 {approx = true} : vector<4x1xf32> -> vector<4x1xf32>
    %422 = vector.broadcast %421 : vector<4x1xf32> to vector<4x256xf32>
    %423 = arith.mulf %416, %422 : vector<4x256xf32>
    %c0_102 = arith.constant 0 : index
    %c0_103 = arith.constant 0 : index
    %424 = vector.load %arg4[%c0_102, %c0_103] : memref<688x128xbf16, #tpu.memory_space<vmem>>, vector<256x128xbf16>
    %c256_104 = arith.constant 256 : index
    %c0_105 = arith.constant 0 : index
    %425 = vector.load %arg4[%c256_104, %c0_105] : memref<688x128xbf16, #tpu.memory_space<vmem>>, vector<8x128xbf16>
    %c272 = arith.constant 272 : index
    %c0_106 = arith.constant 0 : index
    %426 = vector.load %arg4[%c272, %c0_106] : memref<688x128xbf16, #tpu.memory_space<vmem>>, vector<128x128xbf16>
    %c400 = arith.constant 400 : index
    %c0_107 = arith.constant 0 : index
    %427 = vector.load %arg4[%c400, %c0_107] : memref<688x128xbf16, #tpu.memory_space<vmem>>, vector<8x128xbf16>
    %c416 = arith.constant 416 : index
    %c0_108 = arith.constant 0 : index
    %428 = vector.load %arg4[%c416, %c0_108] : memref<688x128xbf16, #tpu.memory_space<vmem>>, vector<8x128xbf16>
    %c432 = arith.constant 432 : index
    %c0_109 = arith.constant 0 : index
    %429 = vector.load %arg4[%c432, %c0_109] : memref<688x128xbf16, #tpu.memory_space<vmem>>, vector<256x128xbf16>
    %430 = arith.truncf %423 : vector<4x256xf32> to vector<4x256xbf16>
    %cst_110 = arith.constant dense<0.000000e+00> : vector<4x128xf32>
    %431 = tpu.matmul %430, %424, %cst_110 {dimension_numbers = #tpu.dot_dimension_numbers<[1], [0], [0], [1], [0, 0, 1, 1], [], []>} : vector<4x256xbf16>, vector<256x128xbf16>, vector<4x128xf32> -> vector<4x128xf32>
    %432 = arith.truncf %377 : vector<4x8xf32> to vector<4x8xbf16>
    %cst_111 = arith.constant dense<0.000000e+00> : vector<4x128xf32>
    %433 = tpu.matmul %432, %425, %cst_111 {dimension_numbers = #tpu.dot_dimension_numbers<[1], [0], [0], [1], [0, 0, 1, 1], [], []>} : vector<4x8xbf16>, vector<8x128xbf16>, vector<4x128xf32> -> vector<4x128xf32>
    %434 = arith.addf %431, %433 : vector<4x128xf32>
    %435 = vector.broadcast %6 : vector<1x128xf32> to vector<4x128xf32>
    %436 = arith.addf %434, %435 : vector<4x128xf32>
    %cst_112 = arith.constant 0.000000e+00 : f32
    %437 = vector.broadcast %cst_112 : f32 to vector<4x128xf32>
    %438 = arith.maximumf %436, %437 : vector<4x128xf32>
    %439 = arith.truncf %438 : vector<4x128xf32> to vector<4x128xbf16>
    %cst_113 = arith.constant dense<0.000000e+00> : vector<4x128xf32>
    %440 = tpu.matmul %439, %426, %cst_113 {dimension_numbers = #tpu.dot_dimension_numbers<[1], [0], [0], [1], [0, 0, 1, 1], [], []>} : vector<4x128xbf16>, vector<128x128xbf16>, vector<4x128xf32> -> vector<4x128xf32>
    %441 = vector.broadcast %7 : vector<1x128xf32> to vector<4x128xf32>
    %442 = arith.addf %440, %441 : vector<4x128xf32>
    %cst_114 = arith.constant 0.000000e+00 : f32
    %443 = vector.broadcast %cst_114 : f32 to vector<4x128xf32>
    %444 = arith.maximumf %442, %443 : vector<4x128xf32>
    %445 = arith.truncf %444 : vector<4x128xf32> to vector<4x128xbf16>
    %cst_115 = arith.constant dense<0.000000e+00> : vector<4x8xf32>
    %446 = tpu.matmul %445, %427, %cst_115 {dimension_numbers = #tpu.dot_dimension_numbers<[1], [1], [0], [0], [0, 0, 1, 0], [], []>} : vector<4x128xbf16>, vector<8x128xbf16>, vector<4x8xf32> -> vector<4x8xf32>
    %447 = vector.broadcast %8 : vector<1x8xf32> to vector<4x8xf32>
    %448 = arith.addf %446, %447 : vector<4x8xf32>
    %cst_116 = arith.constant dense<0.000000e+00> : vector<4x8xf32>
    %449 = tpu.matmul %445, %428, %cst_116 {dimension_numbers = #tpu.dot_dimension_numbers<[1], [1], [0], [0], [0, 0, 1, 0], [], []>} : vector<4x128xbf16>, vector<8x128xbf16>, vector<4x8xf32> -> vector<4x8xf32>
    %450 = vector.broadcast %9 : vector<1x8xf32> to vector<4x8xf32>
    %451 = arith.addf %449, %450 : vector<4x8xf32>
    %cst_117 = arith.constant dense<0xFF800000> : vector<4xf32>
    %452 = vector.multi_reduction <maximumf>, %448, %cst_117 [1] : vector<4x8xf32> to vector<4xf32>
    %453 = vector.shape_cast %452 : vector<4xf32> to vector<4x1xf32>
    %454 = vector.broadcast %453 : vector<4x1xf32> to vector<4x8xf32>
    %455 = arith.subf %448, %454 : vector<4x8xf32>
    %456 = math.exp %455 : vector<4x8xf32>
    %cst_118 = arith.constant dense<0.000000e+00> : vector<4xf32>
    %457 = vector.multi_reduction <add>, %456, %cst_118 [1] : vector<4x8xf32> to vector<4xf32>
    %458 = vector.shape_cast %457 : vector<4xf32> to vector<4x1xf32>
    %459 = vector.broadcast %458 : vector<4x1xf32> to vector<4x8xf32>
    %460 = arith.divf %456, %459 : vector<4x8xf32>
    %461 = math.exp %451 : vector<4x8xf32>
    %462 = arith.subf %448, %377 : vector<4x8xf32>
    %463 = arith.mulf %462, %462 : vector<4x8xf32>
    %464 = arith.addf %461, %463 : vector<4x8xf32>
    %cst_119 = arith.constant 1.00000095 : f32
    %465 = vector.broadcast %cst_119 : f32 to vector<4x8xf32>
    %466 = arith.divf %464, %465 : vector<4x8xf32>
    %cst_120 = arith.constant 1.000000e+00 : f32
    %467 = vector.broadcast %cst_120 : f32 to vector<4x8xf32>
    %468 = arith.subf %466, %467 : vector<4x8xf32>
    %469 = arith.subf %468, %451 : vector<4x8xf32>
    %470 = vector.shape_cast %469 : vector<4x8xf32> to vector<1x4x8xf32>
    %cst_121 = arith.constant dense<0.000000e+00> : vector<1xf32>
    %471 = vector.multi_reduction <add>, %470, %cst_121 [1, 2] : vector<1x4x8xf32> to vector<1xf32>
    %472 = vector.shape_cast %471 : vector<1xf32> to vector<1x1x1xf32>
    %473 = vector.extract %472[0, 0, 0] : f32 from vector<1x1x1xf32>
    %cst_122 = arith.constant 5.000000e-01 : f32
    %474 = arith.mulf %cst_122, %473 : f32
    %475 = arith.truncf %378 : vector<32x128xf32> to vector<32x128xbf16>
    %cst_123 = arith.constant dense<0.000000e+00> : vector<256x32xf32>
    %476 = tpu.matmul %429, %475, %cst_123 {dimension_numbers = #tpu.dot_dimension_numbers<[1], [1], [0], [0], [0, 0, 1, 0], [], []>} : vector<256x128xbf16>, vector<32x128xbf16>, vector<256x32xf32> -> vector<256x32xf32>
    %cst_124 = arith.constant dense<0xFF800000> : vector<32xf32>
    %477 = vector.multi_reduction <maximumf>, %476, %cst_124 [0] : vector<256x32xf32> to vector<32xf32>
    %478 = vector.shape_cast %477 : vector<32xf32> to vector<1x32xf32>
    %479 = vector.broadcast %478 : vector<1x32xf32> to vector<256x32xf32>
    %480 = arith.subf %476, %479 : vector<256x32xf32>
    %481 = math.exp %480 : vector<256x32xf32>
    %cst_125 = arith.constant dense<0.000000e+00> : vector<32xf32>
    %482 = vector.multi_reduction <add>, %481, %cst_125 [0] : vector<256x32xf32> to vector<32xf32>
    %483 = vector.shape_cast %482 : vector<32xf32> to vector<1x32xf32>
    %484 = tpu.reciprocal %483 {approx = true} : vector<1x32xf32> -> vector<1x32xf32>
    %485 = vector.extract_strided_slice %358 {offsets = [0, 0], sizes = [4, 1], strides = [1, 1]} : vector<4x4xf32> to vector<4x1xf32>
    %486 = vector.broadcast %485 : vector<4x1xf32> to vector<4x8xf32>
    %487 = arith.mulf %460, %486 : vector<4x8xf32>
    %488 = vector.extract_strided_slice %358 {offsets = [0, 1], sizes = [4, 1], strides = [1, 1]} : vector<4x4xf32> to vector<4x1xf32>
    %489 = vector.broadcast %488 : vector<4x1xf32> to vector<4x8xf32>
    %490 = arith.mulf %460, %489 : vector<4x8xf32>
    %491 = vector.extract_strided_slice %358 {offsets = [0, 2], sizes = [4, 1], strides = [1, 1]} : vector<4x4xf32> to vector<4x1xf32>
    %492 = vector.broadcast %491 : vector<4x1xf32> to vector<4x8xf32>
    %493 = arith.mulf %460, %492 : vector<4x8xf32>
    %494 = vector.extract_strided_slice %358 {offsets = [0, 3], sizes = [4, 1], strides = [1, 1]} : vector<4x4xf32> to vector<4x1xf32>
    %495 = vector.broadcast %494 : vector<4x1xf32> to vector<4x8xf32>
    %496 = arith.mulf %460, %495 : vector<4x8xf32>
    %497 = tpu.concatenate %487, %490, %493, %496 in 1 : vector<4x8xf32>, vector<4x8xf32>, vector<4x8xf32>, vector<4x8xf32> -> vector<4x32xf32>
    %498 = vector.broadcast %484 : vector<1x32xf32> to vector<4x32xf32>
    %499 = arith.mulf %497, %498 : vector<4x32xf32>
    %cst_126 = arith.constant dense<0.000000e+00> : vector<4x256xf32>
    %500 = tpu.matmul %499, %481, %cst_126 {dimension_numbers = #tpu.dot_dimension_numbers<[1], [1], [0], [0], [0, 0, 1, 0], [], []>} : vector<4x32xf32>, vector<256x32xf32>, vector<4x256xf32> -> vector<4x256xf32>
    %cst_127 = arith.constant 9.99999997E-7 : f32
    %501 = vector.broadcast %cst_127 : f32 to vector<4x256xf32>
    %502 = arith.addf %500, %501 : vector<4x256xf32>
    %503 = math.log %502 : vector<4x256xf32>
    %cst_128 = arith.constant 0.000000e+00 : f32
    %504 = vector.broadcast %cst_128 : f32 to vector<4x256xf32>
    %505 = arith.subf %504, %503 : vector<4x256xf32>
    %506 = arith.mulf %505, %416 : vector<4x256xf32>
    %507 = vector.shape_cast %506 : vector<4x256xf32> to vector<1x4x256xf32>
    %cst_129 = arith.constant dense<0.000000e+00> : vector<1xf32>
    %508 = vector.multi_reduction <add>, %507, %cst_129 [1, 2] : vector<1x4x256xf32> to vector<1xf32>
    %509 = vector.shape_cast %508 : vector<1xf32> to vector<1x1x1xf32>
    %510 = vector.extract %509[0, 0, 0] : f32 from vector<1x1x1xf32>
    %c0_130 = arith.constant 0 : index
    %c0_131 = arith.constant 0 : index
    %511 = memref.load %arg0[%c0_130, %c0_131] : memref<1x1xf32, #tpu.memory_space<smem>>
    %512 = arith.mulf %510, %511 : f32
    %513 = arith.mulf %474, %511 : f32
    %514 = arith.addf %512, %415 : f32
    %515 = arith.addf %514, %357 : f32
    %516 = arith.addf %515, %513 : f32
    %c0_132 = arith.constant 0 : index
    %c0_133 = arith.constant 0 : index
    %517 = memref.load %arg8[%c0_132, %c0_133] : memref<1x8xf32, #tpu.memory_space<smem>>
    memref.store %516, %arg8[%c0_132, %c0_133] : memref<1x8xf32, #tpu.memory_space<smem>>
    %c0_134 = arith.constant 0 : index
    %c1 = arith.constant 1 : index
    %518 = memref.load %arg8[%c0_134, %c1] : memref<1x8xf32, #tpu.memory_space<smem>>
    memref.store %512, %arg8[%c0_134, %c1] : memref<1x8xf32, #tpu.memory_space<smem>>
    %c0_135 = arith.constant 0 : index
    %c2 = arith.constant 2 : index
    %519 = memref.load %arg8[%c0_135, %c2] : memref<1x8xf32, #tpu.memory_space<smem>>
    memref.store %415, %arg8[%c0_135, %c2] : memref<1x8xf32, #tpu.memory_space<smem>>
    %c0_136 = arith.constant 0 : index
    %c3 = arith.constant 3 : index
    %520 = memref.load %arg8[%c0_136, %c3] : memref<1x8xf32, #tpu.memory_space<smem>>
    memref.store %357, %arg8[%c0_136, %c3] : memref<1x8xf32, #tpu.memory_space<smem>>
    %c0_137 = arith.constant 0 : index
    %c4 = arith.constant 4 : index
    %521 = memref.load %arg8[%c0_137, %c4] : memref<1x8xf32, #tpu.memory_space<smem>>
    memref.store %513, %arg8[%c0_137, %c4] : memref<1x8xf32, #tpu.memory_space<smem>>
    %cst_138 = arith.constant 0.000000e+00 : f32
    %c0_139 = arith.constant 0 : index
    %c5 = arith.constant 5 : index
    %522 = memref.load %arg8[%c0_139, %c5] : memref<1x8xf32, #tpu.memory_space<smem>>
    memref.store %cst_138, %arg8[%c0_139, %c5] : memref<1x8xf32, #tpu.memory_space<smem>>
    %cst_140 = arith.constant 0.000000e+00 : f32
    %c0_141 = arith.constant 0 : index
    %c6 = arith.constant 6 : index
    %523 = memref.load %arg8[%c0_141, %c6] : memref<1x8xf32, #tpu.memory_space<smem>>
    memref.store %cst_140, %arg8[%c0_141, %c6] : memref<1x8xf32, #tpu.memory_space<smem>>
    %cst_142 = arith.constant 0.000000e+00 : f32
    %c0_143 = arith.constant 0 : index
    %c7 = arith.constant 7 : index
    %524 = memref.load %arg8[%c0_143, %c7] : memref<1x8xf32, #tpu.memory_space<smem>>
    memref.store %cst_142, %arg8[%c0_143, %c7] : memref<1x8xf32, #tpu.memory_space<smem>>
    return
  }
}

</mosaic_0001>

<llo_original>
// kernel: detm_forward.1
$region0: #{detm_forward.1}
  #allocation0 [shape = 'u32[]', space=smem, size = 0x4, offset = 0x4, fixed_abs, tag = 'smem constant byte address 0x4 - core index']
  #allocation1 [shape = 'u32[72,128]{1,0:T(1,128)}', space=vmem, size = 0x9000, scoped, tag = 'internal scratch']
  #allocation2 [shape = 'f32[1,1]{1,0:T(1,128)S(6)}', space=smem, size = 0x200, scoped, tag = 'scoped memory for detm_forward.1']
  %s0 = inlined_call_operand.<no memory space> [shape: f32[1,1], index: 0, kind: input, shape index: {}]
  %s1 = inlined_call_operand.vmem [shape: f32[4,256], index: 1, kind: input, shape index: {}]
  %s2 = inlined_call_operand.vmem [shape: f32[4,4], index: 2, kind: input, shape index: {}]
  %s3 = inlined_call_operand.vmem [shape: f32[4,256], index: 3, kind: input, shape index: {}]
  %s4 = inlined_call_operand.hbm [shape: bf16[688,128], index: 4, kind: input, shape index: {}]
  %s5 = inlined_call_operand.vmem [shape: f32[264,256], index: 5, kind: input, shape index: {}]
  %s6 = inlined_call_operand.vmem [shape: f32[400,64], index: 6, kind: input, shape index: {}]
  %s7 = inlined_call_operand.vmem [shape: f32[64,128], index: 7, kind: input, shape index: {}]
  %s8 = inlined_call_operand.vmem [shape: f32[1,8], index: 8, kind: output, shape index: {}]
  %s9 = sld [smem:[#allocation0]]
  $region46: #{detm_forward.1} parent=0
    _
  %s11 = ssub.s32 1, %s9
  %s12 = scalar_select 0, %s11, %s9
  %13 = sst [smem:[#allocation2]] %s0
  $region1: #{detm_forward.1} parent=0
    #allocation3 [shape = 'u8[176128]{0}', space=vmem, size = 0x2b000, scoped, tag = 'input window, operand 4, single buffered']
    #allocation4 [shape = 's32[1]{0}', space=sflag, size = 0x4, scoped, tag = 'scoped memory for detm_forward.1']
    #allocation5 [shape = 's32[1]{0}', space=sflag, size = 0x4, scoped, tag = 'scoped memory for detm_forward.1']
    #allocation6 [shape = 'u8[512]{0}', space=smem, size = 0x200, scoped, tag = 'output window, operand 0, single buffered']
    %14 = vsyncpa [#allocation4], 0
    %15 = vsyncpa [#allocation5], 0
    // Predicated region
    $region2: #{detm_forward.1} parent=1 // pred_check
      _
    $region3: #{detm_forward.1} parent=1 // pred_check_branch
      %17 = sbr.rel (0) target = $region5
    $region4: #{detm_forward.1} parent=1 // pred_region
      _
    $region5: #{detm_forward.1} parent=1 // pred_fallthru
      _
    // Predicated region
    $region6: #{detm_forward.1} parent=1 // pred_check
      _
    $region7: #{detm_forward.1} parent=1 // pred_check_branch
      %19 = sbr.rel (0) target = $region9
    $region8: #{detm_forward.1} parent=1 // pred_region
      _
    $region9: #{detm_forward.1} parent=1 // pred_fallthru
      _
    // Predicated region
    $region10: #{detm_forward.1} parent=1 // pred_check
      _
    $region11: #{detm_forward.1} parent=1 // pred_check_branch
      %21 = sbr.rel (0) target = $region13
    $region12: #{detm_forward.1} parent=1 // pred_region
      _
    $region13: #{detm_forward.1} parent=1 // pred_fallthru
      _
    // Predicated region
    $region14: #{detm_forward.1} parent=1 // pred_check
      _
    $region15: #{detm_forward.1} parent=1 // pred_check_branch
      %23 = sbr.rel (0) target = $region17
    $region16: #{detm_forward.1} parent=1 // pred_region
      _
    $region17: #{detm_forward.1} parent=1 // pred_fallthru
      _
    // Predicated region
    $region18: #{detm_forward.1} parent=1 // pred_check
      _
    $region19: #{detm_forward.1} parent=1 // pred_check_branch
      %25 = sbr.rel (0) target = $region21
    $region20: #{detm_forward.1} parent=1 // pred_region
      %27 = vsyncadd [#allocation4], 0
      %s28 = sshll.u32 %s4, 4
      %s29 = int_to_ptr.hbm [resolvable:$true] %s28
      %s30 = sshll.u32 [#allocation3], 4
      %s31 = int_to_ptr.vmem [resolvable:$true] %s30
      %36 = dma.hbm_to_vmem [thread:$0]  %s29, 5504, %s31, [#allocation4], 64, 64, 4
    $region21: #{detm_forward.1} parent=1 // pred_fallthru
      _
    // Predicated region
    $region22: #{detm_forward.1} parent=1 // pred_check
      _
    $region23: #{detm_forward.1} parent=1 // pred_check_branch
      %38 = sbr.rel (0) target = $region25
    $region24: #{detm_forward.1} parent=1 // pred_region
      _
    $region25: #{detm_forward.1} parent=1 // pred_fallthru
      _
    // Predicated region
    $region26: #{detm_forward.1} parent=1 // pred_check
      _
    $region27: #{detm_forward.1} parent=1 // pred_check_branch
      %40 = sbr.rel (0) target = $region29
    $region28: #{detm_forward.1} parent=1 // pred_region
      _
    $region29: #{detm_forward.1} parent=1 // pred_fallthru
      _
    // Predicated region
    $region30: #{detm_forward.1} parent=1 // pred_check
      _
    $region31: #{detm_forward.1} parent=1 // pred_check_branch
      %42 = sbr.rel (0) target = $region33
    $region32: #{detm_forward.1} parent=1 // pred_region
      _
    $region33: #{detm_forward.1} parent=1 // pred_fallthru
      _
    // Predicated region
    $region34: #{detm_forward.1} parent=1 // pred_check
      _
    $region35: #{detm_forward.1} parent=1 // pred_check_branch
      %44 = sbr.rel (0) target = $region37
    $region36: #{detm_forward.1} parent=1 // pred_region
      %46 = dma.done [#allocation4], 5504
    $region37: #{detm_forward.1} parent=1 // pred_fallthru
      _
    %v48 = vld [vmem:[%s5 + $0x200] sm:$0xff]
    %v49 = vld [vmem:[%s5 + $0x208] sm:$0xff]
    %v50 = vld [vmem:[%s3] sm:$0xff]
    %v51 = vld [vmem:[%s6] sm:$0xff]
    %v52 = vld [vmem:[%s6 + $0x8] sm:$0xff]
    %v53 = vld [vmem:[%s6 + $0x10] sm:$0xff]
    %v54 = vld [vmem:[%s6 + $0x18] sm:$0xff]
    %v55 = vld [vmem:[%s6 + $0x20] sm:$0xff]
    %v56 = vld [vmem:[%s6 + $0x28] sm:$0xff]
    %v57 = vld [vmem:[%s6 + $0x30] sm:$0xff]
    %v58 = vld [vmem:[%s6 + $0x38] sm:$0xff]
    %v59 = vld [vmem:[%s6 + $0x40] sm:$0xff]
    %v60 = vld [vmem:[%s6 + $0x48] sm:$0xff]
    %v61 = vld [vmem:[%s6 + $0x50] sm:$0xff]
    %v62 = vld [vmem:[%s6 + $0x58] sm:$0xff]
    %v63 = vld [vmem:[%s6 + $0x60] sm:$0xff]
    %v64 = vld [vmem:[%s6 + $0x68] sm:$0xff]
    %v65 = vld [vmem:[%s6 + $0x70] sm:$0xff]
    %v66 = vld [vmem:[%s6 + $0x78] sm:$0xff]
    %v67 = vld [vmem:[%s6 + $0x80] sm:$0xff]
    %v68 = vld [vmem:[%s6 + $0x88] sm:$0xff]
    %v69 = vld [vmem:[%s6 + $0x90] sm:$0xff]
    %v70 = vld [vmem:[%s6 + $0x98] sm:$0xff]
    %v71 = vld [vmem:[%s6 + $0xa0] sm:$0xff]
    %v72 = vld [vmem:[%s6 + $0xa8] sm:$0xff]
    %v73 = vld [vmem:[%s6 + $0xb0] sm:$0xff]
    %v74 = vld [vmem:[%s6 + $0xb8] sm:$0xff]
    %v75 = vld [vmem:[%s6 + $0xc0] sm:$0xff]
    %v76 = vld [vmem:[%s6 + $0xc8] sm:$0xff]
    %v77 = vld [vmem:[%s6 + $0xd0] sm:$0xff]
    %v78 = vld [vmem:[%s6 + $0xd8] sm:$0xff]
    %v79 = vld [vmem:[%s6 + $0xe0] sm:$0xff]
    %v80 = vld [vmem:[%s6 + $0xe8] sm:$0xff]
    %v81 = vld [vmem:[%s6 + $0xf0] sm:$0xff]
    %v82 = vld [vmem:[%s6 + $0xf8] sm:$0xff]
    %v83 = vperm.slane %v48, 2
    %85 = vst [vmem:[#allocation1] ss:$2 sm:$0xff] %v50
    %v86 = vld.sshfl [vmem:[#allocation1] sm:$0xff pattern:$0x75316420]
    %v87 = vld.sshfl [vmem:[#allocation1 + $0x8] sm:$0xff pattern:$0x75316420]
    %90 = vmatpush.msra.mxu0 %v66
    %91 = vmatpush.msra.mxu0 %v65
    %92 = vmatpush.msra.mxu0 %v64
    %93 = vmatpush.msra.mxu0 %v63
    %94 = vmatpush.msra.mxu0 %v62
    %95 = vmatpush.msra.mxu0 %v61
    %96 = vmatpush.msra.mxu0 %v60
    %97 = vmatpush.msra.mxu0 %v59
    %98 = vmatpush.msra.mxu0 %v58
    %99 = vmatpush.msra.mxu0 %v57
    %100 = vmatpush.msra.mxu0 %v56
    %101 = vmatpush.msra.mxu0 %v55
    %102 = vmatpush.msra.mxu0 %v54
    %103 = vmatpush.msra.mxu0 %v53
    %104 = vmatpush.msra.mxu0 %v52
    %105 = vmatpush.msra.mxu0 %v51
    %106 = vmatmul.f32.gmra.mxu0 %v86
    %v107 = vpop.f32.mrf.mxu0
    %v108 = vadd.f32 %v83, %v107
    %109 = vdwg.mxu0
    %110 = vmatpush.msra.mxu0 %v82
    %111 = vmatpush.msra.mxu0 %v81
    %112 = vmatpush.msra.mxu0 %v80
    %113 = vmatpush.msra.mxu0 %v79
    %114 = vmatpush.msra.mxu0 %v78
    %115 = vmatpush.msra.mxu0 %v77
    %116 = vmatpush.msra.mxu0 %v76
    %117 = vmatpush.msra.mxu0 %v75
    %118 = vmatpush.msra.mxu0 %v74
    %119 = vmatpush.msra.mxu0 %v73
    %120 = vmatpush.msra.mxu0 %v72
    %121 = vmatpush.msra.mxu0 %v71
    %122 = vmatpush.msra.mxu0 %v70
    %123 = vmatpush.msra.mxu0 %v69
    %124 = vmatpush.msra.mxu0 %v68
    %125 = vmatpush.msra.mxu0 %v67
    %126 = vmatmul.f32.gmra.mxu0 %v87
    %v127 = vpop.f32.mrf.mxu0
    %v128 = vadd.f32 %v108, %v127
    %129 = vdwg.mxu0
    %v130 = vld [vmem:[%s5] sm:$0xff]
    %v131 = vld [vmem:[%s5 + $0x8] sm:$0xff]
    %v132 = vld [vmem:[%s5 + $0x10] sm:$0xff]
    %v133 = vld [vmem:[%s5 + $0x18] sm:$0xff]
    %v134 = vld [vmem:[%s5 + $0x20] sm:$0xff]
    %v135 = vld [vmem:[%s5 + $0x28] sm:$0xff]
    %v136 = vld [vmem:[%s5 + $0x30] sm:$0xff]
    %v137 = vld [vmem:[%s5 + $0x38] sm:$0xff]
    %v138 = vld [vmem:[%s5 + $0x40] sm:$0xff]
    %v139 = vld [vmem:[%s5 + $0x48] sm:$0xff]
    %v140 = vld [vmem:[%s5 + $0x50] sm:$0xff]
    %v141 = vld [vmem:[%s5 + $0x58] sm:$0xff]
    %v142 = vld [vmem:[%s5 + $0x60] sm:$0xff]
    %v143 = vld [vmem:[%s5 + $0x68] sm:$0xff]
    %v144 = vld [vmem:[%s5 + $0x70] sm:$0xff]
    %v145 = vld [vmem:[%s5 + $0x78] sm:$0xff]
    %v146 = vld [vmem:[%s5 + $0x80] sm:$0xff]
    %v147 = vld [vmem:[%s5 + $0x88] sm:$0xff]
    %v148 = vld [vmem:[%s5 + $0x90] sm:$0xff]
    %v149 = vld [vmem:[%s5 + $0x98] sm:$0xff]
    %v150 = vld [vmem:[%s5 + $0xa0] sm:$0xff]
    %v151 = vld [vmem:[%s5 + $0xa8] sm:$0xff]
    %v152 = vld [vmem:[%s5 + $0xb0] sm:$0xff]
    %v153 = vld [vmem:[%s5 + $0xb8] sm:$0xff]
    %v154 = vld [vmem:[%s5 + $0xc0] sm:$0xff]
    %v155 = vld [vmem:[%s5 + $0xc8] sm:$0xff]
    %v156 = vld [vmem:[%s5 + $0xd0] sm:$0xff]
    %v157 = vld [vmem:[%s5 + $0xd8] sm:$0xff]
    %v158 = vld [vmem:[%s5 + $0xe0] sm:$0xff]
    %v159 = vld [vmem:[%s5 + $0xe8] sm:$0xff]
    %v160 = vld [vmem:[%s5 + $0xf0] sm:$0xff]
    %v161 = vld [vmem:[%s5 + $0xf8] sm:$0xff]
    %v162 = vperm.slane %v48, 0
    %v163 = vperm.slane %v49, 0
    %vm164 = vcmask 523264
    %v166 = vsel %vm164, %v128, 0
    %168 = vmatpush.msra.mxu0 0.0
    %169 = vmatpush.msra.mxu0 0.0
    %170 = vmatpush.msra.mxu0 0.0
    %171 = vmatpush.msra.mxu0 0.0
    %172 = vmatpush.msra.mxu0 0.0
    %173 = vmatpush.msra.mxu0 0.0
    %174 = vmatpush.msra.mxu0 0.0
    %175 = vmatpush.msra.mxu0 0.0
    %176 = vmatpush.msra.mxu0 %v144
    %177 = vmatpush.msra.mxu0 %v142
    %178 = vmatpush.msra.mxu0 %v140
    %179 = vmatpush.msra.mxu0 %v138
    %180 = vmatpush.msra.mxu0 %v136
    %181 = vmatpush.msra.mxu0 %v134
    %182 = vmatpush.msra.mxu0 %v132
    %183 = vmatpush.msra.mxu0 %v130
    %184 = vmatmul.f32.gmra.mxu0 %v166
    %v185 = vpop.f32.mrf.mxu0
    %v186 = vadd.f32 %v162, %v185
    %187 = vdwg.mxu0
    %188 = vmatpush.msra.mxu0 0.0
    %189 = vmatpush.msra.mxu0 0.0
    %190 = vmatpush.msra.mxu0 0.0
    %191 = vmatpush.msra.mxu0 0.0
    %192 = vmatpush.msra.mxu0 0.0
    %193 = vmatpush.msra.mxu0 0.0
    %194 = vmatpush.msra.mxu0 0.0
    %195 = vmatpush.msra.mxu0 0.0
    %196 = vmatpush.msra.mxu0 %v145
    %197 = vmatpush.msra.mxu0 %v143
    %198 = vmatpush.msra.mxu0 %v141
    %199 = vmatpush.msra.mxu0 %v139
    %200 = vmatpush.msra.mxu0 %v137
    %201 = vmatpush.msra.mxu0 %v135
    %202 = vmatpush.msra.mxu0 %v133
    %203 = vmatpush.msra.mxu0 %v131
    %204 = vmatmul.f32.gmra.mxu0 %v166
    %v205 = vpop.f32.mrf.mxu0
    %v206 = vadd.f32 %v163, %v205
    %207 = vdwg.mxu0
    %v209 = vsel %vm164, 0.0, 0
    %211 = vmatpush.msra.mxu0 0.0
    %212 = vmatpush.msra.mxu0 0.0
    %213 = vmatpush.msra.mxu0 0.0
    %214 = vmatpush.msra.mxu0 0.0
    %215 = vmatpush.msra.mxu0 0.0
    %216 = vmatpush.msra.mxu0 0.0
    %217 = vmatpush.msra.mxu0 0.0
    %218 = vmatpush.msra.mxu0 0.0
    %219 = vmatpush.msra.mxu0 %v160
    %220 = vmatpush.msra.mxu0 %v158
    %221 = vmatpush.msra.mxu0 %v156
    %222 = vmatpush.msra.mxu0 %v154
    %223 = vmatpush.msra.mxu0 %v152
    %224 = vmatpush.msra.mxu0 %v150
    %225 = vmatpush.msra.mxu0 %v148
    %226 = vmatpush.msra.mxu0 %v146
    %227 = vmatmul.f32.gmra.mxu0 %v209
    %v228 = vpop.f32.mrf.mxu0
    %v229 = vadd.f32 0.0, %v228
    %230 = vdwg.mxu0
    %231 = vmatpush.msra.mxu0 0.0
    %232 = vmatpush.msra.mxu0 0.0
    %233 = vmatpush.msra.mxu0 0.0
    %234 = vmatpush.msra.mxu0 0.0
    %235 = vmatpush.msra.mxu0 0.0
    %236 = vmatpush.msra.mxu0 0.0
    %237 = vmatpush.msra.mxu0 0.0
    %238 = vmatpush.msra.mxu0 0.0
    %239 = vmatpush.msra.mxu0 %v161
    %240 = vmatpush.msra.mxu0 %v159
    %241 = vmatpush.msra.mxu0 %v157
    %242 = vmatpush.msra.mxu0 %v155
    %243 = vmatpush.msra.mxu0 %v153
    %244 = vmatpush.msra.mxu0 %v151
    %245 = vmatpush.msra.mxu0 %v149
    %246 = vmatpush.msra.mxu0 %v147
    %247 = vmatmul.f32.gmra.mxu0 %v209
    %v248 = vpop.f32.mrf.mxu0
    %v249 = vadd.f32 0.0, %v248
    %250 = vdwg.mxu0
    %v251 = vadd.f32 %v186, %v229
    %v252 = vadd.f32 %v206, %v249
    %v253 = vxor.u32 %v251, 2147483648
    %v254 = vmul.f32 %v253, 1.442695
    %v255 = vpow.pop %v254
    %v256 = vadd.f32 %v255, 1.0
    %v257 = vrcp.pop %v256
    %v258 = vmul.f32 %v256, %v257
    %v259 = vsub.f32 1.0, %v258
    %v260 = vmul.f32 %v257, %v259
    %v261 = vadd.f32 %v257, %v260
    %vm262 = vweird.f32 %v256
    %vm263 = vweird.f32 %v257
    %vm264 = vmor %vm262, %vm263
    %v265 = vsel %vm264, %v257, %v261
    %v266 = vand.u32 2147483647, %v256
    %vm267 = vcmp.eq.f32.partialorder %v266, 8.507059e+37
    %v268 = vand.u32 %v256, 2147483648
    %v269 = vor.u32 1.1754944e-38, %v268
    %v270 = vsel %vm267, %v269, %v265
    %v271 = vmul.f32 1.0, %v270
    %v272 = vtanh.pop %v252
    %v273 = vxor.u32 %v252, 2147483648
    %v274 = vmul.f32 %v273, 1.442695
    %v275 = vpow.pop %v274
    %v276 = vadd.f32 %v275, 1.0
    %v277 = vrcp.pop %v276
    %v278 = vmul.f32 %v276, %v277
    %v279 = vsub.f32 1.0, %v278
    %v280 = vmul.f32 %v277, %v279
    %v281 = vadd.f32 %v277, %v280
    %vm282 = vweird.f32 %v276
    %vm283 = vweird.f32 %v277
    %vm284 = vmor %vm282, %vm283
    %v285 = vsel %vm284, %v277, %v281
    %v286 = vand.u32 2147483647, %v276
    %vm287 = vcmp.eq.f32.partialorder %v286, 8.507059e+37
    %v288 = vand.u32 %v276, 2147483648
    %v289 = vor.u32 1.1754944e-38, %v288
    %v290 = vsel %vm287, %v289, %v285
    %v291 = vmul.f32 1.0, %v290
    %v292 = vmul.f32 %v271, 0.0
    %v293 = vmul.f32 %v271, %v272
    %295 = vrot.lane.b32.xlu0 %v293, 64
    %v296 = vpop.permute.xlu0 %295
    %v298 = vadd.f32 %v292, %v296
    %v299 = vtanh.pop %v298
    %v300 = vmul.f32 %v291, %v299
    %302 = vrot.lane.b32.xlu0 %v300, 64
    %v303 = vpop.permute.xlu0 %302
    %v304 = vsel %vm164, %v303, 0
    %306 = vmatpush.msra.mxu0 0.0
    %307 = vmatpush.msra.mxu0 0.0
    %308 = vmatpush.msra.mxu0 0.0
    %309 = vmatpush.msra.mxu0 0.0
    %310 = vmatpush.msra.mxu0 0.0
    %311 = vmatpush.msra.mxu0 0.0
    %312 = vmatpush.msra.mxu0 0.0
    %313 = vmatpush.msra.mxu0 0.0
    %314 = vmatpush.msra.mxu0 %v160
    %315 = vmatpush.msra.mxu0 %v158
    %316 = vmatpush.msra.mxu0 %v156
    %317 = vmatpush.msra.mxu0 %v154
    %318 = vmatpush.msra.mxu0 %v152
    %319 = vmatpush.msra.mxu0 %v150
    %320 = vmatpush.msra.mxu0 %v148
    %321 = vmatpush.msra.mxu0 %v146
    %322 = vmatmul.f32.gmra.mxu0 %v304
    %v323 = vpop.f32.mrf.mxu0
    %v324 = vadd.f32 0.0, %v323
    %325 = vdwg.mxu0
    %326 = vmatpush.msra.mxu0 0.0
    %327 = vmatpush.msra.mxu0 0.0
    %328 = vmatpush.msra.mxu0 0.0
    %329 = vmatpush.msra.mxu0 0.0
    %330 = vmatpush.msra.mxu0 0.0
    %331 = vmatpush.msra.mxu0 0.0
    %332 = vmatpush.msra.mxu0 0.0
    %333 = vmatpush.msra.mxu0 0.0
    %334 = vmatpush.msra.mxu0 %v161
    %335 = vmatpush.msra.mxu0 %v159
    %336 = vmatpush.msra.mxu0 %v157
    %337 = vmatpush.msra.mxu0 %v155
    %338 = vmatpush.msra.mxu0 %v153
    %339 = vmatpush.msra.mxu0 %v151
    %340 = vmatpush.msra.mxu0 %v149
    %341 = vmatpush.msra.mxu0 %v147
    %342 = vmatmul.f32.gmra.mxu0 %v304
    %v343 = vpop.f32.mrf.mxu0
    %v344 = vadd.f32 0.0, %v343
    %345 = vdwg.mxu0
    %v348 = vrot.slane %v324, 7
    %v349 = vrot.slane %v344, 7
    %v352 = vadd.f32 %v186, %v348
    %v353 = vadd.f32 %v206, %v349
    %v354 = vxor.u32 %v352, 2147483648
    %v355 = vmul.f32 %v354, 1.442695
    %v356 = vpow.pop %v355
    %v357 = vadd.f32 %v356, 1.0
    %v358 = vrcp.pop %v357
    %v359 = vmul.f32 %v357, %v358
    %v360 = vsub.f32 1.0, %v359
    %v361 = vmul.f32 %v358, %v360
    %v362 = vadd.f32 %v358, %v361
    %vm363 = vweird.f32 %v357
    %vm364 = vweird.f32 %v358
    %vm365 = vmor %vm363, %vm364
    %v366 = vsel %vm365, %v358, %v362
    %v367 = vand.u32 2147483647, %v357
    %vm368 = vcmp.eq.f32.partialorder %v367, 8.507059e+37
    %v369 = vand.u32 %v357, 2147483648
    %v370 = vor.u32 1.1754944e-38, %v369
    %v371 = vsel %vm368, %v370, %v366
    %v372 = vmul.f32 1.0, %v371
    %v373 = vtanh.pop %v353
    %v374 = vxor.u32 %v353, 2147483648
    %v375 = vmul.f32 %v374, 1.442695
    %v376 = vpow.pop %v375
    %v377 = vadd.f32 %v376, 1.0
    %v378 = vrcp.pop %v377
    %v379 = vmul.f32 %v377, %v378
    %v380 = vsub.f32 1.0, %v379
    %v381 = vmul.f32 %v378, %v380
    %v382 = vadd.f32 %v378, %v381
    %vm383 = vweird.f32 %v377
    %vm384 = vweird.f32 %v378
    %vm385 = vmor %vm383, %vm384
    %v386 = vsel %vm385, %v378, %v382
    %v387 = vand.u32 2147483647, %v377
    %vm388 = vcmp.eq.f32.partialorder %v387, 8.507059e+37
    %v389 = vand.u32 %v377, 2147483648
    %v390 = vor.u32 1.1754944e-38, %v389
    %v391 = vsel %vm388, %v390, %v386
    %v392 = vmul.f32 1.0, %v391
    %v394 = vrot.slane %v298, 7
    %v396 = vmul.f32 %v372, %v394
    %v397 = vmul.f32 %v372, %v373
    %399 = vrot.lane.b32.xlu0 %v397, 64
    %v400 = vpop.permute.xlu0 %399
    %v402 = vadd.f32 %v396, %v400
    %v403 = vtanh.pop %v402
    %v404 = vmul.f32 %v392, %v403
    %v406 = vrot.slane %v404, 1
    %407 = vrot.lane.b32.xlu0 %v406, 64
    %v408 = vpop.permute.xlu0 %407
    %v409 = vsel %vm164, %v408, 0
    %411 = vmatpush.msra.mxu0 0.0
    %412 = vmatpush.msra.mxu0 0.0
    %413 = vmatpush.msra.mxu0 0.0
    %414 = vmatpush.msra.mxu0 0.0
    %415 = vmatpush.msra.mxu0 0.0
    %416 = vmatpush.msra.mxu0 0.0
    %417 = vmatpush.msra.mxu0 0.0
    %418 = vmatpush.msra.mxu0 0.0
    %419 = vmatpush.msra.mxu0 %v160
    %420 = vmatpush.msra.mxu0 %v158
    %421 = vmatpush.msra.mxu0 %v156
    %422 = vmatpush.msra.mxu0 %v154
    %423 = vmatpush.msra.mxu0 %v152
    %424 = vmatpush.msra.mxu0 %v150
    %425 = vmatpush.msra.mxu0 %v148
    %426 = vmatpush.msra.mxu0 %v146
    %427 = vmatmul.f32.gmra.mxu0 %v409
    %v428 = vpop.f32.mrf.mxu0
    %v429 = vadd.f32 0.0, %v428
    %430 = vdwg.mxu0
    %431 = vmatpush.msra.mxu0 0.0
    %432 = vmatpush.msra.mxu0 0.0
    %433 = vmatpush.msra.mxu0 0.0
    %434 = vmatpush.msra.mxu0 0.0
    %435 = vmatpush.msra.mxu0 0.0
    %436 = vmatpush.msra.mxu0 0.0
    %437 = vmatpush.msra.mxu0 0.0
    %438 = vmatpush.msra.mxu0 0.0
    %439 = vmatpush.msra.mxu0 %v161
    %440 = vmatpush.msra.mxu0 %v159
    %441 = vmatpush.msra.mxu0 %v157
    %442 = vmatpush.msra.mxu0 %v155
    %443 = vmatpush.msra.mxu0 %v153
    %444 = vmatpush.msra.mxu0 %v151
    %445 = vmatpush.msra.mxu0 %v149
    %446 = vmatpush.msra.mxu0 %v147
    %447 = vmatmul.f32.gmra.mxu0 %v409
    %v448 = vpop.f32.mrf.mxu0
    %v449 = vadd.f32 0.0, %v448
    %450 = vdwg.mxu0
    %v453 = vrot.slane %v429, 6
    %v454 = vrot.slane %v449, 6
    %v457 = vadd.f32 %v186, %v453
    %v458 = vadd.f32 %v206, %v454
    %v459 = vxor.u32 %v457, 2147483648
    %v460 = vmul.f32 %v459, 1.442695
    %v461 = vpow.pop %v460
    %v462 = vadd.f32 %v461, 1.0
    %v463 = vrcp.pop %v462
    %v464 = vmul.f32 %v462, %v463
    %v465 = vsub.f32 1.0, %v464
    %v466 = vmul.f32 %v463, %v465
    %v467 = vadd.f32 %v463, %v466
    %vm468 = vweird.f32 %v462
    %vm469 = vweird.f32 %v463
    %vm470 = vmor %vm468, %vm469
    %v471 = vsel %vm470, %v463, %v467
    %v472 = vand.u32 2147483647, %v462
    %vm473 = vcmp.eq.f32.partialorder %v472, 8.507059e+37
    %v474 = vand.u32 %v462, 2147483648
    %v475 = vor.u32 1.1754944e-38, %v474
    %v476 = vsel %vm473, %v475, %v471
    %v477 = vmul.f32 1.0, %v476
    %v478 = vtanh.pop %v458
    %v479 = vxor.u32 %v458, 2147483648
    %v480 = vmul.f32 %v479, 1.442695
    %v481 = vpow.pop %v480
    %v482 = vadd.f32 %v481, 1.0
    %v483 = vrcp.pop %v482
    %v484 = vmul.f32 %v482, %v483
    %v485 = vsub.f32 1.0, %v484
    %v486 = vmul.f32 %v483, %v485
    %v487 = vadd.f32 %v483, %v486
    %vm488 = vweird.f32 %v482
    %vm489 = vweird.f32 %v483
    %vm490 = vmor %vm488, %vm489
    %v491 = vsel %vm490, %v483, %v487
    %v492 = vand.u32 2147483647, %v482
    %vm493 = vcmp.eq.f32.partialorder %v492, 8.507059e+37
    %v494 = vand.u32 %v482, 2147483648
    %v495 = vor.u32 1.1754944e-38, %v494
    %v496 = vsel %vm493, %v495, %v491
    %v497 = vmul.f32 1.0, %v496
    %v499 = vrot.slane %v402, 7
    %v501 = vmul.f32 %v477, %v499
    %v502 = vmul.f32 %v477, %v478
    %504 = vrot.lane.b32.xlu0 %v502, 64
    %v505 = vpop.permute.xlu0 %504
    %v507 = vadd.f32 %v501, %v505
    %v508 = vtanh.pop %v507
    %v509 = vmul.f32 %v497, %v508
    %v511 = vrot.slane %v509, 2
    %512 = vrot.lane.b32.xlu0 %v511, 64
    %v513 = vpop.permute.xlu0 %512
    %v514 = vsel %vm164, %v513, 0
    %516 = vmatpush.msra.mxu0 0.0
    %517 = vmatpush.msra.mxu0 0.0
    %518 = vmatpush.msra.mxu0 0.0
    %519 = vmatpush.msra.mxu0 0.0
    %520 = vmatpush.msra.mxu0 0.0
    %521 = vmatpush.msra.mxu0 0.0
    %522 = vmatpush.msra.mxu0 0.0
    %523 = vmatpush.msra.mxu0 0.0
    %524 = vmatpush.msra.mxu0 %v160
    %525 = vmatpush.msra.mxu0 %v158
    %526 = vmatpush.msra.mxu0 %v156
    %527 = vmatpush.msra.mxu0 %v154
    %528 = vmatpush.msra.mxu0 %v152
    %529 = vmatpush.msra.mxu0 %v150
    %530 = vmatpush.msra.mxu0 %v148
    %531 = vmatpush.msra.mxu0 %v146
    %532 = vmatmul.f32.gmra.mxu0 %v514
    %v533 = vpop.f32.mrf.mxu0
    %v534 = vadd.f32 0.0, %v533
    %535 = vdwg.mxu0
    %536 = vmatpush.msra.mxu0 0.0
    %537 = vmatpush.msra.mxu0 0.0
    %538 = vmatpush.msra.mxu0 0.0
    %539 = vmatpush.msra.mxu0 0.0
    %540 = vmatpush.msra.mxu0 0.0
    %541 = vmatpush.msra.mxu0 0.0
    %542 = vmatpush.msra.mxu0 0.0
    %543 = vmatpush.msra.mxu0 0.0
    %544 = vmatpush.msra.mxu0 %v161
    %545 = vmatpush.msra.mxu0 %v159
    %546 = vmatpush.msra.mxu0 %v157
    %547 = vmatpush.msra.mxu0 %v155
    %548 = vmatpush.msra.mxu0 %v153
    %549 = vmatpush.msra.mxu0 %v151
    %550 = vmatpush.msra.mxu0 %v149
    %551 = vmatpush.msra.mxu0 %v147
    %552 = vmatmul.f32.gmra.mxu0 %v514
    %v553 = vpop.f32.mrf.mxu0
    %v554 = vadd.f32 0.0, %v553
    %555 = vdwg.mxu0
    %v558 = vrot.slane %v534, 5
    %v559 = vrot.slane %v554, 5
    %v562 = vadd.f32 %v186, %v558
    %v563 = vadd.f32 %v206, %v559
    %v564 = vxor.u32 %v562, 2147483648
    %v565 = vmul.f32 %v564, 1.442695
    %v566 = vpow.pop %v565
    %v567 = vadd.f32 %v566, 1.0
    %v568 = vrcp.pop %v567
    %v569 = vmul.f32 %v567, %v568
    %v570 = vsub.f32 1.0, %v569
    %v571 = vmul.f32 %v568, %v570
    %v572 = vadd.f32 %v568, %v571
    %vm573 = vweird.f32 %v567
    %vm574 = vweird.f32 %v568
    %vm575 = vmor %vm573, %vm574
    %v576 = vsel %vm575, %v568, %v572
    %v577 = vand.u32 2147483647, %v567
    %vm578 = vcmp.eq.f32.partialorder %v577, 8.507059e+37
    %v579 = vand.u32 %v567, 2147483648
    %v580 = vor.u32 1.1754944e-38, %v579
    %v581 = vsel %vm578, %v580, %v576
    %v582 = vmul.f32 1.0, %v581
    %v583 = vtanh.pop %v563
    %v584 = vxor.u32 %v563, 2147483648
    %v585 = vmul.f32 %v584, 1.442695
    %v586 = vpow.pop %v585
    %v587 = vadd.f32 %v586, 1.0
    %v588 = vrcp.pop %v587
    %v589 = vmul.f32 %v587, %v588
    %v590 = vsub.f32 1.0, %v589
    %v591 = vmul.f32 %v588, %v590
    %v592 = vadd.f32 %v588, %v591
    %vm593 = vweird.f32 %v587
    %vm594 = vweird.f32 %v588
    %vm595 = vmor %vm593, %vm594
    %v596 = vsel %vm595, %v588, %v592
    %v597 = vand.u32 2147483647, %v587
    %vm598 = vcmp.eq.f32.partialorder %v597, 8.507059e+37
    %v599 = vand.u32 %v587, 2147483648
    %v600 = vor.u32 1.1754944e-38, %v599
    %v601 = vsel %vm598, %v600, %v596
    %v602 = vmul.f32 1.0, %v601
    %v604 = vrot.slane %v507, 7
    %v606 = vmul.f32 %v582, %v604
    %v607 = vmul.f32 %v582, %v583
    %609 = vrot.lane.b32.xlu0 %v607, 64
    %v610 = vpop.permute.xlu0 %609
    %v612 = vadd.f32 %v606, %v610
    %v613 = vtanh.pop %v612
    %v614 = vmul.f32 %v602, %v613
    %vm615 = vcmask 1040384
    %v616 = vsel %vm615, %v300, %v404
    %vm617 = vcmask 1041408
    %v618 = vsel %vm617, %v616, %v509
    %vm619 = vcmask 1042432
    %v620 = vsel %vm619, %v618, %v614
    %v621 = vld [vmem:[%s5 + $0x100] sm:$0xff]
    %v622 = vld [vmem:[%s5 + $0x108] sm:$0xff]
    %v623 = vld [vmem:[%s5 + $0x110] sm:$0xff]
    %v624 = vld [vmem:[%s5 + $0x118] sm:$0xff]
    %v625 = vld [vmem:[%s5 + $0x120] sm:$0xff]
    %v626 = vld [vmem:[%s5 + $0x128] sm:$0xff]
    %v627 = vld [vmem:[%s5 + $0x130] sm:$0xff]
    %v628 = vld [vmem:[%s5 + $0x138] sm:$0xff]
    %v629 = vld [vmem:[%s5 + $0x140] sm:$0xff]
    %v630 = vld [vmem:[%s5 + $0x148] sm:$0xff]
    %v631 = vld [vmem:[%s5 + $0x150] sm:$0xff]
    %v632 = vld [vmem:[%s5 + $0x158] sm:$0xff]
    %v633 = vld [vmem:[%s5 + $0x160] sm:$0xff]
    %v634 = vld [vmem:[%s5 + $0x168] sm:$0xff]
    %v635 = vld [vmem:[%s5 + $0x170] sm:$0xff]
    %v636 = vld [vmem:[%s5 + $0x178] sm:$0xff]
    %v637 = vld [vmem:[%s5 + $0x180] sm:$0xff]
    %v638 = vld [vmem:[%s5 + $0x188] sm:$0xff]
    %v639 = vld [vmem:[%s5 + $0x190] sm:$0xff]
    %v640 = vld [vmem:[%s5 + $0x198] sm:$0xff]
    %v641 = vld [vmem:[%s5 + $0x1a0] sm:$0xff]
    %v642 = vld [vmem:[%s5 + $0x1a8] sm:$0xff]
    %v643 = vld [vmem:[%s5 + $0x1b0] sm:$0xff]
    %v644 = vld [vmem:[%s5 + $0x1b8] sm:$0xff]
    %v645 = vld [vmem:[%s5 + $0x1c0] sm:$0xff]
    %v646 = vld [vmem:[%s5 + $0x1c8] sm:$0xff]
    %v647 = vld [vmem:[%s5 + $0x1d0] sm:$0xff]
    %v648 = vld [vmem:[%s5 + $0x1d8] sm:$0xff]
    %v649 = vld [vmem:[%s5 + $0x1e0] sm:$0xff]
    %v650 = vld [vmem:[%s5 + $0x1e8] sm:$0xff]
    %v651 = vld [vmem:[%s5 + $0x1f0] sm:$0xff]
    %v652 = vld [vmem:[%s5 + $0x1f8] sm:$0xff]
    %v653 = vperm.slane %v48, 1
    %v654 = vperm.slane %v49, 1
    %656 = vrot.lane.b32.xlu0 %v620, 64
    %v657 = vpop.permute.xlu0 %656
    %v658 = vsel %vm164, %v657, 0
    %660 = vmatpush.msra.mxu0 0.0
    %661 = vmatpush.msra.mxu0 0.0
    %662 = vmatpush.msra.mxu0 0.0
    %663 = vmatpush.msra.mxu0 0.0
    %664 = vmatpush.msra.mxu0 0.0
    %665 = vmatpush.msra.mxu0 0.0
    %666 = vmatpush.msra.mxu0 0.0
    %667 = vmatpush.msra.mxu0 0.0
    %668 = vmatpush.msra.mxu0 %v635
    %669 = vmatpush.msra.mxu0 %v633
    %670 = vmatpush.msra.mxu0 %v631
    %671 = vmatpush.msra.mxu0 %v629
    %672 = vmatpush.msra.mxu0 %v627
    %673 = vmatpush.msra.mxu0 %v625
    %674 = vmatpush.msra.mxu0 %v623
    %675 = vmatpush.msra.mxu0 %v621
    %676 = vmatmul.f32.gmra.mxu0 %v658
    %v677 = vpop.f32.mrf.mxu0
    %v678 = vadd.f32 %v653, %v677
    %679 = vdwg.mxu0
    %680 = vmatpush.msra.mxu0 0.0
    %681 = vmatpush.msra.mxu0 0.0
    %682 = vmatpush.msra.mxu0 0.0
    %683 = vmatpush.msra.mxu0 0.0
    %684 = vmatpush.msra.mxu0 0.0
    %685 = vmatpush.msra.mxu0 0.0
    %686 = vmatpush.msra.mxu0 0.0
    %687 = vmatpush.msra.mxu0 0.0
    %688 = vmatpush.msra.mxu0 %v636
    %689 = vmatpush.msra.mxu0 %v634
    %690 = vmatpush.msra.mxu0 %v632
    %691 = vmatpush.msra.mxu0 %v630
    %692 = vmatpush.msra.mxu0 %v628
    %693 = vmatpush.msra.mxu0 %v626
    %694 = vmatpush.msra.mxu0 %v624
    %695 = vmatpush.msra.mxu0 %v622
    %696 = vmatmul.f32.gmra.mxu0 %v658
    %v697 = vpop.f32.mrf.mxu0
    %v698 = vadd.f32 %v654, %v697
    %699 = vdwg.mxu0
    %700 = vmatpush.msra.mxu0 0.0
    %701 = vmatpush.msra.mxu0 0.0
    %702 = vmatpush.msra.mxu0 0.0
    %703 = vmatpush.msra.mxu0 0.0
    %704 = vmatpush.msra.mxu0 0.0
    %705 = vmatpush.msra.mxu0 0.0
    %706 = vmatpush.msra.mxu0 0.0
    %707 = vmatpush.msra.mxu0 0.0
    %708 = vmatpush.msra.mxu0 %v651
    %709 = vmatpush.msra.mxu0 %v649
    %710 = vmatpush.msra.mxu0 %v647
    %711 = vmatpush.msra.mxu0 %v645
    %712 = vmatpush.msra.mxu0 %v643
    %713 = vmatpush.msra.mxu0 %v641
    %714 = vmatpush.msra.mxu0 %v639
    %715 = vmatpush.msra.mxu0 %v637
    %716 = vmatmul.f32.gmra.mxu0 %v209
    %v717 = vpop.f32.mrf.mxu0
    %v718 = vadd.f32 0.0, %v717
    %719 = vdwg.mxu0
    %720 = vmatpush.msra.mxu0 0.0
    %721 = vmatpush.msra.mxu0 0.0
    %722 = vmatpush.msra.mxu0 0.0
    %723 = vmatpush.msra.mxu0 0.0
    %724 = vmatpush.msra.mxu0 0.0
    %725 = vmatpush.msra.mxu0 0.0
    %726 = vmatpush.msra.mxu0 0.0
    %727 = vmatpush.msra.mxu0 0.0
    %728 = vmatpush.msra.mxu0 %v652
    %729 = vmatpush.msra.mxu0 %v650
    %730 = vmatpush.msra.mxu0 %v648
    %731 = vmatpush.msra.mxu0 %v646
    %732 = vmatpush.msra.mxu0 %v644
    %733 = vmatpush.msra.mxu0 %v642
    %734 = vmatpush.msra.mxu0 %v640
    %735 = vmatpush.msra.mxu0 %v638
    %736 = vmatmul.f32.gmra.mxu0 %v209
    %v737 = vpop.f32.mrf.mxu0
    %v738 = vadd.f32 0.0, %v737
    %739 = vdwg.mxu0
    %v740 = vadd.f32 %v678, %v718
    %v741 = vadd.f32 %v698, %v738
    %v742 = vxor.u32 %v740, 2147483648
    %v743 = vmul.f32 %v742, 1.442695
    %v744 = vpow.pop %v743
    %v745 = vadd.f32 %v744, 1.0
    %v746 = vrcp.pop %v745
    %v747 = vmul.f32 %v745, %v746
    %v748 = vsub.f32 1.0, %v747
    %v749 = vmul.f32 %v746, %v748
    %v750 = vadd.f32 %v746, %v749
    %vm751 = vweird.f32 %v745
    %vm752 = vweird.f32 %v746
    %vm753 = vmor %vm751, %vm752
    %v754 = vsel %vm753, %v746, %v750
    %v755 = vand.u32 2147483647, %v745
    %vm756 = vcmp.eq.f32.partialorder %v755, 8.507059e+37
    %v757 = vand.u32 %v745, 2147483648
    %v758 = vor.u32 1.1754944e-38, %v757
    %v759 = vsel %vm756, %v758, %v754
    %v760 = vmul.f32 1.0, %v759
    %v761 = vtanh.pop %v741
    %v762 = vxor.u32 %v741, 2147483648
    %v763 = vmul.f32 %v762, 1.442695
    %v764 = vpow.pop %v763
    %v765 = vadd.f32 %v764, 1.0
    %v766 = vrcp.pop %v765
    %v767 = vmul.f32 %v765, %v766
    %v768 = vsub.f32 1.0, %v767
    %v769 = vmul.f32 %v766, %v768
    %v770 = vadd.f32 %v766, %v769
    %vm771 = vweird.f32 %v765
    %vm772 = vweird.f32 %v766
    %vm773 = vmor %vm771, %vm772
    %v774 = vsel %vm773, %v766, %v770
    %v775 = vand.u32 2147483647, %v765
    %vm776 = vcmp.eq.f32.partialorder %v775, 8.507059e+37
    %v777 = vand.u32 %v765, 2147483648
    %v778 = vor.u32 1.1754944e-38, %v777
    %v779 = vsel %vm776, %v778, %v774
    %v780 = vmul.f32 1.0, %v779
    %v781 = vmul.f32 %v760, 0.0
    %v782 = vmul.f32 %v760, %v761
    %784 = vrot.lane.b32.xlu0 %v782, 64
    %v785 = vpop.permute.xlu0 %784
    %v787 = vadd.f32 %v781, %v785
    %v788 = vtanh.pop %v787
    %v789 = vmul.f32 %v780, %v788
    %791 = vrot.lane.b32.xlu0 %v789, 64
    %v792 = vpop.permute.xlu0 %791
    %v793 = vsel %vm164, %v792, 0
    %795 = vmatpush.msra.mxu0 0.0
    %796 = vmatpush.msra.mxu0 0.0
    %797 = vmatpush.msra.mxu0 0.0
    %798 = vmatpush.msra.mxu0 0.0
    %799 = vmatpush.msra.mxu0 0.0
    %800 = vmatpush.msra.mxu0 0.0
    %801 = vmatpush.msra.mxu0 0.0
    %802 = vmatpush.msra.mxu0 0.0
    %803 = vmatpush.msra.mxu0 %v651
    %804 = vmatpush.msra.mxu0 %v649
    %805 = vmatpush.msra.mxu0 %v647
    %806 = vmatpush.msra.mxu0 %v645
    %807 = vmatpush.msra.mxu0 %v643
    %808 = vmatpush.msra.mxu0 %v641
    %809 = vmatpush.msra.mxu0 %v639
    %810 = vmatpush.msra.mxu0 %v637
    %811 = vmatmul.f32.gmra.mxu0 %v793
    %v812 = vpop.f32.mrf.mxu0
    %v813 = vadd.f32 0.0, %v812
    %814 = vdwg.mxu0
    %815 = vmatpush.msra.mxu0 0.0
    %816 = vmatpush.msra.mxu0 0.0
    %817 = vmatpush.msra.mxu0 0.0
    %818 = vmatpush.msra.mxu0 0.0
    %819 = vmatpush.msra.mxu0 0.0
    %820 = vmatpush.msra.mxu0 0.0
    %821 = vmatpush.msra.mxu0 0.0
    %822 = vmatpush.msra.mxu0 0.0
    %823 = vmatpush.msra.mxu0 %v652
    %824 = vmatpush.msra.mxu0 %v650
    %825 = vmatpush.msra.mxu0 %v648
    %826 = vmatpush.msra.mxu0 %v646
    %827 = vmatpush.msra.mxu0 %v644
    %828 = vmatpush.msra.mxu0 %v642
    %829 = vmatpush.msra.mxu0 %v640
    %830 = vmatpush.msra.mxu0 %v638
    %831 = vmatmul.f32.gmra.mxu0 %v793
    %v832 = vpop.f32.mrf.mxu0
    %v833 = vadd.f32 0.0, %v832
    %834 = vdwg.mxu0
    %v837 = vrot.slane %v813, 7
    %v838 = vrot.slane %v833, 7
    %v841 = vadd.f32 %v678, %v837
    %v842 = vadd.f32 %v698, %v838
    %v843 = vxor.u32 %v841, 2147483648
    %v844 = vmul.f32 %v843, 1.442695
    %v845 = vpow.pop %v844
    %v846 = vadd.f32 %v845, 1.0
    %v847 = vrcp.pop %v846
    %v848 = vmul.f32 %v846, %v847
    %v849 = vsub.f32 1.0, %v848
    %v850 = vmul.f32 %v847, %v849
    %v851 = vadd.f32 %v847, %v850
    %vm852 = vweird.f32 %v846
    %vm853 = vweird.f32 %v847
    %vm854 = vmor %vm852, %vm853
    %v855 = vsel %vm854, %v847, %v851
    %v856 = vand.u32 2147483647, %v846
    %vm857 = vcmp.eq.f32.partialorder %v856, 8.507059e+37
    %v858 = vand.u32 %v846, 2147483648
    %v859 = vor.u32 1.1754944e-38, %v858
    %v860 = vsel %vm857, %v859, %v855
    %v861 = vmul.f32 1.0, %v860
    %v862 = vtanh.pop %v842
    %v863 = vxor.u32 %v842, 2147483648
    %v864 = vmul.f32 %v863, 1.442695
    %v865 = vpow.pop %v864
    %v866 = vadd.f32 %v865, 1.0
    %v867 = vrcp.pop %v866
    %v868 = vmul.f32 %v866, %v867
    %v869 = vsub.f32 1.0, %v868
    %v870 = vmul.f32 %v867, %v869
    %v871 = vadd.f32 %v867, %v870
    %vm872 = vweird.f32 %v866
    %vm873 = vweird.f32 %v867
    %vm874 = vmor %vm872, %vm873
    %v875 = vsel %vm874, %v867, %v871
    %v876 = vand.u32 2147483647, %v866
    %vm877 = vcmp.eq.f32.partialorder %v876, 8.507059e+37
    %v878 = vand.u32 %v866, 2147483648
    %v879 = vor.u32 1.1754944e-38, %v878
    %v880 = vsel %vm877, %v879, %v875
    %v881 = vmul.f32 1.0, %v880
    %v883 = vrot.slane %v787, 7
    %v885 = vmul.f32 %v861, %v883
    %v886 = vmul.f32 %v861, %v862
    %888 = vrot.lane.b32.xlu0 %v886, 64
    %v889 = vpop.permute.xlu0 %888
    %v891 = vadd.f32 %v885, %v889
    %v892 = vtanh.pop %v891
    %v893 = vmul.f32 %v881, %v892
    %v895 = vrot.slane %v893, 1
    %896 = vrot.lane.b32.xlu0 %v895, 64
    %v897 = vpop.permute.xlu0 %896
    %v898 = vsel %vm164, %v897, 0
    %900 = vmatpush.msra.mxu0 0.0
    %901 = vmatpush.msra.mxu0 0.0
    %902 = vmatpush.msra.mxu0 0.0
    %903 = vmatpush.msra.mxu0 0.0
    %904 = vmatpush.msra.mxu0 0.0
    %905 = vmatpush.msra.mxu0 0.0
    %906 = vmatpush.msra.mxu0 0.0
    %907 = vmatpush.msra.mxu0 0.0
    %908 = vmatpush.msra.mxu0 %v651
    %909 = vmatpush.msra.mxu0 %v649
    %910 = vmatpush.msra.mxu0 %v647
    %911 = vmatpush.msra.mxu0 %v645
    %912 = vmatpush.msra.mxu0 %v643
    %913 = vmatpush.msra.mxu0 %v641
    %914 = vmatpush.msra.mxu0 %v639
    %915 = vmatpush.msra.mxu0 %v637
    %916 = vmatmul.f32.gmra.mxu0 %v898
    %v917 = vpop.f32.mrf.mxu0
    %v918 = vadd.f32 0.0, %v917
    %919 = vdwg.mxu0
    %920 = vmatpush.msra.mxu0 0.0
    %921 = vmatpush.msra.mxu0 0.0
    %922 = vmatpush.msra.mxu0 0.0
    %923 = vmatpush.msra.mxu0 0.0
    %924 = vmatpush.msra.mxu0 0.0
    %925 = vmatpush.msra.mxu0 0.0
    %926 = vmatpush.msra.mxu0 0.0
    %927 = vmatpush.msra.mxu0 0.0
    %928 = vmatpush.msra.mxu0 %v652
    %929 = vmatpush.msra.mxu0 %v650
    %930 = vmatpush.msra.mxu0 %v648
    %931 = vmatpush.msra.mxu0 %v646
    %932 = vmatpush.msra.mxu0 %v644
    %933 = vmatpush.msra.mxu0 %v642
    %934 = vmatpush.msra.mxu0 %v640
    %935 = vmatpush.msra.mxu0 %v638
    %936 = vmatmul.f32.gmra.mxu0 %v898
    %v937 = vpop.f32.mrf.mxu0
    %v938 = vadd.f32 0.0, %v937
    %939 = vdwg.mxu0
    %v942 = vrot.slane %v918, 6
    %v943 = vrot.slane %v938, 6
    %v946 = vadd.f32 %v678, %v942
    %v947 = vadd.f32 %v698, %v943
    %v948 = vxor.u32 %v946, 2147483648
    %v949 = vmul.f32 %v948, 1.442695
    %v950 = vpow.pop %v949
    %v951 = vadd.f32 %v950, 1.0
    %v952 = vrcp.pop %v951
    %v953 = vmul.f32 %v951, %v952
    %v954 = vsub.f32 1.0, %v953
    %v955 = vmul.f32 %v952, %v954
    %v956 = vadd.f32 %v952, %v955
    %vm957 = vweird.f32 %v951
    %vm958 = vweird.f32 %v952
    %vm959 = vmor %vm957, %vm958
    %v960 = vsel %vm959, %v952, %v956
    %v961 = vand.u32 2147483647, %v951
    %vm962 = vcmp.eq.f32.partialorder %v961, 8.507059e+37
    %v963 = vand.u32 %v951, 2147483648
    %v964 = vor.u32 1.1754944e-38, %v963
    %v965 = vsel %vm962, %v964, %v960
    %v966 = vmul.f32 1.0, %v965
    %v967 = vtanh.pop %v947
    %v968 = vxor.u32 %v947, 2147483648
    %v969 = vmul.f32 %v968, 1.442695
    %v970 = vpow.pop %v969
    %v971 = vadd.f32 %v970, 1.0
    %v972 = vrcp.pop %v971
    %v973 = vmul.f32 %v971, %v972
    %v974 = vsub.f32 1.0, %v973
    %v975 = vmul.f32 %v972, %v974
    %v976 = vadd.f32 %v972, %v975
    %vm977 = vweird.f32 %v971
    %vm978 = vweird.f32 %v972
    %vm979 = vmor %vm977, %vm978
    %v980 = vsel %vm979, %v972, %v976
    %v981 = vand.u32 2147483647, %v971
    %vm982 = vcmp.eq.f32.partialorder %v981, 8.507059e+37
    %v983 = vand.u32 %v971, 2147483648
    %v984 = vor.u32 1.1754944e-38, %v983
    %v985 = vsel %vm982, %v984, %v980
    %v986 = vmul.f32 1.0, %v985
    %v988 = vrot.slane %v891, 7
    %v990 = vmul.f32 %v966, %v988
    %v991 = vmul.f32 %v966, %v967
    %993 = vrot.lane.b32.xlu0 %v991, 64
    %v994 = vpop.permute.xlu0 %993
    %v996 = vadd.f32 %v990, %v994
    %v997 = vtanh.pop %v996
    %v998 = vmul.f32 %v986, %v997
    %v1000 = vrot.slane %v998, 2
    %1001 = vrot.lane.b32.xlu0 %v1000, 64
    %v1002 = vpop.permute.xlu0 %1001
    %v1003 = vsel %vm164, %v1002, 0
    %1005 = vmatpush.msra.mxu0 0.0
    %1006 = vmatpush.msra.mxu0 0.0
    %1007 = vmatpush.msra.mxu0 0.0
    %1008 = vmatpush.msra.mxu0 0.0
    %1009 = vmatpush.msra.mxu0 0.0
    %1010 = vmatpush.msra.mxu0 0.0
    %1011 = vmatpush.msra.mxu0 0.0
    %1012 = vmatpush.msra.mxu0 0.0
    %1013 = vmatpush.msra.mxu0 %v651
    %1014 = vmatpush.msra.mxu0 %v649
    %1015 = vmatpush.msra.mxu0 %v647
    %1016 = vmatpush.msra.mxu0 %v645
    %1017 = vmatpush.msra.mxu0 %v643
    %1018 = vmatpush.msra.mxu0 %v641
    %1019 = vmatpush.msra.mxu0 %v639
    %1020 = vmatpush.msra.mxu0 %v637
    %1021 = vmatmul.f32.gmra.mxu0 %v1003
    %v1022 = vpop.f32.mrf.mxu0
    %v1023 = vadd.f32 0.0, %v1022
    %1024 = vdwg.mxu0
    %1025 = vmatpush.msra.mxu0 0.0
    %1026 = vmatpush.msra.mxu0 0.0
    %1027 = vmatpush.msra.mxu0 0.0
    %1028 = vmatpush.msra.mxu0 0.0
    %1029 = vmatpush.msra.mxu0 0.0
    %1030 = vmatpush.msra.mxu0 0.0
    %1031 = vmatpush.msra.mxu0 0.0
    %1032 = vmatpush.msra.mxu0 0.0
    %1033 = vmatpush.msra.mxu0 %v652
    %1034 = vmatpush.msra.mxu0 %v650
    %1035 = vmatpush.msra.mxu0 %v648
    %1036 = vmatpush.msra.mxu0 %v646
    %1037 = vmatpush.msra.mxu0 %v644
    %1038 = vmatpush.msra.mxu0 %v642
    %1039 = vmatpush.msra.mxu0 %v640
    %1040 = vmatpush.msra.mxu0 %v638
    %1041 = vmatmul.f32.gmra.mxu0 %v1003
    %v1042 = vpop.f32.mrf.mxu0
    %v1043 = vadd.f32 0.0, %v1042
    %1044 = vdwg.mxu0
    %v1047 = vrot.slane %v1023, 5
    %v1048 = vrot.slane %v1043, 5
    %v1051 = vadd.f32 %v678, %v1047
    %v1052 = vadd.f32 %v698, %v1048
    %v1053 = vxor.u32 %v1051, 2147483648
    %v1054 = vmul.f32 %v1053, 1.442695
    %v1055 = vpow.pop %v1054
    %v1056 = vadd.f32 %v1055, 1.0
    %v1057 = vrcp.pop %v1056
    %v1058 = vmul.f32 %v1056, %v1057
    %v1059 = vsub.f32 1.0, %v1058
    %v1060 = vmul.f32 %v1057, %v1059
    %v1061 = vadd.f32 %v1057, %v1060
    %vm1062 = vweird.f32 %v1056
    %vm1063 = vweird.f32 %v1057
    %vm1064 = vmor %vm1062, %vm1063
    %v1065 = vsel %vm1064, %v1057, %v1061
    %v1066 = vand.u32 2147483647, %v1056
    %vm1067 = vcmp.eq.f32.partialorder %v1066, 8.507059e+37
    %v1068 = vand.u32 %v1056, 2147483648
    %v1069 = vor.u32 1.1754944e-38, %v1068
    %v1070 = vsel %vm1067, %v1069, %v1065
    %v1071 = vmul.f32 1.0, %v1070
    %v1072 = vtanh.pop %v1052
    %v1073 = vxor.u32 %v1052, 2147483648
    %v1074 = vmul.f32 %v1073, 1.442695
    %v1075 = vpow.pop %v1074
    %v1076 = vadd.f32 %v1075, 1.0
    %v1077 = vrcp.pop %v1076
    %v1078 = vmul.f32 %v1076, %v1077
    %v1079 = vsub.f32 1.0, %v1078
    %v1080 = vmul.f32 %v1077, %v1079
    %v1081 = vadd.f32 %v1077, %v1080
    %vm1082 = vweird.f32 %v1076
    %vm1083 = vweird.f32 %v1077
    %vm1084 = vmor %vm1082, %vm1083
    %v1085 = vsel %vm1084, %v1077, %v1081
    %v1086 = vand.u32 2147483647, %v1076
    %vm1087 = vcmp.eq.f32.partialorder %v1086, 8.507059e+37
    %v1088 = vand.u32 %v1076, 2147483648
    %v1089 = vor.u32 1.1754944e-38, %v1088
    %v1090 = vsel %vm1087, %v1089, %v1085
    %v1091 = vmul.f32 1.0, %v1090
    %v1093 = vrot.slane %v996, 7
    %v1095 = vmul.f32 %v1071, %v1093
    %v1096 = vmul.f32 %v1071, %v1072
    %1098 = vrot.lane.b32.xlu0 %v1096, 64
    %v1099 = vpop.permute.xlu0 %1098
    %v1101 = vadd.f32 %v1095, %v1099
    %v1102 = vtanh.pop %v1101
    %v1103 = vmul.f32 %v1091, %v1102
    %v1104 = vsel %vm615, %v789, %v893
    %v1105 = vsel %vm617, %v1104, %v998
    %v1106 = vsel %vm619, %v1105, %v1103
    %v1107 = vld [vmem:[%s6 + $0x100] sm:$0xff]
    %v1108 = vld [vmem:[%s6 + $0x108] sm:$0xff]
    %v1109 = vld [vmem:[%s6 + $0x110] sm:$0xff]
    %v1110 = vld [vmem:[%s6 + $0x118] sm:$0xff]
    %v1111 = vld [vmem:[%s6 + $0x120] sm:$0xff]
    %v1112 = vld [vmem:[%s6 + $0x128] sm:$0xff]
    %v1113 = vld [vmem:[%s6 + $0x130] sm:$0xff]
    %v1114 = vld [vmem:[%s6 + $0x138] sm:$0xff]
    %v1115 = vld [vmem:[%s6 + $0x140] sm:$0xff]
    %v1116 = vld [vmem:[%s6 + $0x148] sm:$0xff]
    %v1117 = vld [vmem:[%s6 + $0x150] sm:$0xff]
    %v1118 = vld [vmem:[%s6 + $0x158] sm:$0xff]
    %v1119 = vld [vmem:[%s6 + $0x160] sm:$0xff]
    %v1120 = vld [vmem:[%s6 + $0x168] sm:$0xff]
    %v1121 = vld [vmem:[%s6 + $0x170] sm:$0xff]
    %v1122 = vld [vmem:[%s6 + $0x178] sm:$0xff]
    %v1123 = vld [vmem:[%s6 + $0x180] sm:$0xff]
    %v1124 = vld [vmem:[%s6 + $0x188] sm:$0xff]
    %v1125 = vperm.slane %v48, 3
    %1127 = vrot.lane.b32.xlu0 %v1106, 64
    %v1128 = vpop.permute.xlu0 %1127
    %v1129 = vsel %vm164, %v1128, 0
    %1131 = vmatpush.msra.mxu0 0.0
    %1132 = vmatpush.msra.mxu0 0.0
    %1133 = vmatpush.msra.mxu0 0.0
    %1134 = vmatpush.msra.mxu0 0.0
    %1135 = vmatpush.msra.mxu0 0.0
    %1136 = vmatpush.msra.mxu0 0.0
    %1137 = vmatpush.msra.mxu0 0.0
    %1138 = vmatpush.msra.mxu0 0.0
    %1139 = vmatpush.msra.mxu0 %v1114
    %1140 = vmatpush.msra.mxu0 %v1113
    %1141 = vmatpush.msra.mxu0 %v1112
    %1142 = vmatpush.msra.mxu0 %v1111
    %1143 = vmatpush.msra.mxu0 %v1110
    %1144 = vmatpush.msra.mxu0 %v1109
    %1145 = vmatpush.msra.mxu0 %v1108
    %1146 = vmatpush.msra.mxu0 %v1107
    %1147 = vmatmul.f32.gmra.mxu0 %v1129
    %v1148 = vpop.f32.mrf.mxu0
    %v1149 = vadd.f32 %v1125, %v1148
    %1150 = vdwg.mxu0
    %v1151 = vperm.slane %v48, 4
    %1152 = vmatpush.msra.mxu0 0.0
    %1153 = vmatpush.msra.mxu0 0.0
    %1154 = vmatpush.msra.mxu0 0.0
    %1155 = vmatpush.msra.mxu0 0.0
    %1156 = vmatpush.msra.mxu0 0.0
    %1157 = vmatpush.msra.mxu0 0.0
    %1158 = vmatpush.msra.mxu0 0.0
    %1159 = vmatpush.msra.mxu0 0.0
    %1160 = vmatpush.msra.mxu0 %v1123
    %1161 = vmatpush.msra.mxu0 %v1122
    %1162 = vmatpush.msra.mxu0 %v1121
    %1163 = vmatpush.msra.mxu0 %v1120
    %1164 = vmatpush.msra.mxu0 %v1119
    %1165 = vmatpush.msra.mxu0 %v1118
    %1166 = vmatpush.msra.mxu0 %v1117
    %1167 = vmatpush.msra.mxu0 %v1116
    %1168 = vmatmul.f32.gmra.mxu0 %v1129
    %v1169 = vpop.f32.mrf.mxu0
    %v1170 = vadd.f32 %v1151, %v1169
    %1171 = vdwg.mxu0
    %vm1172 = vcmask 64512
    %v1173 = vsel %vm1172, 0.0, 0
    %1175 = vmatpush.msra.mxu0 0.0
    %1176 = vmatpush.msra.mxu0 0.0
    %1177 = vmatpush.msra.mxu0 0.0
    %1178 = vmatpush.msra.mxu0 0.0
    %1179 = vmatpush.msra.mxu0 0.0
    %1180 = vmatpush.msra.mxu0 0.0
    %1181 = vmatpush.msra.mxu0 0.0
    %1182 = vmatpush.msra.mxu0 0.0
    %1183 = vmatpush.msra.mxu0 0.0
    %1184 = vmatpush.msra.mxu0 0.0
    %1185 = vmatpush.msra.mxu0 0.0
    %1186 = vmatpush.msra.mxu0 0.0
    %1187 = vmatpush.msra.mxu0 0.0
    %1188 = vmatpush.msra.mxu0 0.0
    %1189 = vmatpush.msra.mxu0 0.0
    %1190 = vmatpush.msra.mxu0 %v1115
    %1191 = vmatmul.f32.gmra.mxu0 %v1173
    %v1192 = vpop.f32.mrf.mxu0
    %v1193 = vadd.f32 0.0, %v1192
    %1194 = vdwg.mxu0
    %v1195 = vadd.f32 %v1149, %v1193
    %1196 = vmatpush.msra.mxu0 0.0
    %1197 = vmatpush.msra.mxu0 0.0
    %1198 = vmatpush.msra.mxu0 0.0
    %1199 = vmatpush.msra.mxu0 0.0
    %1200 = vmatpush.msra.mxu0 0.0
    %1201 = vmatpush.msra.mxu0 0.0
    %1202 = vmatpush.msra.mxu0 0.0
    %1203 = vmatpush.msra.mxu0 0.0
    %1204 = vmatpush.msra.mxu0 0.0
    %1205 = vmatpush.msra.mxu0 0.0
    %1206 = vmatpush.msra.mxu0 0.0
    %1207 = vmatpush.msra.mxu0 0.0
    %1208 = vmatpush.msra.mxu0 0.0
    %1209 = vmatpush.msra.mxu0 0.0
    %1210 = vmatpush.msra.mxu0 0.0
    %1211 = vmatpush.msra.mxu0 %v1124
    %1212 = vmatmul.f32.gmra.mxu0 %v1173
    %v1213 = vpop.f32.mrf.mxu0
    %v1214 = vadd.f32 0.0, %v1213
    %1215 = vdwg.mxu0
    %v1216 = vadd.f32 %v1170, %v1214
    %v1217 = vmul.f32 %v1216, 1.442695
    %v1218 = vpow.pop %v1217
    %v1219 = vmul.f32 %v1195, %v1195
    %v1220 = vadd.f32 %v1218, %v1219
    %v1221 = vrcp.pop 1.000001
    %v1222 = vmul.f32 1.000001, %v1221
    %v1223 = vsub.f32 1.0, %v1222
    %v1224 = vmul.f32 %v1221, %v1223
    %v1225 = vadd.f32 %v1221, %v1224
    %vm1226 = vweird.f32 %v1221
    %v1227 = vsel %vm1226, %v1221, %v1225
    %v1228 = vmul.f32 %v1220, %v1227
    %v1229 = vsub.f32 %v1228, 1.0
    %v1230 = vadd.f32 %v1229, 0.0
    %v1231 = vsub.f32 %v1230, %v1216
    %vm1232 = vcmask 57344
    %v1233 = vsel %vm1232, %v1231, 0.0
    %1234 = vadd.xlane.f32.xlu0 %v1233
    %v1235 = vpop.xlane.xlu0 %1234
    %v1236 = vrot.slane %v1235, 4
    %v1237 = vadd.f32 %v1235, %v1236
    %v1238 = vrot.slane %v1237, 2
    %v1239 = vadd.f32 %v1237, %v1238
    %v1240 = vrot.slane %v1239, 1
    %v1241 = vadd.f32 %v1239, %v1240
    %s1242 = vtos %v1241
    %s1243 = smul.f32 %s1242, 0.5
    %s1244 = sadd.f32 %s1243, 0.0
    %v1246 = vsel %vm1172, %v1195, 0
    %1248 = vmatpush.msra.mxu0 0.0
    %1249 = vmatpush.msra.mxu0 0.0
    %1250 = vmatpush.msra.mxu0 0.0
    %1251 = vmatpush.msra.mxu0 0.0
    %1252 = vmatpush.msra.mxu0 0.0
    %1253 = vmatpush.msra.mxu0 0.0
    %1254 = vmatpush.msra.mxu0 0.0
    %1255 = vmatpush.msra.mxu0 0.0
    %1256 = vmatpush.msra.mxu0 0.0
    %1257 = vmatpush.msra.mxu0 0.0
    %1258 = vmatpush.msra.mxu0 0.0
    %1259 = vmatpush.msra.mxu0 0.0
    %1260 = vmatpush.msra.mxu0 0.0
    %1261 = vmatpush.msra.mxu0 0.0
    %1262 = vmatpush.msra.mxu0 0.0
    %1263 = vmatpush.msra.mxu0 %v1115
    %1264 = vmatmul.f32.gmra.mxu0 %v1246
    %v1265 = vpop.f32.mrf.mxu0
    %v1266 = vadd.f32 0.0, %v1265
    %1267 = vdwg.mxu0
    %v1269 = vrot.slane %v1266, 7
    %v1271 = vadd.f32 %v1149, %v1269
    %1272 = vmatpush.msra.mxu0 0.0
    %1273 = vmatpush.msra.mxu0 0.0
    %1274 = vmatpush.msra.mxu0 0.0
    %1275 = vmatpush.msra.mxu0 0.0
    %1276 = vmatpush.msra.mxu0 0.0
    %1277 = vmatpush.msra.mxu0 0.0
    %1278 = vmatpush.msra.mxu0 0.0
    %1279 = vmatpush.msra.mxu0 0.0
    %1280 = vmatpush.msra.mxu0 0.0
    %1281 = vmatpush.msra.mxu0 0.0
    %1282 = vmatpush.msra.mxu0 0.0
    %1283 = vmatpush.msra.mxu0 0.0
    %1284 = vmatpush.msra.mxu0 0.0
    %1285 = vmatpush.msra.mxu0 0.0
    %1286 = vmatpush.msra.mxu0 0.0
    %1287 = vmatpush.msra.mxu0 %v1124
    %1288 = vmatmul.f32.gmra.mxu0 %v1246
    %v1289 = vpop.f32.mrf.mxu0
    %v1290 = vadd.f32 0.0, %v1289
    %1291 = vdwg.mxu0
    %v1293 = vrot.slane %v1290, 7
    %v1295 = vadd.f32 %v1170, %v1293
    %v1296 = vmul.f32 %v1295, 1.442695
    %v1297 = vpow.pop %v1296
    %v1298 = vrot.slane %v1195, 7
    %v1300 = vsub.f32 %v1271, %v1298
    %v1301 = vmul.f32 %v1300, %v1300
    %v1302 = vadd.f32 %v1297, %v1301
    %v1303 = vrcp.pop 0.005001
    %v1304 = vmul.f32 0.005001, %v1303
    %v1305 = vsub.f32 1.0, %v1304
    %v1306 = vmul.f32 %v1303, %v1305
    %v1307 = vadd.f32 %v1303, %v1306
    %vm1308 = vweird.f32 %v1303
    %v1309 = vsel %vm1308, %v1303, %v1307
    %v1310 = vmul.f32 %v1302, %v1309
    %v1311 = vsub.f32 %v1310, 1.0
    %v1312 = vadd.f32 %v1311, -5.2983174
    %v1313 = vsub.f32 %v1312, %v1295
    %v1315 = vrot.slane %v1313, 1
    %v1317 = vsel %vm1232, %v1315, 0.0
    %1318 = vadd.xlane.f32.xlu0 %v1317
    %v1319 = vpop.xlane.xlu0 %1318
    %v1320 = vrot.slane %v1319, 4
    %v1321 = vadd.f32 %v1319, %v1320
    %v1322 = vrot.slane %v1321, 2
    %v1323 = vadd.f32 %v1321, %v1322
    %v1324 = vrot.slane %v1323, 1
    %v1325 = vadd.f32 %v1323, %v1324
    %s1326 = vtos %v1325
    %s1327 = smul.f32 %s1326, 0.5
    %s1328 = sadd.f32 %s1244, %s1327
    %v1330 = vrot.slane %v1271, 1
    %v1331 = vsel %vm1172, %v1330, 0
    %1333 = vmatpush.msra.mxu0 0.0
    %1334 = vmatpush.msra.mxu0 0.0
    %1335 = vmatpush.msra.mxu0 0.0
    %1336 = vmatpush.msra.mxu0 0.0
    %1337 = vmatpush.msra.mxu0 0.0
    %1338 = vmatpush.msra.mxu0 0.0
    %1339 = vmatpush.msra.mxu0 0.0
    %1340 = vmatpush.msra.mxu0 0.0
    %1341 = vmatpush.msra.mxu0 0.0
    %1342 = vmatpush.msra.mxu0 0.0
    %1343 = vmatpush.msra.mxu0 0.0
    %1344 = vmatpush.msra.mxu0 0.0
    %1345 = vmatpush.msra.mxu0 0.0
    %1346 = vmatpush.msra.mxu0 0.0
    %1347 = vmatpush.msra.mxu0 0.0
    %1348 = vmatpush.msra.mxu0 %v1115
    %1349 = vmatmul.f32.gmra.mxu0 %v1331
    %v1350 = vpop.f32.mrf.mxu0
    %v1351 = vadd.f32 0.0, %v1350
    %1352 = vdwg.mxu0
    %v1354 = vrot.slane %v1351, 6
    %v1356 = vadd.f32 %v1149, %v1354
    %1357 = vmatpush.msra.mxu0 0.0
    %1358 = vmatpush.msra.mxu0 0.0
    %1359 = vmatpush.msra.mxu0 0.0
    %1360 = vmatpush.msra.mxu0 0.0
    %1361 = vmatpush.msra.mxu0 0.0
    %1362 = vmatpush.msra.mxu0 0.0
    %1363 = vmatpush.msra.mxu0 0.0
    %1364 = vmatpush.msra.mxu0 0.0
    %1365 = vmatpush.msra.mxu0 0.0
    %1366 = vmatpush.msra.mxu0 0.0
    %1367 = vmatpush.msra.mxu0 0.0
    %1368 = vmatpush.msra.mxu0 0.0
    %1369 = vmatpush.msra.mxu0 0.0
    %1370 = vmatpush.msra.mxu0 0.0
    %1371 = vmatpush.msra.mxu0 0.0
    %1372 = vmatpush.msra.mxu0 %v1124
    %1373 = vmatmul.f32.gmra.mxu0 %v1331
    %v1374 = vpop.f32.mrf.mxu0
    %v1375 = vadd.f32 0.0, %v1374
    %1376 = vdwg.mxu0
    %v1378 = vrot.slane %v1375, 6
    %v1380 = vadd.f32 %v1170, %v1378
    %v1381 = vmul.f32 %v1380, 1.442695
    %v1382 = vpow.pop %v1381
    %v1383 = vrot.slane %v1271, 7
    %v1385 = vsub.f32 %v1356, %v1383
    %v1386 = vmul.f32 %v1385, %v1385
    %v1387 = vadd.f32 %v1382, %v1386
    %v1388 = vmul.f32 %v1387, %v1309
    %v1389 = vsub.f32 %v1388, 1.0
    %v1390 = vadd.f32 %v1389, -5.2983174
    %v1391 = vsub.f32 %v1390, %v1380
    %v1393 = vrot.slane %v1391, 2
    %v1395 = vsel %vm1232, %v1393, 0.0
    %1396 = vadd.xlane.f32.xlu0 %v1395
    %v1397 = vpop.xlane.xlu0 %1396
    %v1398 = vrot.slane %v1397, 4
    %v1399 = vadd.f32 %v1397, %v1398
    %v1400 = vrot.slane %v1399, 2
    %v1401 = vadd.f32 %v1399, %v1400
    %v1402 = vrot.slane %v1401, 1
    %v1403 = vadd.f32 %v1401, %v1402
    %s1404 = vtos %v1403
    %s1405 = smul.f32 %s1404, 0.5
    %s1406 = sadd.f32 %s1328, %s1405
    %v1408 = vrot.slane %v1356, 2
    %v1409 = vsel %vm1172, %v1408, 0
    %1411 = vmatpush.msra.mxu0 0.0
    %1412 = vmatpush.msra.mxu0 0.0
    %1413 = vmatpush.msra.mxu0 0.0
    %1414 = vmatpush.msra.mxu0 0.0
    %1415 = vmatpush.msra.mxu0 0.0
    %1416 = vmatpush.msra.mxu0 0.0
    %1417 = vmatpush.msra.mxu0 0.0
    %1418 = vmatpush.msra.mxu0 0.0
    %1419 = vmatpush.msra.mxu0 0.0
    %1420 = vmatpush.msra.mxu0 0.0
    %1421 = vmatpush.msra.mxu0 0.0
    %1422 = vmatpush.msra.mxu0 0.0
    %1423 = vmatpush.msra.mxu0 0.0
    %1424 = vmatpush.msra.mxu0 0.0
    %1425 = vmatpush.msra.mxu0 0.0
    %1426 = vmatpush.msra.mxu0 %v1115
    %1427 = vmatmul.f32.gmra.mxu0 %v1409
    %v1428 = vpop.f32.mrf.mxu0
    %v1429 = vadd.f32 0.0, %v1428
    %1430 = vdwg.mxu0
    %v1432 = vrot.slane %v1429, 5
    %v1434 = vadd.f32 %v1149, %v1432
    %1435 = vmatpush.msra.mxu0 0.0
    %1436 = vmatpush.msra.mxu0 0.0
    %1437 = vmatpush.msra.mxu0 0.0
    %1438 = vmatpush.msra.mxu0 0.0
    %1439 = vmatpush.msra.mxu0 0.0
    %1440 = vmatpush.msra.mxu0 0.0
    %1441 = vmatpush.msra.mxu0 0.0
    %1442 = vmatpush.msra.mxu0 0.0
    %1443 = vmatpush.msra.mxu0 0.0
    %1444 = vmatpush.msra.mxu0 0.0
    %1445 = vmatpush.msra.mxu0 0.0
    %1446 = vmatpush.msra.mxu0 0.0
    %1447 = vmatpush.msra.mxu0 0.0
    %1448 = vmatpush.msra.mxu0 0.0
    %1449 = vmatpush.msra.mxu0 0.0
    %1450 = vmatpush.msra.mxu0 %v1124
    %1451 = vmatmul.f32.gmra.mxu0 %v1409
    %v1452 = vpop.f32.mrf.mxu0
    %v1453 = vadd.f32 0.0, %v1452
    %1454 = vdwg.mxu0
    %v1456 = vrot.slane %v1453, 5
    %v1458 = vadd.f32 %v1170, %v1456
    %v1459 = vmul.f32 %v1458, 1.442695
    %v1460 = vpow.pop %v1459
    %v1461 = vrot.slane %v1356, 7
    %v1463 = vsub.f32 %v1434, %v1461
    %v1464 = vmul.f32 %v1463, %v1463
    %v1465 = vadd.f32 %v1460, %v1464
    %v1466 = vmul.f32 %v1465, %v1309
    %v1467 = vsub.f32 %v1466, 1.0
    %v1468 = vadd.f32 %v1467, -5.2983174
    %v1469 = vsub.f32 %v1468, %v1458
    %v1471 = vrot.slane %v1469, 3
    %v1473 = vsel %vm1232, %v1471, 0.0
    %1474 = vadd.xlane.f32.xlu0 %v1473
    %v1475 = vpop.xlane.xlu0 %1474
    %v1476 = vrot.slane %v1475, 4
    %v1477 = vadd.f32 %v1475, %v1476
    %v1478 = vrot.slane %v1477, 2
    %v1479 = vadd.f32 %v1477, %v1478
    %v1480 = vrot.slane %v1479, 1
    %v1481 = vadd.f32 %v1479, %v1480
    %s1482 = vtos %v1481
    %s1483 = smul.f32 %s1482, 0.5
    %s1484 = sadd.f32 %s1406, %s1483
    %v1485 = vld [vmem:[%s2] sm:$0xf]
    %1487 = vset.pattern.permute.xlu0 0
    %1488 = vperm.xlu0 %1487, %v1485
    %v1489 = vpop.permute.xlu0 %1488
    %v1491 = vperm.slane %v1195, 0
    %v1492 = vmul.f32 %v1489, %v1491
    %1493 = vset.pattern.permute.xlu0 1
    %1494 = vperm.xlu0 %1493, %v1485
    %v1495 = vpop.permute.xlu0 %1494
    %v1497 = vperm.slane %v1271, 1
    %v1498 = vmul.f32 %v1495, %v1497
    %v1499 = vadd.f32 %v1492, %v1498
    %1500 = vset.pattern.permute.xlu0 2
    %1501 = vperm.xlu0 %1500, %v1485
    %v1502 = vpop.permute.xlu0 %1501
    %v1504 = vperm.slane %v1356, 2
    %v1505 = vmul.f32 %v1502, %v1504
    %v1506 = vadd.f32 %v1499, %v1505
    %1507 = vset.pattern.permute.xlu0 3
    %1508 = vperm.xlu0 %1507, %v1485
    %v1509 = vpop.permute.xlu0 %1508
    %v1511 = vperm.slane %v1434, 3
    %v1512 = vmul.f32 %v1509, %v1511
    %v1513 = vadd.f32 %v1506, %v1512
    %v1514 = vld [vmem:[%s7] sm:$0xff]
    %v1515 = vld [vmem:[%s7 + $0x8] sm:$0xff]
    %v1516 = vld [vmem:[%s7 + $0x10] sm:$0xff]
    %v1517 = vld [vmem:[%s7 + $0x18] sm:$0xff]
    %v1518 = vld [vmem:[%s7 + $0x20] sm:$0xff]
    %v1519 = vld [vmem:[%s7 + $0x28] sm:$0xff]
    %v1520 = vld [vmem:[%s7 + $0x30] sm:$0xff]
    %v1521 = vld [vmem:[%s7 + $0x38] sm:$0xff]
    %v1522 = vmul.f32 %v1518, 1.442695
    %v1523 = vpow.pop %v1522
    %v1524 = vmul.f32 %v1514, %v1514
    %v1525 = vadd.f32 %v1523, %v1524
    %v1526 = vmul.f32 %v1525, %v1227
    %v1527 = vsub.f32 %v1526, 1.0
    %v1528 = vsub.f32 %v1527, %v1518
    %1529 = vadd.xlane.f32.xlu0 %v1528
    %v1530 = vpop.xlane.xlu0 %1529
    %v1531 = vrot.slane %v1530, 4
    %v1532 = vadd.f32 %v1530, %v1531
    %v1533 = vrot.slane %v1532, 2
    %v1534 = vadd.f32 %v1532, %v1533
    %v1535 = vrot.slane %v1534, 1
    %v1536 = vadd.f32 %v1534, %v1535
    %s1537 = vtos %v1536
    %s1538 = smul.f32 %s1537, 0.5
    %v1539 = vmul.f32 %v1519, 1.442695
    %v1540 = vpow.pop %v1539
    %v1541 = vmul.f32 %v1520, 1.442695
    %v1542 = vpow.pop %v1541
    %v1543 = vmul.f32 %v1521, 1.442695
    %v1544 = vpow.pop %v1543
    %v1545 = vsub.f32 %v1515, %v1514
    %v1546 = vsub.f32 %v1516, %v1515
    %v1547 = vsub.f32 %v1517, %v1516
    %v1548 = vmul.f32 %v1545, %v1545
    %v1549 = vmul.f32 %v1546, %v1546
    %v1550 = vmul.f32 %v1547, %v1547
    %v1551 = vadd.f32 %v1540, %v1548
    %v1552 = vadd.f32 %v1542, %v1549
    %v1553 = vadd.f32 %v1544, %v1550
    %v1554 = vmul.f32 %v1551, %v1309
    %v1555 = vmul.f32 %v1552, %v1309
    %v1556 = vmul.f32 %v1553, %v1309
    %v1557 = vsub.f32 %v1554, 1.0
    %v1558 = vsub.f32 %v1555, 1.0
    %v1559 = vsub.f32 %v1556, 1.0
    %v1560 = vadd.f32 %v1557, -5.2983174
    %v1561 = vadd.f32 %v1558, -5.2983174
    %v1562 = vadd.f32 %v1559, -5.2983174
    %v1563 = vsub.f32 %v1560, %v1519
    %v1564 = vsub.f32 %v1561, %v1520
    %v1565 = vsub.f32 %v1562, %v1521
    %v1566 = vadd.f32 %v1563, %v1564
    %v1567 = vadd.f32 %v1566, %v1565
    %1568 = vadd.xlane.f32.xlu0 %v1567
    %v1569 = vpop.xlane.xlu0 %1568
    %v1570 = vrot.slane %v1569, 4
    %v1571 = vadd.f32 %v1569, %v1570
    %v1572 = vrot.slane %v1571, 2
    %v1573 = vadd.f32 %v1571, %v1572
    %v1574 = vrot.slane %v1573, 1
    %v1575 = vadd.f32 %v1573, %v1574
    %s1576 = vtos %v1575
    %s1577 = smul.f32 %s1576, 0.5
    %s1578 = sadd.f32 %s1538, %s1577
    %v1579 = vld [vmem:[%s1] sm:$0xff]
    %1581 = vst [vmem:[#allocation1] ss:$2 sm:$0xff] %v1579
    %v1582 = vld.sshfl [vmem:[#allocation1] sm:$0xff pattern:$0x75316420]
    %v1583 = vld.sshfl [vmem:[#allocation1 + $0x8] sm:$0xff pattern:$0x75316420]
    %vm1586 = vcmask 1043456
    %v1587 = vsel %vm1586, %v1582, 0.0
    %v1588 = vsel %vm1586, %v1583, 0.0
    %v1589 = vadd.f32 %v1587, %v1588
    %1590 = vadd.xlane.f32.xlu0 %v1589
    %v1591 = vpop.xlane.xlu0 %1590
    %v1592 = vmax.f32 %v1591, 1.0
    %v1593 = vrcp.pop %v1592
    %v1596 = vunpack.c.l.s4 839922192
    %v1597 = vunpack.c.0.s8 %v1596
    %v1598 = vperm.slane %v1593, %v1597
    %v1600 = vmul.f32 %v1579, %v1598
    %v1601 = vld [vmem:[#allocation3] sm:$0xf]
    %v1602 = vld [vmem:[#allocation3 + $0x4] sm:$0xf]
    %v1603 = vld [vmem:[#allocation3 + $0x8] sm:$0xf]
    %v1604 = vld [vmem:[#allocation3 + $0xc] sm:$0xf]
    %v1605 = vld [vmem:[#allocation3 + $0x10] sm:$0xf]
    %v1606 = vld [vmem:[#allocation3 + $0x14] sm:$0xf]
    %v1607 = vld [vmem:[#allocation3 + $0x18] sm:$0xf]
    %v1608 = vld [vmem:[#allocation3 + $0x1c] sm:$0xf]
    %v1609 = vld [vmem:[#allocation3 + $0x20] sm:$0xf]
    %v1610 = vld [vmem:[#allocation3 + $0x24] sm:$0xf]
    %v1611 = vld [vmem:[#allocation3 + $0x28] sm:$0xf]
    %v1612 = vld [vmem:[#allocation3 + $0x2c] sm:$0xf]
    %v1613 = vld [vmem:[#allocation3 + $0x30] sm:$0xf]
    %v1614 = vld [vmem:[#allocation3 + $0x34] sm:$0xf]
    %v1615 = vld [vmem:[#allocation3 + $0x38] sm:$0xf]
    %v1616 = vld [vmem:[#allocation3 + $0x3c] sm:$0xf]
    %v1617 = vld [vmem:[#allocation3 + $0x40] sm:$0xf]
    %v1618 = vld [vmem:[#allocation3 + $0x44] sm:$0xf]
    %v1619 = vld [vmem:[#allocation3 + $0x48] sm:$0xf]
    %v1620 = vld [vmem:[#allocation3 + $0x4c] sm:$0xf]
    %v1621 = vld [vmem:[#allocation3 + $0x50] sm:$0xf]
    %v1622 = vld [vmem:[#allocation3 + $0x54] sm:$0xf]
    %v1623 = vld [vmem:[#allocation3 + $0x58] sm:$0xf]
    %v1624 = vld [vmem:[#allocation3 + $0x5c] sm:$0xf]
    %v1625 = vld [vmem:[#allocation3 + $0x60] sm:$0xf]
    %v1626 = vld [vmem:[#allocation3 + $0x64] sm:$0xf]
    %v1627 = vld [vmem:[#allocation3 + $0x68] sm:$0xf]
    %v1628 = vld [vmem:[#allocation3 + $0x6c] sm:$0xf]
    %v1629 = vld [vmem:[#allocation3 + $0x70] sm:$0xf]
    %v1630 = vld [vmem:[#allocation3 + $0x74] sm:$0xf]
    %v1631 = vld [vmem:[#allocation3 + $0x78] sm:$0xf]
    %v1632 = vld [vmem:[#allocation3 + $0x7c] sm:$0xf]
    %v1633 = vld [vmem:[#allocation3 + $0x80] sm:$0xf]
    %v1634 = vld [vmem:[#allocation3 + $0x88] sm:$0xf]
    %v1635 = vld [vmem:[#allocation3 + $0x8c] sm:$0xf]
    %v1636 = vld [vmem:[#allocation3 + $0x90] sm:$0xf]
    %v1637 = vld [vmem:[#allocation3 + $0x94] sm:$0xf]
    %v1638 = vld [vmem:[#allocation3 + $0x98] sm:$0xf]
    %v1639 = vld [vmem:[#allocation3 + $0x9c] sm:$0xf]
    %v1640 = vld [vmem:[#allocation3 + $0xa0] sm:$0xf]
    %v1641 = vld [vmem:[#allocation3 + $0xa4] sm:$0xf]
    %v1642 = vld [vmem:[#allocation3 + $0xa8] sm:$0xf]
    %v1643 = vld [vmem:[#allocation3 + $0xac] sm:$0xf]
    %v1644 = vld [vmem:[#allocation3 + $0xb0] sm:$0xf]
    %v1645 = vld [vmem:[#allocation3 + $0xb4] sm:$0xf]
    %v1646 = vld [vmem:[#allocation3 + $0xb8] sm:$0xf]
    %v1647 = vld [vmem:[#allocation3 + $0xbc] sm:$0xf]
    %v1648 = vld [vmem:[#allocation3 + $0xc0] sm:$0xf]
    %v1649 = vld [vmem:[#allocation3 + $0xc4] sm:$0xf]
    %v1650 = vld [vmem:[#allocation3 + $0xc8] sm:$0xf]
    %v1651 = vld [vmem:[#allocation3 + $0xd0] sm:$0xf]
    %v1652 = vld [vmem:[#allocation3 + $0xd8] sm:$0xf]
    %v1653 = vld [vmem:[#allocation3 + $0xdc] sm:$0xf]
    %v1654 = vld [vmem:[#allocation3 + $0xe0] sm:$0xf]
    %v1655 = vld [vmem:[#allocation3 + $0xe4] sm:$0xf]
    %v1656 = vld [vmem:[#allocation3 + $0xe8] sm:$0xf]
    %v1657 = vld [vmem:[#allocation3 + $0xec] sm:$0xf]
    %v1658 = vld [vmem:[#allocation3 + $0xf0] sm:$0xf]
    %v1659 = vld [vmem:[#allocation3 + $0xf4] sm:$0xf]
    %v1660 = vld [vmem:[#allocation3 + $0xf8] sm:$0xf]
    %v1661 = vld [vmem:[#allocation3 + $0xfc] sm:$0xf]
    %v1662 = vld [vmem:[#allocation3 + $0x100] sm:$0xf]
    %v1663 = vld [vmem:[#allocation3 + $0x104] sm:$0xf]
    %v1664 = vld [vmem:[#allocation3 + $0x108] sm:$0xf]
    %v1665 = vld [vmem:[#allocation3 + $0x10c] sm:$0xf]
    %v1666 = vld [vmem:[#allocation3 + $0x110] sm:$0xf]
    %v1667 = vld [vmem:[#allocation3 + $0x114] sm:$0xf]
    %v1668 = vld [vmem:[#allocation3 + $0x118] sm:$0xf]
    %v1669 = vld [vmem:[#allocation3 + $0x11c] sm:$0xf]
    %v1670 = vld [vmem:[#allocation3 + $0x120] sm:$0xf]
    %v1671 = vld [vmem:[#allocation3 + $0x124] sm:$0xf]
    %v1672 = vld [vmem:[#allocation3 + $0x128] sm:$0xf]
    %v1673 = vld [vmem:[#allocation3 + $0x12c] sm:$0xf]
    %v1674 = vld [vmem:[#allocation3 + $0x130] sm:$0xf]
    %v1675 = vld [vmem:[#allocation3 + $0x134] sm:$0xf]
    %v1676 = vld [vmem:[#allocation3 + $0x138] sm:$0xf]
    %v1677 = vld [vmem:[#allocation3 + $0x13c] sm:$0xf]
    %v1678 = vld [vmem:[#allocation3 + $0x140] sm:$0xf]
    %v1679 = vld [vmem:[#allocation3 + $0x144] sm:$0xf]
    %v1680 = vld [vmem:[#allocation3 + $0x148] sm:$0xf]
    %v1681 = vld [vmem:[#allocation3 + $0x14c] sm:$0xf]
    %v1682 = vld [vmem:[#allocation3 + $0x150] sm:$0xf]
    %v1683 = vld [vmem:[#allocation3 + $0x154] sm:$0xf]
    %1685 = vst [vmem:[#allocation1] ss:$2 sm:$0xff] %v1600
    %v1686 = vld.sshfl [vmem:[#allocation1] sm:$0xff pattern:$0x75316420]
    %v1687 = vld.sshfl [vmem:[#allocation1 + $0x8] sm:$0xff pattern:$0x75316420]
    %v1690 = vpack.c.bf16 %v1686, %v1686
    %v1691 = vpack.c.bf16 %v1687, %v1687
    %v1692 = vpack.c.bf16 %v1513, %v1513
    %v1694 = vsel %vm1172, %v1692, 0
    %v1697 = vsel %vm1586, %v1633, 0
    %1699 = vmatpush.bf16.msra.mxu0 0
    %1700 = vmatpush.bf16.msra.mxu0 0
    %1701 = vmatpush.bf16.msra.mxu0 0
    %1702 = vmatpush.bf16.msra.mxu0 0
    %1703 = vmatpush.bf16.msra.mxu0 0
    %1704 = vmatpush.bf16.msra.mxu0 0
    %1705 = vmatpush.bf16.msra.mxu0 0
    %1706 = vmatpush.bf16.msra.mxu0 %v1697
    %1707 = vmatmul.bf16.gmra.mxu0 %v1694
    %v1708 = vpop.f32.mrf.mxu0
    %v1709 = vadd.f32 0.0, %v1708
    %v1710 = vpop.f32.mrf.mxu0
    %1711 = vdwg.mxu0
    %v1744 = vunpack.c.l.b16 %v1601
    %v1745 = vunpack.c.l.b16 %v1602
    %v1746 = vunpack.c.l.b16 %v1603
    %v1747 = vunpack.c.l.b16 %v1604
    %v1748 = vunpack.c.l.b16 %v1605
    %v1749 = vunpack.c.l.b16 %v1606
    %v1750 = vunpack.c.l.b16 %v1607
    %v1751 = vunpack.c.l.b16 %v1608
    %v1752 = vunpack.c.l.b16 %v1609
    %v1753 = vunpack.c.l.b16 %v1610
    %v1754 = vunpack.c.l.b16 %v1611
    %v1755 = vunpack.c.l.b16 %v1612
    %v1756 = vunpack.c.l.b16 %v1613
    %v1757 = vunpack.c.l.b16 %v1614
    %v1758 = vunpack.c.l.b16 %v1615
    %v1759 = vunpack.c.l.b16 %v1616
    %v1760 = vunpack.c.l.b16 %v1617
    %v1761 = vunpack.c.l.b16 %v1618
    %v1762 = vunpack.c.l.b16 %v1619
    %v1763 = vunpack.c.l.b16 %v1620
    %v1764 = vunpack.c.l.b16 %v1621
    %v1765 = vunpack.c.l.b16 %v1622
    %v1766 = vunpack.c.l.b16 %v1623
    %v1767 = vunpack.c.l.b16 %v1624
    %v1768 = vunpack.c.l.b16 %v1625
    %v1769 = vunpack.c.l.b16 %v1626
    %v1770 = vunpack.c.l.b16 %v1627
    %v1771 = vunpack.c.l.b16 %v1628
    %v1772 = vunpack.c.l.b16 %v1629
    %v1773 = vunpack.c.l.b16 %v1630
    %v1774 = vunpack.c.l.b16 %v1631
    %v1775 = vunpack.c.l.b16 %v1632
    %v1776 = vpack.c.b16 %v1745, %v1744
    %v1777 = vpack.c.b16 %v1747, %v1746
    %v1778 = vpack.c.b16 %v1749, %v1748
    %v1779 = vpack.c.b16 %v1751, %v1750
    %v1780 = vpack.c.b16 %v1753, %v1752
    %v1781 = vpack.c.b16 %v1755, %v1754
    %v1782 = vpack.c.b16 %v1757, %v1756
    %v1783 = vpack.c.b16 %v1759, %v1758
    %v1784 = vpack.c.b16 %v1761, %v1760
    %v1785 = vpack.c.b16 %v1763, %v1762
    %v1786 = vpack.c.b16 %v1765, %v1764
    %v1787 = vpack.c.b16 %v1767, %v1766
    %v1788 = vpack.c.b16 %v1769, %v1768
    %v1789 = vpack.c.b16 %v1771, %v1770
    %v1790 = vpack.c.b16 %v1773, %v1772
    %v1791 = vpack.c.b16 %v1775, %v1774
    %1808 = vmatpush.bf16.msra.mxu0 %v1783
    %1809 = vmatpush.bf16.msra.mxu0 %v1782
    %1810 = vmatpush.bf16.msra.mxu0 %v1781
    %1811 = vmatpush.bf16.msra.mxu0 %v1780
    %1812 = vmatpush.bf16.msra.mxu0 %v1779
    %1813 = vmatpush.bf16.msra.mxu0 %v1778
    %1814 = vmatpush.bf16.msra.mxu0 %v1777
    %1815 = vmatpush.bf16.msra.mxu0 %v1776
    %1816 = vmatmul.bf16.gmra.mxu0 %v1690
    %v1817 = vpop.f32.mrf.mxu0
    %v1818 = vadd.f32 %v1709, %v1817
    %v1819 = vpop.f32.mrf.mxu0
    %1820 = vdwg.mxu0
    %1821 = vmatpush.bf16.msra.mxu0 %v1791
    %1822 = vmatpush.bf16.msra.mxu0 %v1790
    %1823 = vmatpush.bf16.msra.mxu0 %v1789
    %1824 = vmatpush.bf16.msra.mxu0 %v1788
    %1825 = vmatpush.bf16.msra.mxu0 %v1787
    %1826 = vmatpush.bf16.msra.mxu0 %v1786
    %1827 = vmatpush.bf16.msra.mxu0 %v1785
    %1828 = vmatpush.bf16.msra.mxu0 %v1784
    %1829 = vmatmul.bf16.gmra.mxu0 %v1691
    %v1830 = vpop.f32.mrf.mxu0
    %v1831 = vadd.f32 %v1818, %v1830
    %v1832 = vpop.f32.mrf.mxu0
    %1833 = vdwg.mxu0
    %v1834 = vperm.slane %v48, 5
    %v1835 = vadd.f32 %v1831, %v1834
    %v1836 = vmax.f32 %v1835, 0.0
    %v1837 = vpack.c.bf16 %v1836, %v1836
    %v1838 = vperm.slane %v48, 6
    %v1855 = vunpack.c.l.b16 %v1634
    %v1856 = vunpack.c.l.b16 %v1635
    %v1857 = vunpack.c.l.b16 %v1636
    %v1858 = vunpack.c.l.b16 %v1637
    %v1859 = vunpack.c.l.b16 %v1638
    %v1860 = vunpack.c.l.b16 %v1639
    %v1861 = vunpack.c.l.b16 %v1640
    %v1862 = vunpack.c.l.b16 %v1641
    %v1863 = vunpack.c.l.b16 %v1642
    %v1864 = vunpack.c.l.b16 %v1643
    %v1865 = vunpack.c.l.b16 %v1644
    %v1866 = vunpack.c.l.b16 %v1645
    %v1867 = vunpack.c.l.b16 %v1646
    %v1868 = vunpack.c.l.b16 %v1647
    %v1869 = vunpack.c.l.b16 %v1648
    %v1870 = vunpack.c.l.b16 %v1649
    %v1871 = vpack.c.b16 %v1856, %v1855
    %v1872 = vpack.c.b16 %v1858, %v1857
    %v1873 = vpack.c.b16 %v1860, %v1859
    %v1874 = vpack.c.b16 %v1862, %v1861
    %v1875 = vpack.c.b16 %v1864, %v1863
    %v1876 = vpack.c.b16 %v1866, %v1865
    %v1877 = vpack.c.b16 %v1868, %v1867
    %v1878 = vpack.c.b16 %v1870, %v1869
    %1887 = vmatpush.bf16.msra.mxu0 %v1878
    %1888 = vmatpush.bf16.msra.mxu0 %v1877
    %1889 = vmatpush.bf16.msra.mxu0 %v1876
    %1890 = vmatpush.bf16.msra.mxu0 %v1875
    %1891 = vmatpush.bf16.msra.mxu0 %v1874
    %1892 = vmatpush.bf16.msra.mxu0 %v1873
    %1893 = vmatpush.bf16.msra.mxu0 %v1872
    %1894 = vmatpush.bf16.msra.mxu0 %v1871
    %1895 = vmatmul.bf16.gmra.mxu0 %v1837
    %v1896 = vpop.f32.mrf.mxu0
    %v1897 = vadd.f32 %v1838, %v1896
    %v1898 = vpop.f32.mrf.mxu0
    %1899 = vdwg.mxu0
    %v1900 = vmax.f32 %v1897, 0.0
    %v1901 = vpack.c.bf16 %v1900, %v1900
    %v1902 = vperm.slane %v48, 7
    %1903 = vmatpush.bf16.xpose.msra.mxu0 0
    %1904 = vmatpush.bf16.xpose.msra.mxu0 0
    %1905 = vmatpush.bf16.xpose.msra.mxu0 0
    %1906 = vmatpush.bf16.xpose.msra.mxu0 0
    %1907 = vmatpush.bf16.xpose.msra.mxu0 0
    %1908 = vmatpush.bf16.xpose.msra.mxu0 0
    %1909 = vmatpush.bf16.xpose.msra.mxu0 0
    %1910 = vmatpush.bf16.xpose.msra.mxu0 %v1650
    %1911 = vmatmul.bf16.gmra.mxu0 %v1901
    %v1912 = vpop.f32.mrf.mxu0
    %v1913 = vadd.f32 %v1902, %v1912
    %v1914 = vpop.f32.mrf.mxu0
    %1915 = vdwg.mxu0
    %v1916 = vperm.slane %v49, 7
    %1917 = vmatpush.bf16.xpose.msra.mxu0 0
    %1918 = vmatpush.bf16.xpose.msra.mxu0 0
    %1919 = vmatpush.bf16.xpose.msra.mxu0 0
    %1920 = vmatpush.bf16.xpose.msra.mxu0 0
    %1921 = vmatpush.bf16.xpose.msra.mxu0 0
    %1922 = vmatpush.bf16.xpose.msra.mxu0 0
    %1923 = vmatpush.bf16.xpose.msra.mxu0 0
    %1924 = vmatpush.bf16.xpose.msra.mxu0 %v1651
    %1925 = vmatmul.bf16.gmra.mxu0 %v1901
    %v1926 = vpop.f32.mrf.mxu0
    %v1927 = vadd.f32 %v1916, %v1926
    %v1928 = vpop.f32.mrf.mxu0
    %1929 = vdwg.mxu0
    %vm1930 = vcmask 60416
    %v1931 = vsel %vm1930, %v1913, -inf
    %1932 = vmax.xlane.f32.xlu0 %v1931
    %v1933 = vpop.xlane.xlu0 %1932
    %v1934 = vsub.f32 %v1913, %v1933
    %v1935 = vmul.f32 %v1934, 1.442695
    %v1936 = vpow.pop %v1935
    %v1937 = vsel %vm1930, %v1936, 0.0
    %1938 = vadd.xlane.f32.xlu0 %v1937
    %v1939 = vpop.xlane.xlu0 %1938
    %v1940 = vrcp.pop %v1939
    %v1941 = vmul.f32 %v1939, %v1940
    %v1942 = vsub.f32 1.0, %v1941
    %v1943 = vmul.f32 %v1940, %v1942
    %v1944 = vadd.f32 %v1940, %v1943
    %vm1945 = vweird.f32 %v1939
    %vm1946 = vweird.f32 %v1940
    %vm1947 = vmor %vm1945, %vm1946
    %v1948 = vsel %vm1947, %v1940, %v1944
    %v1949 = vand.u32 2147483647, %v1939
    %vm1950 = vcmp.eq.f32.partialorder %v1949, 8.507059e+37
    %v1951 = vand.u32 %v1939, 2147483648
    %v1952 = vor.u32 1.1754944e-38, %v1951
    %v1953 = vsel %vm1950, %v1952, %v1948
    %v1954 = vmul.f32 %v1936, %v1953
    %v1955 = vmul.f32 %v1927, 1.442695
    %v1956 = vpow.pop %v1955
    %v1957 = vsub.f32 %v1913, %v1513
    %v1958 = vmul.f32 %v1957, %v1957
    %v1959 = vadd.f32 %v1956, %v1958
    %v1960 = vmul.f32 %v1959, %v1227
    %v1961 = vsub.f32 %v1960, 1.0
    %v1962 = vsub.f32 %v1961, %v1927
    %v1963 = vsel %vm1930, %v1962, 0.0
    %1964 = vadd.xlane.f32.xlu0 %v1963
    %v1965 = vpop.xlane.xlu0 %1964
    %v1966 = vrot.slane %v1965, 4
    %v1967 = vadd.f32 %v1965, %v1966
    %v1968 = vrot.slane %v1967, 2
    %v1969 = vadd.f32 %v1967, %v1968
    %v1970 = vrot.slane %v1969, 1
    %v1971 = vadd.f32 %v1969, %v1970
    %s1972 = vtos %v1971
    %s1973 = smul.f32 %s1972, 0.5
    %v1974 = vpack.c.bf16 %v1515, %v1514
    %v1975 = vpack.c.bf16 %v1517, %v1516
    %v2008 = vunpack.c.l.b16 %v1652
    %v2009 = vunpack.c.l.b16 %v1653
    %v2010 = vunpack.c.l.b16 %v1654
    %v2011 = vunpack.c.l.b16 %v1655
    %v2012 = vunpack.c.l.b16 %v1656
    %v2013 = vunpack.c.l.b16 %v1657
    %v2014 = vunpack.c.l.b16 %v1658
    %v2015 = vunpack.c.l.b16 %v1659
    %v2016 = vunpack.c.l.b16 %v1660
    %v2017 = vunpack.c.l.b16 %v1661
    %v2018 = vunpack.c.l.b16 %v1662
    %v2019 = vunpack.c.l.b16 %v1663
    %v2020 = vunpack.c.l.b16 %v1664
    %v2021 = vunpack.c.l.b16 %v1665
    %v2022 = vunpack.c.l.b16 %v1666
    %v2023 = vunpack.c.l.b16 %v1667
    %v2024 = vunpack.c.l.b16 %v1668
    %v2025 = vunpack.c.l.b16 %v1669
    %v2026 = vunpack.c.l.b16 %v1670
    %v2027 = vunpack.c.l.b16 %v1671
    %v2028 = vunpack.c.l.b16 %v1672
    %v2029 = vunpack.c.l.b16 %v1673
    %v2030 = vunpack.c.l.b16 %v1674
    %v2031 = vunpack.c.l.b16 %v1675
    %v2032 = vunpack.c.l.b16 %v1676
    %v2033 = vunpack.c.l.b16 %v1677
    %v2034 = vunpack.c.l.b16 %v1678
    %v2035 = vunpack.c.l.b16 %v1679
    %v2036 = vunpack.c.l.b16 %v1680
    %v2037 = vunpack.c.l.b16 %v1681
    %v2038 = vunpack.c.l.b16 %v1682
    %v2039 = vunpack.c.l.b16 %v1683
    %v2040 = vpack.c.b16 %v2009, %v2008
    %v2041 = vpack.c.b16 %v2011, %v2010
    %v2042 = vpack.c.b16 %v2013, %v2012
    %v2043 = vpack.c.b16 %v2015, %v2014
    %v2044 = vpack.c.b16 %v2017, %v2016
    %v2045 = vpack.c.b16 %v2019, %v2018
    %v2046 = vpack.c.b16 %v2021, %v2020
    %v2047 = vpack.c.b16 %v2023, %v2022
    %v2048 = vpack.c.b16 %v2025, %v2024
    %v2049 = vpack.c.b16 %v2027, %v2026
    %v2050 = vpack.c.b16 %v2029, %v2028
    %v2051 = vpack.c.b16 %v2031, %v2030
    %v2052 = vpack.c.b16 %v2033, %v2032
    %v2053 = vpack.c.b16 %v2035, %v2034
    %v2054 = vpack.c.b16 %v2037, %v2036
    %v2055 = vpack.c.b16 %v2039, %v2038
    %2072 = vmatpush.bf16.xpose.msra.mxu0 0
    %2073 = vmatpush.bf16.xpose.msra.mxu0 0
    %2074 = vmatpush.bf16.xpose.msra.mxu0 0
    %2075 = vmatpush.bf16.xpose.msra.mxu0 0
    %2076 = vmatpush.bf16.xpose.msra.mxu0 0
    %2077 = vmatpush.bf16.xpose.msra.mxu0 0
    %2078 = vmatpush.bf16.xpose.msra.mxu0 %v1975
    %2079 = vmatpush.bf16.xpose.msra.mxu0 %v1974
    %2080 = vmatmul.bf16.gmra.mxu0 %v2040
    %v2081 = vpop.f32.mrf.mxu0
    %v2082 = vadd.f32 0.0, %v2081
    %v2083 = vpop.f32.mrf.mxu0
    %v2084 = vadd.f32 0.0, %v2083
    %2085 = vmatmul.bf16.gmra.mxu0 %v2041
    %v2086 = vpop.f32.mrf.mxu0
    %v2087 = vadd.f32 0.0, %v2086
    %v2088 = vpop.f32.mrf.mxu0
    %v2089 = vadd.f32 0.0, %v2088
    %2090 = vmatmul.bf16.gmra.mxu0 %v2042
    %v2091 = vpop.f32.mrf.mxu0
    %v2092 = vadd.f32 0.0, %v2091
    %v2093 = vpop.f32.mrf.mxu0
    %v2094 = vadd.f32 0.0, %v2093
    %2095 = vmatmul.bf16.gmra.mxu0 %v2043
    %v2096 = vpop.f32.mrf.mxu0
    %v2097 = vadd.f32 0.0, %v2096
    %v2098 = vpop.f32.mrf.mxu0
    %v2099 = vadd.f32 0.0, %v2098
    %2100 = vmatmul.bf16.gmra.mxu0 %v2044
    %v2101 = vpop.f32.mrf.mxu0
    %v2102 = vadd.f32 0.0, %v2101
    %v2103 = vpop.f32.mrf.mxu0
    %v2104 = vadd.f32 0.0, %v2103
    %2105 = vmatmul.bf16.gmra.mxu0 %v2045
    %v2106 = vpop.f32.mrf.mxu0
    %v2107 = vadd.f32 0.0, %v2106
    %v2108 = vpop.f32.mrf.mxu0
    %v2109 = vadd.f32 0.0, %v2108
    %2110 = vmatmul.bf16.gmra.mxu0 %v2046
    %v2111 = vpop.f32.mrf.mxu0
    %v2112 = vadd.f32 0.0, %v2111
    %v2113 = vpop.f32.mrf.mxu0
    %v2114 = vadd.f32 0.0, %v2113
    %2115 = vmatmul.bf16.gmra.mxu0 %v2047
    %v2116 = vpop.f32.mrf.mxu0
    %v2117 = vadd.f32 0.0, %v2116
    %v2118 = vpop.f32.mrf.mxu0
    %v2119 = vadd.f32 0.0, %v2118
    %2120 = vmatmul.bf16.gmra.mxu0 %v2048
    %v2121 = vpop.f32.mrf.mxu0
    %v2122 = vadd.f32 0.0, %v2121
    %v2123 = vpop.f32.mrf.mxu0
    %v2124 = vadd.f32 0.0, %v2123
    %2125 = vmatmul.bf16.gmra.mxu0 %v2049
    %v2126 = vpop.f32.mrf.mxu0
    %v2127 = vadd.f32 0.0, %v2126
    %v2128 = vpop.f32.mrf.mxu0
    %v2129 = vadd.f32 0.0, %v2128
    %2130 = vmatmul.bf16.gmra.mxu0 %v2050
    %v2131 = vpop.f32.mrf.mxu0
    %v2132 = vadd.f32 0.0, %v2131
    %v2133 = vpop.f32.mrf.mxu0
    %v2134 = vadd.f32 0.0, %v2133
    %2135 = vmatmul.bf16.gmra.mxu0 %v2051
    %v2136 = vpop.f32.mrf.mxu0
    %v2137 = vadd.f32 0.0, %v2136
    %v2138 = vpop.f32.mrf.mxu0
    %v2139 = vadd.f32 0.0, %v2138
    %2140 = vmatmul.bf16.gmra.mxu0 %v2052
    %v2141 = vpop.f32.mrf.mxu0
    %v2142 = vadd.f32 0.0, %v2141
    %v2143 = vpop.f32.mrf.mxu0
    %v2144 = vadd.f32 0.0, %v2143
    %2145 = vmatmul.bf16.gmra.mxu0 %v2053
    %v2146 = vpop.f32.mrf.mxu0
    %v2147 = vadd.f32 0.0, %v2146
    %v2148 = vpop.f32.mrf.mxu0
    %v2149 = vadd.f32 0.0, %v2148
    %2150 = vmatmul.bf16.gmra.mxu0 %v2054
    %v2151 = vpop.f32.mrf.mxu0
    %v2152 = vadd.f32 0.0, %v2151
    %v2153 = vpop.f32.mrf.mxu0
    %v2154 = vadd.f32 0.0, %v2153
    %2155 = vmatmul.bf16.gmra.mxu0 %v2055
    %v2156 = vpop.f32.mrf.mxu0
    %v2157 = vadd.f32 0.0, %v2156
    %v2158 = vpop.f32.mrf.mxu0
    %v2159 = vadd.f32 0.0, %v2158
    %2160 = vdwg.mxu0
    %vm2161 = vcmask 261120
    %v2162 = vsel %vm2161, %v2082, -inf
    %v2163 = vsel %vm2161, %v2084, -inf
    %v2164 = vsel %vm2161, %v2087, -inf
    %v2165 = vsel %vm2161, %v2089, -inf
    %v2166 = vsel %vm2161, %v2092, -inf
    %v2167 = vmax.f32 %v2162, %v2166
    %v2168 = vsel %vm2161, %v2094, -inf
    %v2169 = vmax.f32 %v2163, %v2168
    %v2170 = vsel %vm2161, %v2097, -inf
    %v2171 = vmax.f32 %v2164, %v2170
    %v2172 = vsel %vm2161, %v2099, -inf
    %v2173 = vmax.f32 %v2165, %v2172
    %v2174 = vsel %vm2161, %v2102, -inf
    %v2175 = vmax.f32 %v2167, %v2174
    %v2176 = vsel %vm2161, %v2104, -inf
    %v2177 = vmax.f32 %v2169, %v2176
    %v2178 = vsel %vm2161, %v2107, -inf
    %v2179 = vmax.f32 %v2171, %v2178
    %v2180 = vsel %vm2161, %v2109, -inf
    %v2181 = vmax.f32 %v2173, %v2180
    %v2182 = vsel %vm2161, %v2112, -inf
    %v2183 = vmax.f32 %v2175, %v2182
    %v2184 = vsel %vm2161, %v2114, -inf
    %v2185 = vmax.f32 %v2177, %v2184
    %v2186 = vsel %vm2161, %v2117, -inf
    %v2187 = vmax.f32 %v2179, %v2186
    %v2188 = vsel %vm2161, %v2119, -inf
    %v2189 = vmax.f32 %v2181, %v2188
    %v2190 = vsel %vm2161, %v2122, -inf
    %v2191 = vmax.f32 %v2183, %v2190
    %v2192 = vsel %vm2161, %v2124, -inf
    %v2193 = vmax.f32 %v2185, %v2192
    %v2194 = vsel %vm2161, %v2127, -inf
    %v2195 = vmax.f32 %v2187, %v2194
    %v2196 = vsel %vm2161, %v2129, -inf
    %v2197 = vmax.f32 %v2189, %v2196
    %v2198 = vsel %vm2161, %v2132, -inf
    %v2199 = vmax.f32 %v2191, %v2198
    %v2200 = vsel %vm2161, %v2134, -inf
    %v2201 = vmax.f32 %v2193, %v2200
    %v2202 = vsel %vm2161, %v2137, -inf
    %v2203 = vmax.f32 %v2195, %v2202
    %v2204 = vsel %vm2161, %v2139, -inf
    %v2205 = vmax.f32 %v2197, %v2204
    %v2206 = vsel %vm2161, %v2142, -inf
    %v2207 = vmax.f32 %v2199, %v2206
    %v2208 = vsel %vm2161, %v2144, -inf
    %v2209 = vmax.f32 %v2201, %v2208
    %v2210 = vsel %vm2161, %v2147, -inf
    %v2211 = vmax.f32 %v2203, %v2210
    %v2212 = vsel %vm2161, %v2149, -inf
    %v2213 = vmax.f32 %v2205, %v2212
    %v2214 = vsel %vm2161, %v2152, -inf
    %v2215 = vmax.f32 %v2207, %v2214
    %v2216 = vsel %vm2161, %v2154, -inf
    %v2217 = vmax.f32 %v2209, %v2216
    %v2218 = vsel %vm2161, %v2157, -inf
    %v2219 = vmax.f32 %v2211, %v2218
    %v2220 = vsel %vm2161, %v2159, -inf
    %v2221 = vmax.f32 %v2213, %v2220
    %v2222 = vmax.f32 %v2215, %v2217
    %v2223 = vmax.f32 %v2219, %v2221
    %v2224 = vmax.f32 %v2222, %v2223
    %v2225 = vrot.slane %v2224, 4
    %v2226 = vmax.f32 %v2224, %v2225
    %v2227 = vrot.slane %v2226, 2
    %v2228 = vmax.f32 %v2226, %v2227
    %v2229 = vrot.slane %v2228, 1
    %v2230 = vmax.f32 %v2228, %v2229
    %v2231 = vsub.f32 %v2082, %v2230
    %v2232 = vsub.f32 %v2084, %v2230
    %v2233 = vsub.f32 %v2087, %v2230
    %v2234 = vsub.f32 %v2089, %v2230
    %v2235 = vsub.f32 %v2092, %v2230
    %v2236 = vsub.f32 %v2094, %v2230
    %v2237 = vsub.f32 %v2097, %v2230
    %v2238 = vsub.f32 %v2099, %v2230
    %v2239 = vsub.f32 %v2102, %v2230
    %v2240 = vsub.f32 %v2104, %v2230
    %v2241 = vsub.f32 %v2107, %v2230
    %v2242 = vsub.f32 %v2109, %v2230
    %v2243 = vsub.f32 %v2112, %v2230
    %v2244 = vsub.f32 %v2114, %v2230
    %v2245 = vsub.f32 %v2117, %v2230
    %v2246 = vsub.f32 %v2119, %v2230
    %v2247 = vsub.f32 %v2122, %v2230
    %v2248 = vsub.f32 %v2124, %v2230
    %v2249 = vsub.f32 %v2127, %v2230
    %v2250 = vsub.f32 %v2129, %v2230
    %v2251 = vsub.f32 %v2132, %v2230
    %v2252 = vsub.f32 %v2134, %v2230
    %v2253 = vsub.f32 %v2137, %v2230
    %v2254 = vsub.f32 %v2139, %v2230
    %v2255 = vsub.f32 %v2142, %v2230
    %v2256 = vsub.f32 %v2144, %v2230
    %v2257 = vsub.f32 %v2147, %v2230
    %v2258 = vsub.f32 %v2149, %v2230
    %v2259 = vsub.f32 %v2152, %v2230
    %v2260 = vsub.f32 %v2154, %v2230
    %v2261 = vsub.f32 %v2157, %v2230
    %v2262 = vsub.f32 %v2159, %v2230
    %v2263 = vmul.f32 %v2231, 1.442695
    %v2264 = vpow.pop %v2263
    %v2265 = vmul.f32 %v2232, 1.442695
    %v2266 = vpow.pop %v2265
    %v2267 = vmul.f32 %v2233, 1.442695
    %v2268 = vpow.pop %v2267
    %v2269 = vmul.f32 %v2234, 1.442695
    %v2270 = vpow.pop %v2269
    %v2271 = vmul.f32 %v2235, 1.442695
    %v2272 = vpow.pop %v2271
    %v2273 = vmul.f32 %v2236, 1.442695
    %v2274 = vpow.pop %v2273
    %v2275 = vmul.f32 %v2237, 1.442695
    %v2276 = vpow.pop %v2275
    %v2277 = vmul.f32 %v2238, 1.442695
    %v2278 = vpow.pop %v2277
    %v2279 = vmul.f32 %v2239, 1.442695
    %v2280 = vpow.pop %v2279
    %v2281 = vmul.f32 %v2240, 1.442695
    %v2282 = vpow.pop %v2281
    %v2283 = vmul.f32 %v2241, 1.442695
    %v2284 = vpow.pop %v2283
    %v2285 = vmul.f32 %v2242, 1.442695
    %v2286 = vpow.pop %v2285
    %v2287 = vmul.f32 %v2243, 1.442695
    %v2288 = vpow.pop %v2287
    %v2289 = vmul.f32 %v2244, 1.442695
    %v2290 = vpow.pop %v2289
    %v2291 = vmul.f32 %v2245, 1.442695
    %v2292 = vpow.pop %v2291
    %v2293 = vmul.f32 %v2246, 1.442695
    %v2294 = vpow.pop %v2293
    %v2295 = vmul.f32 %v2247, 1.442695
    %v2296 = vpow.pop %v2295
    %v2297 = vmul.f32 %v2248, 1.442695
    %v2298 = vpow.pop %v2297
    %v2299 = vmul.f32 %v2249, 1.442695
    %v2300 = vpow.pop %v2299
    %v2301 = vmul.f32 %v2250, 1.442695
    %v2302 = vpow.pop %v2301
    %v2303 = vmul.f32 %v2251, 1.442695
    %v2304 = vpow.pop %v2303
    %v2305 = vmul.f32 %v2252, 1.442695
    %v2306 = vpow.pop %v2305
    %v2307 = vmul.f32 %v2253, 1.442695
    %v2308 = vpow.pop %v2307
    %v2309 = vmul.f32 %v2254, 1.442695
    %v2310 = vpow.pop %v2309
    %v2311 = vmul.f32 %v2255, 1.442695
    %v2312 = vpow.pop %v2311
    %v2313 = vmul.f32 %v2256, 1.442695
    %v2314 = vpow.pop %v2313
    %v2315 = vmul.f32 %v2257, 1.442695
    %v2316 = vpow.pop %v2315
    %v2317 = vmul.f32 %v2258, 1.442695
    %v2318 = vpow.pop %v2317
    %v2319 = vmul.f32 %v2259, 1.442695
    %v2320 = vpow.pop %v2319
    %v2321 = vmul.f32 %v2260, 1.442695
    %v2322 = vpow.pop %v2321
    %v2323 = vmul.f32 %v2261, 1.442695
    %v2324 = vpow.pop %v2323
    %v2325 = vmul.f32 %v2262, 1.442695
    %v2326 = vpow.pop %v2325
    %v2327 = vsel %vm2161, %v2264, 0.0
    %v2328 = vsel %vm2161, %v2266, 0.0
    %v2329 = vadd.f32 %v2327, %v2328
    %v2330 = vsel %vm2161, %v2268, 0.0
    %v2331 = vadd.f32 %v2329, %v2330
    %v2332 = vsel %vm2161, %v2270, 0.0
    %v2333 = vadd.f32 %v2331, %v2332
    %v2334 = vsel %vm2161, %v2272, 0.0
    %v2335 = vadd.f32 %v2333, %v2334
    %v2336 = vsel %vm2161, %v2274, 0.0
    %v2337 = vadd.f32 %v2335, %v2336
    %v2338 = vsel %vm2161, %v2276, 0.0
    %v2339 = vadd.f32 %v2337, %v2338
    %v2340 = vsel %vm2161, %v2278, 0.0
    %v2341 = vadd.f32 %v2339, %v2340
    %v2342 = vsel %vm2161, %v2280, 0.0
    %v2343 = vadd.f32 %v2341, %v2342
    %v2344 = vsel %vm2161, %v2282, 0.0
    %v2345 = vadd.f32 %v2343, %v2344
    %v2346 = vsel %vm2161, %v2284, 0.0
    %v2347 = vadd.f32 %v2345, %v2346
    %v2348 = vsel %vm2161, %v2286, 0.0
    %v2349 = vadd.f32 %v2347, %v2348
    %v2350 = vsel %vm2161, %v2288, 0.0
    %v2351 = vadd.f32 %v2349, %v2350
    %v2352 = vsel %vm2161, %v2290, 0.0
    %v2353 = vadd.f32 %v2351, %v2352
    %v2354 = vsel %vm2161, %v2292, 0.0
    %v2355 = vadd.f32 %v2353, %v2354
    %v2356 = vsel %vm2161, %v2294, 0.0
    %v2357 = vadd.f32 %v2355, %v2356
    %v2358 = vsel %vm2161, %v2296, 0.0
    %v2359 = vadd.f32 %v2357, %v2358
    %v2360 = vsel %vm2161, %v2298, 0.0
    %v2361 = vadd.f32 %v2359, %v2360
    %v2362 = vsel %vm2161, %v2300, 0.0
    %v2363 = vadd.f32 %v2361, %v2362
    %v2364 = vsel %vm2161, %v2302, 0.0
    %v2365 = vadd.f32 %v2363, %v2364
    %v2366 = vsel %vm2161, %v2304, 0.0
    %v2367 = vadd.f32 %v2365, %v2366
    %v2368 = vsel %vm2161, %v2306, 0.0
    %v2369 = vadd.f32 %v2367, %v2368
    %v2370 = vsel %vm2161, %v2308, 0.0
    %v2371 = vadd.f32 %v2369, %v2370
    %v2372 = vsel %vm2161, %v2310, 0.0
    %v2373 = vadd.f32 %v2371, %v2372
    %v2374 = vsel %vm2161, %v2312, 0.0
    %v2375 = vadd.f32 %v2373, %v2374
    %v2376 = vsel %vm2161, %v2314, 0.0
    %v2377 = vadd.f32 %v2375, %v2376
    %v2378 = vsel %vm2161, %v2316, 0.0
    %v2379 = vadd.f32 %v2377, %v2378
    %v2380 = vsel %vm2161, %v2318, 0.0
    %v2381 = vadd.f32 %v2379, %v2380
    %v2382 = vsel %vm2161, %v2320, 0.0
    %v2383 = vadd.f32 %v2381, %v2382
    %v2384 = vsel %vm2161, %v2322, 0.0
    %v2385 = vadd.f32 %v2383, %v2384
    %v2386 = vsel %vm2161, %v2324, 0.0
    %v2387 = vadd.f32 %v2385, %v2386
    %v2388 = vsel %vm2161, %v2326, 0.0
    %v2389 = vadd.f32 %v2387, %v2388
    %v2390 = vrot.slane %v2389, 4
    %v2391 = vadd.f32 %v2389, %v2390
    %v2392 = vrot.slane %v2391, 2
    %v2393 = vadd.f32 %v2391, %v2392
    %v2394 = vrot.slane %v2393, 1
    %v2395 = vadd.f32 %v2393, %v2394
    %v2396 = vrcp.pop %v2395
    %v2397 = vmul.f32 %v1954, %v1489
    %v2398 = vmul.f32 %v1954, %v1495
    %v2399 = vmul.f32 %v1954, %v1502
    %v2400 = vmul.f32 %v1954, %v1509
    %2402 = vrot.lane.b32.xlu0 %v2398, 8
    %v2403 = vpop.permute.xlu0 %2402
    %2406 = vrot.lane.b32.xlu0 %v2399, 16
    %v2407 = vpop.permute.xlu0 %2406
    %2410 = vrot.lane.b32.xlu0 %v2400, 24
    %v2411 = vpop.permute.xlu0 %2410
    %v2413 = vsel %vm1172, %v2397, %v2403
    %vm2414 = vcmask 130048
    %v2415 = vsel %vm2414, %v2413, %v2407
    %vm2416 = vcmask 195584
    %v2417 = vsel %vm2416, %v2415, %v2411
    %v2418 = vmul.f32 %v2417, %v2396
    %v2420 = vsel %vm2161, %v2418, 0
    %v2423 = vsel %vm2161, %v2264, 0
    %v2426 = vsel %vm2161, %v2266, 0
    %v2429 = vsel %vm2161, %v2268, 0
    %v2432 = vsel %vm2161, %v2270, 0
    %v2435 = vsel %vm2161, %v2272, 0
    %v2438 = vsel %vm2161, %v2274, 0
    %v2441 = vsel %vm2161, %v2276, 0
    %v2444 = vsel %vm2161, %v2278, 0
    %v2447 = vsel %vm2161, %v2280, 0
    %v2450 = vsel %vm2161, %v2282, 0
    %v2453 = vsel %vm2161, %v2284, 0
    %v2456 = vsel %vm2161, %v2286, 0
    %v2459 = vsel %vm2161, %v2288, 0
    %v2462 = vsel %vm2161, %v2290, 0
    %v2465 = vsel %vm2161, %v2292, 0
    %v2468 = vsel %vm2161, %v2294, 0
    %v2471 = vsel %vm2161, %v2296, 0
    %v2474 = vsel %vm2161, %v2298, 0
    %v2477 = vsel %vm2161, %v2300, 0
    %v2480 = vsel %vm2161, %v2302, 0
    %v2483 = vsel %vm2161, %v2304, 0
    %v2486 = vsel %vm2161, %v2306, 0
    %v2489 = vsel %vm2161, %v2308, 0
    %v2492 = vsel %vm2161, %v2310, 0
    %v2495 = vsel %vm2161, %v2312, 0
    %v2498 = vsel %vm2161, %v2314, 0
    %v2501 = vsel %vm2161, %v2316, 0
    %v2504 = vsel %vm2161, %v2318, 0
    %v2507 = vsel %vm2161, %v2320, 0
    %v2510 = vsel %vm2161, %v2322, 0
    %v2513 = vsel %vm2161, %v2324, 0
    %v2516 = vsel %vm2161, %v2326, 0
    %2518 = vmatpush.xpose.msra.mxu0 %v2468
    %2519 = vmatpush.xpose.msra.mxu0 %v2465
    %2520 = vmatpush.xpose.msra.mxu0 %v2462
    %2521 = vmatpush.xpose.msra.mxu0 %v2459
    %2522 = vmatpush.xpose.msra.mxu0 %v2456
    %2523 = vmatpush.xpose.msra.mxu0 %v2453
    %2524 = vmatpush.xpose.msra.mxu0 %v2450
    %2525 = vmatpush.xpose.msra.mxu0 %v2447
    %2526 = vmatpush.xpose.msra.mxu0 %v2444
    %2527 = vmatpush.xpose.msra.mxu0 %v2441
    %2528 = vmatpush.xpose.msra.mxu0 %v2438
    %2529 = vmatpush.xpose.msra.mxu0 %v2435
    %2530 = vmatpush.xpose.msra.mxu0 %v2432
    %2531 = vmatpush.xpose.msra.mxu0 %v2429
    %2532 = vmatpush.xpose.msra.mxu0 %v2426
    %2533 = vmatpush.xpose.msra.mxu0 %v2423
    %2534 = vmatmul.f32.gmra.mxu0 %v2420
    %v2535 = vpop.f32.mrf.mxu0
    %v2536 = vadd.f32 1e-06, %v2535
    %2537 = vdwg.mxu0
    %2538 = vmatpush.xpose.msra.mxu0 %v2516
    %2539 = vmatpush.xpose.msra.mxu0 %v2513
    %2540 = vmatpush.xpose.msra.mxu0 %v2510
    %2541 = vmatpush.xpose.msra.mxu0 %v2507
    %2542 = vmatpush.xpose.msra.mxu0 %v2504
    %2543 = vmatpush.xpose.msra.mxu0 %v2501
    %2544 = vmatpush.xpose.msra.mxu0 %v2498
    %2545 = vmatpush.xpose.msra.mxu0 %v2495
    %2546 = vmatpush.xpose.msra.mxu0 %v2492
    %2547 = vmatpush.xpose.msra.mxu0 %v2489
    %2548 = vmatpush.xpose.msra.mxu0 %v2486
    %2549 = vmatpush.xpose.msra.mxu0 %v2483
    %2550 = vmatpush.xpose.msra.mxu0 %v2480
    %2551 = vmatpush.xpose.msra.mxu0 %v2477
    %2552 = vmatpush.xpose.msra.mxu0 %v2474
    %2553 = vmatpush.xpose.msra.mxu0 %v2471
    %2554 = vmatmul.f32.gmra.mxu0 %v2420
    %v2555 = vpop.f32.mrf.mxu0
    %v2556 = vadd.f32 1e-06, %v2555
    %2557 = vdwg.mxu0
    %v2558 = vlog2.pop %v2536
    %v2559 = vmul.f32 %v2558, 0.6931472
    %v2560 = vlog2.pop %v2556
    %v2561 = vmul.f32 %v2560, 0.6931472
    %v2562 = vsub.f32 0.0, %v2559
    %v2563 = vsub.f32 0.0, %v2561
    %2564 = vst [vmem:[#allocation1] ss:$2 sm:$0xff] %v1579
    %v2565 = vld.sshfl [vmem:[#allocation1] sm:$0xff pattern:$0x75316420]
    %v2566 = vld.sshfl [vmem:[#allocation1 + $0x8] sm:$0xff pattern:$0x75316420]
    %v2569 = vmul.f32 %v2562, %v2565
    %v2570 = vmul.f32 %v2563, %v2566
    %v2571 = vsel %vm1586, %v2569, 0.0
    %v2572 = vsel %vm1586, %v2570, 0.0
    %v2573 = vadd.f32 %v2571, %v2572
    %2574 = vadd.xlane.f32.xlu0 %v2573
    %v2575 = vpop.xlane.xlu0 %2574
    %v2576 = vrot.slane %v2575, 4
    %v2577 = vadd.f32 %v2575, %v2576
    %v2578 = vrot.slane %v2577, 2
    %v2579 = vadd.f32 %v2577, %v2578
    %v2580 = vrot.slane %v2579, 1
    %v2581 = vadd.f32 %v2579, %v2580
    %s2582 = vtos %v2581
    %s2583 = sld [smem:[#allocation2]]
    %s2584 = smul.f32 %s2582, %s2583
    %s2585 = smul.f32 %s1973, %s2583
    %s2586 = sadd.f32 %s2584, %s1578
    %s2587 = sadd.f32 %s2586, %s1484
    %s2588 = sadd.f32 %s2587, %s2585
    %s2589 = scalar_lea.smem [#allocation6], 0
    %2590 = sst [smem:[%s2589]] %s2588
    %s2591 = scalar_lea.smem [#allocation6], 1
    %2592 = sst [smem:[%s2591]] %s2584
    %s2593 = scalar_lea.smem [#allocation6], 2
    %2594 = sst [smem:[%s2593]] %s1578
    %s2595 = scalar_lea.smem [#allocation6], 3
    %2596 = sst [smem:[%s2595]] %s1484
    %s2597 = scalar_lea.smem [#allocation6], 4
    %2598 = sst [smem:[%s2597]] %s2585
    %s2599 = scalar_lea.smem [#allocation6], 5
    %2600 = sst [smem:[%s2599]] 0.0
    %s2601 = scalar_lea.smem [#allocation6], 6
    %2602 = sst [smem:[%s2601]] 0.0
    %s2603 = scalar_lea.smem [#allocation6], 7
    %2604 = sst [smem:[%s2603]] 0.0
    // Predicated region
    $region38: #{detm_forward.1} parent=1 // pred_check
      _
    $region39: #{detm_forward.1} parent=1 // pred_check_branch
      %2606 = sbr.rel (0) target = $region41
    $region40: #{detm_forward.1} parent=1 // pred_region
      %2608 = vsyncadd [#allocation5], 0
      %s2610 = sshll.u32 %s8, 4
      %s2611 = int_to_ptr.vmem [resolvable:$true] %s2610
      %2613 = dma.smem_to_vmem [#allocation6], 16, %s2611, [#allocation5]
    $region41: #{detm_forward.1} parent=1 // pred_fallthru
      _
    // Predicated region
    $region42: #{detm_forward.1} parent=1 // pred_check
      _
    $region43: #{detm_forward.1} parent=1 // pred_check_branch
      %2615 = sbr.rel (0) target = $region45
    $region44: #{detm_forward.1} parent=1 // pred_region
      %2617 = dma.done [#allocation5], 16
    $region45: #{detm_forward.1} parent=1 // pred_fallthru
      _
    %2618 = sfence
    %2619 = vsyncpa [#allocation4], 1
    %2620 = vsyncpa [#allocation5], 1

</llo_original>
